<compile_context>
chip_gen: v5e
topology: v5e:2x2
jax: 0.10.0
libtpu: 0.0.40
codegen_flags: <defaults>
</compile_context>

<pallas_src>
import functools

import jax
import jax.numpy as jnp
from jax.experimental import pallas as pl
from jax.experimental.pallas import tpu as pltpu


def _round_up(value, multiple):
    return ((value + multiple - 1) // multiple) * multiple


def _full_spec(arr):
    """Whole-array (grid-invariant) BlockSpec for a weight tensor."""
    assert arr.ndim == 2
    return pl.BlockSpec(arr.shape, lambda i: (0, 0))


def _pick_tile_m(m):
    # Two balanced grid steps: shards across v7x's 2 TensorCores; costs one
    # extra ~0.35us grid step on single-TC chips (v5e/v6e) -- negligible.
    return max(8, _round_up(-(-m // 2), 8))


# ---------------------------------------------------------------------------
# Shared GRU_unit body (node='NODE', masked_update=True)
# ---------------------------------------------------------------------------
def _gru_body(xin, w1ur, b1ur, w2g, b2g, w1n, b1n, w2n, b2n, *, L, D, mm_dtype):
    """xin: (tm, F) = [y_mean | y_std | x | 0].  Returns (tm, F) with lanes
    [0, L) = new_y, [L, 2L) = new_y_std (abs applied); lanes >= 2L are junk."""
    f32 = jnp.float32
    F = xin.shape[-1]

    def mm(a, w):
        return jnp.dot(a.astype(mm_dtype), w, preferred_element_type=f32)

    # Fused update|reset first layer: one K=F, N=2*Up matmul.
    h_ur = jnp.tanh(mm(xin, w1ur) + b1ur)                      # (tm, 2*Up)

    # Fused (block-diagonal) update|reset second layer: one K=2*Up, N=2*F matmul.
    #   lanes [0, F)  : r_ext = [r | r | ~1 ... ]   (ones over x/pad lanes via bias)
    #   lanes [F, 2F) : u_ext = [u | u | junk ]
    g = jax.nn.sigmoid(mm(h_ur, w2g) + b2g)                    # (tm, 2*F)
    r_ext = g[:, :F]
    u_ext = g[:, F:]

    # new_state net on [y_mean*r | y_std*r | x | 0] -- a single matmul.
    gated = xin * r_ext
    h_n = jnp.tanh(mm(gated, w1n) + b1n)                       # (tm, Up)
    ns = mm(h_n, w2n) + b2n                                    # (tm, F); lanes>=2L are 0

    lane = jax.lax.broadcasted_iota(jnp.int32, ns.shape, 1)
    is_std = (lane >= L) & (lane < 2 * L)
    ns = jnp.where(is_std, jnp.abs(ns), ns)                    # abs(new_state_std)

    # GRU blend, jointly for [new_y | new_y_std] (junk past 2L lanes is finite).
    out = (1.0 - u_ext) * ns + u_ext * xin

    # masked update: mask = (sum of mask features > 0), computed from xin lanes.
    # TODO(synk): utils.check_mask (data==0 wherever mask==0) is an assertion-only
    # consistency check in the original code; skipped here.
    is_mask_lane = (lane >= 2 * L + D // 2) & (lane < 2 * L + D)
    msum = jnp.sum(jnp.where(is_mask_lane, xin, 0.0), axis=-1, keepdims=True)
    mask = (msum > 0.0).astype(f32)
    out = mask * out + (1.0 - mask) * xin
    return jnp.where(is_std, jnp.abs(out), out)                # final new_y_std.abs()


# ---------------------------------------------------------------------------
# Kernel 1: GRU_unit.forward
# ---------------------------------------------------------------------------
def gru_unit_kernel(xin_ref, w1ur_ref, b1ur_ref, w2g_ref, b2g_ref,
                    w1n_ref, b1n_ref, w2n_ref, b2n_ref, out_ref, *, L, D):
    out = _gru_body(xin_ref[...], w1ur_ref[...], b1ur_ref[...],
                    w2g_ref[...], b2g_ref[...], w1n_ref[...], b1n_ref[...],
                    w2n_ref[...], b2n_ref[...], L=L, D=D, mm_dtype=w1ur_ref.dtype)
    out_ref[...] = out.astype(out_ref.dtype)


# ---------------------------------------------------------------------------
# Kernel 2: fused GRU_unit + transform_z0 (single-time-step encoder branch)
# ---------------------------------------------------------------------------
def encoder_step_kernel(xin_ref, w1ur_ref, b1ur_ref, w2g_ref, b2g_ref,
                        w1n_ref, b1n_ref, w2n_ref, b2n_ref,
                        w1z_ref, b1z_ref, w2z_ref, b2z_ref, out_ref, *, L, D, z0_dim):
    f32 = jnp.float32
    mm_dtype = w1ur_ref.dtype

    state = _gru_body(xin_ref[...], w1ur_ref[...], b1ur_ref[...],
                      w2g_ref[...], b2g_ref[...], w1n_ref[...], b1n_ref[...],
                      w2n_ref[...], b2n_ref[...], L=L, D=D, mm_dtype=mm_dtype)

    def mm(a, w):
        return jnp.dot(a.astype(mm_dtype), w, preferred_element_type=f32)

    # transform_z0: Linear -> Tanh -> Linear (w1z rows >= 2L are zero, so the
    # junk lanes of `state` are ignored).  State is consumed while in vregs.
    hz = jnp.tanh(mm(state, w1z_ref[...]) + b1z_ref[...])      # (tm, Up)
    oz = mm(hz, w2z_ref[...]) + b2z_ref[...]                   # (tm, F)
    lane = jax.lax.broadcasted_iota(jnp.int32, oz.shape, 1)
    is_stdz = (lane >= z0_dim) & (lane < 2 * z0_dim)
    out_ref[...] = jnp.where(is_stdz, jnp.abs(oz), oz).astype(out_ref.dtype)


# ---------------------------------------------------------------------------
# Parameter init (mirrors utils.init_network_weights: W ~ N(0, 0.1), b = 0)
# ---------------------------------------------------------------------------
def _init_linear(key, d_in, d_out):
    w = jax.random.normal(key, (d_out, d_in), jnp.float32) * 0.1   # torch (out, in)
    b = jnp.zeros((d_out,), jnp.float32)
    return w, b


def init_gru_params(key, latent_dim, input_dim, n_units):
    L, D, U = latent_dim, input_dim, n_units
    ks = jax.random.split(key, 6)

    def two_layer(k1, k2, d_out2):
        w1, b1 = _init_linear(k1, 2 * L + D, U)
        w2, b2 = _init_linear(k2, U, d_out2)
        return dict(w1=w1, b1=b1, w2=w2, b2=b2)

    return dict(update=two_layer(ks[0], ks[1], L),
                reset=two_layer(ks[2], ks[3], L),
                new_state=two_layer(ks[4], ks[5], 2 * L))


def init_transform_z0_params(key, latent_dim, z0_dim, n_units=100):
    k1, k2 = jax.random.split(key)
    w1, b1 = _init_linear(k1, 2 * latent_dim, n_units)
    w2, b2 = _init_linear(k2, n_units, 2 * z0_dim)
    return dict(w1=w1, b1=b1, w2=w2, b2=b2)


# ---------------------------------------------------------------------------
# Weight packing: torch-layout tensors -> lane/sublane-padded kernel arrays
# ---------------------------------------------------------------------------
_F = 128       # lane width of activations / outputs
_UP = 128      # n_units padded to one full lane group


def _pad2(w, rows, cols):
    return jnp.pad(w, ((0, rows - w.shape[0]), (0, cols - w.shape[1])))


def pack_gru_params(raw, latent_dim, input_dim, n_units, matmul_dtype=jnp.bfloat16):
    L, D, U = latent_dim, input_dim, n_units
    F, Up = _F, _UP
    assert 2 * L + D <= F and 2 * L <= F and U <= Up

    up, rs, nsn = raw["update"], raw["reset"], raw["new_state"]

    # First layer, update|reset fused; K padded (2L+D -> F), N padded (U -> Up).
    w1_ur = jnp.concatenate([_pad2(up["w1"].T, F, Up), _pad2(rs["w1"].T, F, Up)], axis=1)
    b1_ur = jnp.concatenate([jnp.pad(up["b1"], (0, Up - U)),
                             jnp.pad(rs["b1"], (0, Up - U))])[None, :]      # (1, 2Up)

    # Second layer gates: block-diagonal (2Up, 2F).
    #   output lanes [0, F)  <- h_r : [r | r | 0-cols] + bias (+30 on x/pad lanes -> ~1)
    #   output lanes [F, 2F) <- h_u : [u | u | 0-cols]
    w2r = _pad2(rs["w2"].T, Up, L)
    w2u = _pad2(up["w2"].T, Up, L)
    zpad = jnp.zeros((Up, F - 2 * L), jnp.float32)
    zF = jnp.zeros((Up, F), jnp.float32)
    r_cols = jnp.concatenate([w2r, w2r, zpad], axis=1)                       # (Up, F)
    u_cols = jnp.concatenate([w2u, w2u, zpad], axis=1)                       # (Up, F)
    w2_g = jnp.concatenate(
        [jnp.concatenate([zF, u_cols], axis=1),       # rows [0, Up)  = h_u
         jnp.concatenate([r_cols, zF], axis=1)],      # rows [Up,2Up) = h_r
        axis=0)                                                              # (2Up, 2F)
    b_r = jnp.concatenate([rs["b2"], rs["b2"], jnp.full((F - 2 * L,), 30.0, jnp.float32)])
    b_u = jnp.concatenate([up["b2"], up["b2"], jnp.zeros((F - 2 * L,), jnp.float32)])
    b2_g = jnp.concatenate([b_r, b_u])[None, :]                              # (1, 2F)

    # new_state net.
    w1n = _pad2(nsn["w1"].T, F, Up)
    b1n = jnp.pad(nsn["b1"], (0, Up - U))[None, :]
    w2n = _pad2(nsn["w2"].T, Up, F)
    b2n = jnp.pad(nsn["b2"], (0, F - 2 * L))[None, :]

    cast = lambda a: a.astype(matmul_dtype)
    return dict(w1_ur=cast(w1_ur), b1_ur=b1_ur.astype(jnp.float32),
                w2_g=cast(w2_g), b2_g=b2_g.astype(jnp.float32),
                w1n=cast(w1n), b1n=b1n.astype(jnp.float32),
                w2n=cast(w2n), b2n=b2n.astype(jnp.float32),
                latent_dim=L, input_dim=D)


def pack_transform_z0_params(raw, latent_dim, matmul_dtype=jnp.bfloat16):
    L = latent_dim
    U = raw["w1"].shape[0]
    out_dim = raw["w2"].shape[0]
    F, Up = _F, _UP
    assert 2 * L <= F and U <= Up and out_dim <= F
    w1 = _pad2(raw["w1"].T, F, Up)            # rows >= 2L are zero
    b1 = jnp.pad(raw["b1"], (0, Up - U))[None, :]
    w2 = _pad2(raw["w2"].T, Up, F)
    b2 = jnp.pad(raw["b2"], (0, F - out_dim))[None, :]
    return dict(w1=w1.astype(matmul_dtype), b1=b1.astype(jnp.float32),
                w2=w2.astype(matmul_dtype), b2=b2.astype(jnp.float32),
                out_dim=out_dim)


# ---------------------------------------------------------------------------
# Wrappers
# ---------------------------------------------------------------------------
def _tile_and_pad(xin, tile_m):
    M = xin.shape[0]
    if tile_m is None:
        tile_m = _pick_tile_m(M)
    tile_m = max(8, _round_up(min(tile_m, _round_up(M, 8)), 8))
    Mp = _round_up(M, tile_m)
    if Mp != M:
        xin = jnp.pad(xin, ((0, Mp - M), (0, 0)))
    return xin, tile_m, Mp


def gru_unit_forward(y_mean, y_std, x, packed, *, tile_m=None):
    """GRU_unit.forward (node='NODE', masked_update=True)."""
    B, N, L = y_mean.shape
    D = x.shape[-1]
    assert D % 2 == 0, "input_dim must be even: [data | mask] feature halves"
    assert packed["latent_dim"] == L and packed["input_dim"] == D
    F = packed["w1n"].shape[0]
    M = B * N

    xin = jnp.concatenate(
        [y_mean.reshape(M, L).astype(jnp.float32),
         y_std.reshape(M, L).astype(jnp.float32),
         x.reshape(M, D).astype(jnp.float32),
         jnp.zeros((M, F - 2 * L - D), jnp.float32)], axis=-1)          # (M, F)

    xin, tile_m, Mp = _tile_and_pad(xin, tile_m)

    weights = (packed["w1_ur"], packed["b1_ur"], packed["w2_g"], packed["b2_g"],
               packed["w1n"], packed["b1n"], packed["w2n"], packed["b2n"])

    out = pl.pallas_call(
        functools.partial(gru_unit_kernel, L=L, D=D),
        out_shape=jax.ShapeDtypeStruct((Mp, F), jnp.float32),
        grid=(Mp // tile_m,),
        in_specs=[pl.BlockSpec((tile_m, F), lambda i: (i, 0))]
                 + [_full_spec(w) for w in weights],
        out_specs=pl.BlockSpec((tile_m, F), lambda i: (i, 0)),
        compiler_params=pltpu.CompilerParams(dimension_semantics=("parallel",)),
    )(xin, *weights)

    return (out[:M, :L].reshape(B, N, L), out[:M, L:2 * L].reshape(B, N, L))


def encoder_z0_forward_single_step(data, gru_packed, z0_packed, latent_dim, *, tile_m=None):
    """Encoder_z0_ODE_RNN.forward for the len(time_steps)==1 branch (node='NODE').
    GRU_unit and transform_z0 are fused into one pallas_call."""
    # TODO(synk): the multi-step run_odernn path needs the external z0_diffeq_solver
    # (ODE integrator), which is not part of this module; not implemented here.
    n_traj, n_tp, D = data.shape
    L = latent_dim
    F = gru_packed["w1n"].shape[0]
    out_dim = z0_packed["out_dim"]
    z0_dim = out_dim // 2
    M = n_traj

    # prev_y = prev_std = 0, xi = data[:, 0, :]
    xin = jnp.concatenate(
        [jnp.zeros((M, 2 * L), jnp.float32),
         data[:, 0, :].astype(jnp.float32),
         jnp.zeros((M, F - 2 * L - D), jnp.float32)], axis=-1)          # (M, F)

    xin, tile_m, Mp = _tile_and_pad(xin, tile_m)

    weights = (gru_packed["w1_ur"], gru_packed["b1_ur"], gru_packed["w2_g"],
               gru_packed["b2_g"], gru_packed["w1n"], gru_packed["b1n"],
               gru_packed["w2n"], gru_packed["b2n"],
               z0_packed["w1"], z0_packed["b1"], z0_packed["w2"], z0_packed["b2"])

    out = pl.pallas_call(
        functools.partial(encoder_step_kernel, L=L, D=D, z0_dim=z0_dim),
        out_shape=jax.ShapeDtypeStruct((Mp, F), jnp.float32),
        grid=(Mp // tile_m,),
        in_specs=[pl.BlockSpec((tile_m, F), lambda i: (i, 0))]
                 + [_full_spec(w) for w in weights],
        out_specs=pl.BlockSpec((tile_m, F), lambda i: (i, 0)),
        compiler_params=pltpu.CompilerParams(dimension_semantics=("parallel",)),
    )(xin, *weights)

    means_z0 = out[:M, :z0_dim].reshape(1, n_traj, z0_dim)
    std_z0 = out[:M, z0_dim:2 * z0_dim].reshape(1, n_traj, z0_dim)
    return means_z0, std_z0


# ---------------------------------------------------------------------------
# Pure-JAX references (torch-layout weights)
# ---------------------------------------------------------------------------
def gru_unit_reference(y_mean, y_std, x, raw):
    L = y_mean.shape[-1]
    D = x.shape[-1]

    def mlp(p, inp):
        h = jnp.tanh(inp @ p["w1"].T + p["b1"])
        return h @ p["w2"].T + p["b2"]

    yc = jnp.concatenate([y_mean, y_std, x], -1)
    u = jax.nn.sigmoid(mlp(raw["update"], yc))
    r = jax.nn.sigmoid(mlp(raw["reset"], yc))
    cc = jnp.concatenate([y_mean * r, y_std * r, x], -1)
    ns = mlp(raw["new_state"], cc)
    new_state, new_state_std = ns[..., :L], jnp.abs(ns[..., L:])
    new_y = (1 - u) * new_state + u * y_mean
    new_y_std = (1 - u) * new_state_std + u * y_std
    mask = (jnp.sum(x[..., D // 2:], -1, keepdims=True) > 0).astype(jnp.float32)
    new_y = mask * new_y + (1 - mask) * y_mean
    new_y_std = mask * new_y_std + (1 - mask) * y_std
    return new_y, jnp.abs(new_y_std)


def encoder_z0_reference(data, gru_raw, z0_raw, latent_dim, z0_dim):
    n_traj = data.shape[0]
    prev_y = jnp.zeros((1, n_traj, latent_dim), jnp.float32)
    prev_std = jnp.zeros((1, n_traj, latent_dim), jnp.float32)
    xi = data[:, 0, :][None]
    yi, yi_std = gru_unit_reference(prev_y, prev_std, xi, gru_raw)
    zc = jnp.concatenate([yi, yi_std], -1)
    h = jnp.tanh(zc @ z0_raw["w1"].T + z0_raw["b1"])
    o = h @ z0_raw["w2"].T + z0_raw["b2"]
    return o[..., :z0_dim], jnp.abs(o[..., z0_dim:])


# ---------------------------------------------------------------------------
if __name__ == "__main__":
    latent_dim = 32
    input_dim = 16          # 8 data features + 8 mask features
    n_units = 100
    z0_dim = latent_dim
    n_traj = 600            # deliberately NOT a multiple of the tile size
    n_tp = 8

    key = jax.random.PRNGKey(0)
    kg, kz, k1, k2, k3, k4, k5, k6 = jax.random.split(key, 8)
    gru_raw = init_gru_params(kg, latent_dim, input_dim, n_units)
    z0_raw = init_transform_z0_params(kz, latent_dim, z0_dim, 100)

    # ---- GRU_unit standalone (the per-time-step ODE-RNN update) ----------
    B = 1
    y_mean = jax.random.normal(k1, (B, n_traj, latent_dim), jnp.float32)
    y_std = jnp.abs(jax.random.normal(k2, (B, n_traj, latent_dim), jnp.float32))
    dfeat = jax.random.normal(k3, (B, n_traj, input_dim // 2), jnp.float32)
    dmask = (jax.random.uniform(k4, (B, n_traj, input_dim // 2)) > 0.3).astype(jnp.float32)
    x = jnp.concatenate([dfeat * dmask, dmask], axis=-1)

    ref_y, ref_y_std = gru_unit_reference(y_mean, y_std, x, gru_raw)

    # f32 matmul path: tight correctness check.
    gru_f32 = pack_gru_params(gru_raw, latent_dim, input_dim, n_units, jnp.float32)
    ny, nystd = gru_unit_forward(y_mean, y_std, x, gru_f32)
    jax.block_until_ready((ny, nystd))
    assert jnp.allclose(ny, ref_y, atol=1e-4, rtol=1e-4)
    assert jnp.allclose(nystd, ref_y_std, atol=1e-4, rtol=1e-4)
    assert not bool(jnp.isnan(ny).any()) and not bool(jnp.isnan(nystd).any())

    # bf16 matmul path (recommended on v5e/v6e/v7x): quantization-noise check.
    gru_bf16 = pack_gru_params(gru_raw, latent_dim, input_dim, n_units, jnp.bfloat16)
    ny16, nystd16 = gru_unit_forward(y_mean, y_std, x, gru_bf16)
    jax.block_until_ready((ny16, nystd16))
    diff = jnp.abs(jnp.concatenate([ny16 - ref_y, nystd16 - ref_y_std], axis=-1))
    assert float(jnp.max(diff)) < 0.15
    assert float(jnp.mean(diff)) < 0.02
    assert not bool(jnp.isnan(ny16).any())

    # ---- Encoder_z0_ODE_RNN forward, single-time-step branch (fused) -----
    dfeat2 = jax.random.normal(k5, (n_traj, n_tp, input_dim // 2), jnp.float32)
    dmask2 = (jax.random.uniform(k6, (n_traj, n_tp, input_dim // 2)) > 0.3).astype(jnp.float32)
    data = jnp.concatenate([dfeat2 * dmask2, dmask2], axis=-1)

    z0_f32 = pack_transform_z0_params(z0_raw, latent_dim, jnp.float32)
    m_z0, s_z0 = encoder_z0_forward_single_step(data, gru_f32, z0_f32, latent_dim)
    jax.block_until_ready((m_z0, s_z0))
    ref_m, ref_s = encoder_z0_reference(data, gru_raw, z0_raw, latent_dim, z0_dim)
    assert jnp.allclose(m_z0, ref_m, atol=1e-4, rtol=1e-4)
    assert jnp.allclose(s_z0, ref_s, atol=1e-4, rtol=1e-4)
    assert not bool(jnp.isnan(m_z0).any()) and not bool(jnp.isnan(s_z0).any())

    # bf16 fused encoder path: quantization-noise check.
    z0_bf16 = pack_transform_z0_params(z0_raw, latent_dim, jnp.bfloat16)
    m16, s16 = encoder_z0_forward_single_step(data, gru_bf16, z0_bf16, latent_dim)
    jax.block_until_ready((m16, s16))
    diff_z = jnp.abs(jnp.concatenate([m16 - ref_m, s16 - ref_s], axis=-1))
    assert float(jnp.max(diff_z)) < 0.15
    assert not bool(jnp.isnan(m16).any())

    print("KERNEL_OK")
</pallas_src>

<mosaic_0001>
module attributes {stable_mosaic.version = 11 : i64} {
  func.func @gru_unit_kernel(%arg0: i32, %arg1: memref<304x128xf32, #tpu.memory_space<vmem>>, %arg2: memref<128x256xf32, #tpu.memory_space<vmem>>, %arg3: memref<1x256xf32, #tpu.memory_space<vmem>>, %arg4: memref<256x256xf32, #tpu.memory_space<vmem>>, %arg5: memref<1x256xf32, #tpu.memory_space<vmem>>, %arg6: memref<128x128xf32, #tpu.memory_space<vmem>>, %arg7: memref<1x128xf32, #tpu.memory_space<vmem>>, %arg8: memref<128x128xf32, #tpu.memory_space<vmem>>, %arg9: memref<1x128xf32, #tpu.memory_space<vmem>>, %arg10: memref<304x128xf32, #tpu.memory_space<vmem>>) attributes {dimension_semantics = [#tpu.dimension_semantics<parallel>], iteration_bounds = array<i64: 2>, scalar_prefetch = 0 : i64, scratch_operands = 0 : i64, tpu.core_type = #tpu.core_type<tc>, window_params = [{transform_indices = @transform_0, window_bounds = array<i64: 304, 128>}, {pipeline_mode = #tpu.pipeline_mode<synchronous>, transform_indices = @transform_1, window_bounds = array<i64: 128, 256>}, {pipeline_mode = #tpu.pipeline_mode<synchronous>, transform_indices = @transform_2, window_bounds = array<i64: 1, 256>}, {pipeline_mode = #tpu.pipeline_mode<synchronous>, transform_indices = @transform_3, window_bounds = array<i64: 256, 256>}, {pipeline_mode = #tpu.pipeline_mode<synchronous>, transform_indices = @transform_4, window_bounds = array<i64: 1, 256>}, {pipeline_mode = #tpu.pipeline_mode<synchronous>, transform_indices = @transform_5, window_bounds = array<i64: 128, 128>}, {pipeline_mode = #tpu.pipeline_mode<synchronous>, transform_indices = @transform_6, window_bounds = array<i64: 1, 128>}, {pipeline_mode = #tpu.pipeline_mode<synchronous>, transform_indices = @transform_7, window_bounds = array<i64: 128, 128>}, {pipeline_mode = #tpu.pipeline_mode<synchronous>, transform_indices = @transform_8, window_bounds = array<i64: 1, 128>}, {transform_indices = @transform_9, window_bounds = array<i64: 304, 128>}]} {
    %c0 = arith.constant 0 : index
    %c0_0 = arith.constant 0 : index
    %0 = vector.load %arg1[%c0, %c0_0] : memref<304x128xf32, #tpu.memory_space<vmem>>, vector<304x128xf32>
    %c0_1 = arith.constant 0 : index
    %c0_2 = arith.constant 0 : index
    %1 = vector.load %arg2[%c0_1, %c0_2] : memref<128x256xf32, #tpu.memory_space<vmem>>, vector<128x256xf32>
    %c0_3 = arith.constant 0 : index
    %c0_4 = arith.constant 0 : index
    %2 = vector.load %arg3[%c0_3, %c0_4] : memref<1x256xf32, #tpu.memory_space<vmem>>, vector<1x256xf32>
    %c0_5 = arith.constant 0 : index
    %c0_6 = arith.constant 0 : index
    %3 = vector.load %arg4[%c0_5, %c0_6] : memref<256x256xf32, #tpu.memory_space<vmem>>, vector<256x256xf32>
    %c0_7 = arith.constant 0 : index
    %c0_8 = arith.constant 0 : index
    %4 = vector.load %arg5[%c0_7, %c0_8] : memref<1x256xf32, #tpu.memory_space<vmem>>, vector<1x256xf32>
    %c0_9 = arith.constant 0 : index
    %c0_10 = arith.constant 0 : index
    %5 = vector.load %arg6[%c0_9, %c0_10] : memref<128x128xf32, #tpu.memory_space<vmem>>, vector<128x128xf32>
    %c0_11 = arith.constant 0 : index
    %c0_12 = arith.constant 0 : index
    %6 = vector.load %arg7[%c0_11, %c0_12] : memref<1x128xf32, #tpu.memory_space<vmem>>, vector<1x128xf32>
    %c0_13 = arith.constant 0 : index
    %c0_14 = arith.constant 0 : index
    %7 = vector.load %arg8[%c0_13, %c0_14] : memref<128x128xf32, #tpu.memory_space<vmem>>, vector<128x128xf32>
    %c0_15 = arith.constant 0 : index
    %c0_16 = arith.constant 0 : index
    %8 = vector.load %arg9[%c0_15, %c0_16] : memref<1x128xf32, #tpu.memory_space<vmem>>, vector<1x128xf32>
    %cst = arith.constant dense<0.000000e+00> : vector<304x256xf32>
    %9 = tpu.matmul %0, %1, %cst {dimension_numbers = #tpu.dot_dimension_numbers<[1], [0], [0], [1], [0, 0, 1, 1], [], []>} : vector<304x128xf32>, vector<128x256xf32>, vector<304x256xf32> -> vector<304x256xf32>
    %10 = vector.broadcast %2 : vector<1x256xf32> to vector<304x256xf32>
    %11 = arith.addf %9, %10 : vector<304x256xf32>
    %12 = math.tanh %11 : vector<304x256xf32>
    %cst_17 = arith.constant dense<0.000000e+00> : vector<304x256xf32>
    %13 = tpu.matmul %12, %3, %cst_17 {dimension_numbers = #tpu.dot_dimension_numbers<[1], [0], [0], [1], [0, 0, 1, 1], [], []>} : vector<304x256xf32>, vector<256x256xf32>, vector<304x256xf32> -> vector<304x256xf32>
    %14 = vector.broadcast %4 : vector<1x256xf32> to vector<304x256xf32>
    %15 = arith.addf %13, %14 : vector<304x256xf32>
    %16 = arith.negf %15 : vector<304x256xf32>
    %17 = math.exp %16 : vector<304x256xf32>
    %cst_18 = arith.constant 1.000000e+00 : f32
    %18 = vector.broadcast %cst_18 : f32 to vector<304x256xf32>
    %19 = arith.addf %18, %17 : vector<304x256xf32>
    %20 = arith.divf %18, %19 : vector<304x256xf32>
    %21 = vector.extract_strided_slice %20 {offsets = [0, 0], sizes = [304, 128], strides = [1, 1]} : vector<304x256xf32> to vector<304x128xf32>
    %22 = vector.extract_strided_slice %20 {offsets = [0, 128], sizes = [304, 128], strides = [1, 1]} : vector<304x256xf32> to vector<304x128xf32>
    %23 = arith.mulf %0, %21 : vector<304x128xf32>
    %cst_19 = arith.constant dense<0.000000e+00> : vector<304x128xf32>
    %24 = tpu.matmul %23, %5, %cst_19 {dimension_numbers = #tpu.dot_dimension_numbers<[1], [0], [0], [1], [0, 0, 1, 1], [], []>} : vector<304x128xf32>, vector<128x128xf32>, vector<304x128xf32> -> vector<304x128xf32>
    %25 = vector.broadcast %6 : vector<1x128xf32> to vector<304x128xf32>
    %26 = arith.addf %24, %25 : vector<304x128xf32>
    %27 = math.tanh %26 : vector<304x128xf32>
    %cst_20 = arith.constant dense<0.000000e+00> : vector<304x128xf32>
    %28 = tpu.matmul %27, %7, %cst_20 {dimension_numbers = #tpu.dot_dimension_numbers<[1], [0], [0], [1], [0, 0, 1, 1], [], []>} : vector<304x128xf32>, vector<128x128xf32>, vector<304x128xf32> -> vector<304x128xf32>
    %29 = vector.broadcast %8 : vector<1x128xf32> to vector<304x128xf32>
    %30 = arith.addf %28, %29 : vector<304x128xf32>
    %31 = tpu.iota {dimensions = array<i32: 1>} : vector<304x128xi32>
    %c32_i32 = arith.constant 32 : i32
    %32 = vector.broadcast %c32_i32 : i32 to vector<304x128xi32>
    %33 = arith.cmpi sge, %31, %32 : vector<304x128xi32>
    %c64_i32 = arith.constant 64 : i32
    %34 = vector.broadcast %c64_i32 : i32 to vector<304x128xi32>
    %35 = arith.cmpi slt, %31, %34 : vector<304x128xi32>
    %36 = arith.andi %33, %35 : vector<304x128xi1>
    %37 = math.absf %30 : vector<304x128xf32>
    %38 = arith.select %36, %37, %30 : vector<304x128xi1>, vector<304x128xf32>
    %cst_21 = arith.constant 1.000000e+00 : f32
    %39 = vector.broadcast %cst_21 : f32 to vector<304x128xf32>
    %40 = arith.subf %39, %22 : vector<304x128xf32>
    %41 = arith.mulf %40, %38 : vector<304x128xf32>
    %42 = arith.mulf %22, %0 : vector<304x128xf32>
    %43 = arith.addf %41, %42 : vector<304x128xf32>
    %c72_i32 = arith.constant 72 : i32
    %44 = vector.broadcast %c72_i32 : i32 to vector<304x128xi32>
    %45 = arith.cmpi sge, %31, %44 : vector<304x128xi32>
    %c80_i32 = arith.constant 80 : i32
    %46 = vector.broadcast %c80_i32 : i32 to vector<304x128xi32>
    %47 = arith.cmpi slt, %31, %46 : vector<304x128xi32>
    %48 = arith.andi %45, %47 : vector<304x128xi1>
    %cst_22 = arith.constant 0.000000e+00 : f32
    %49 = vector.broadcast %cst_22 : f32 to vector<304x128xf32>
    %50 = arith.select %48, %0, %49 : vector<304x128xi1>, vector<304x128xf32>
    %cst_23 = arith.constant dense<0.000000e+00> : vector<304xf32>
    %51 = vector.multi_reduction <add>, %50, %cst_23 [1] : vector<304x128xf32> to vector<304xf32>
    %52 = vector.shape_cast %51 : vector<304xf32> to vector<304x1xf32>
    %cst_24 = arith.constant 0.000000e+00 : f32
    %53 = vector.broadcast %cst_24 : f32 to vector<304x1xf32>
    %54 = arith.cmpf ogt, %52, %53 : vector<304x1xf32>
    %55 = arith.extui %54 : vector<304x1xi1> to vector<304x1xi32>
    %56 = arith.sitofp %55 : vector<304x1xi32> to vector<304x1xf32>
    %57 = vector.broadcast %56 : vector<304x1xf32> to vector<304x128xf32>
    %58 = arith.mulf %57, %43 : vector<304x128xf32>
    %cst_25 = arith.constant 1.000000e+00 : f32
    %59 = vector.broadcast %cst_25 : f32 to vector<304x1xf32>
    %60 = arith.subf %59, %56 : vector<304x1xf32>
    %61 = vector.broadcast %60 : vector<304x1xf32> to vector<304x128xf32>
    %62 = arith.mulf %61, %0 : vector<304x128xf32>
    %63 = arith.addf %58, %62 : vector<304x128xf32>
    %64 = math.absf %63 : vector<304x128xf32>
    %65 = arith.select %36, %64, %63 : vector<304x128xi1>, vector<304x128xf32>
    %c0_26 = arith.constant 0 : index
    %c0_27 = arith.constant 0 : index
    %66 = vector.load %arg10[%c0_26, %c0_27] : memref<304x128xf32, #tpu.memory_space<vmem>>, vector<304x128xf32>
    tpu.vector_store %arg10[%c0_26, %c0_27], %65 {strides = array<i32>} : memref<304x128xf32, #tpu.memory_space<vmem>>, vector<304x128xf32>,
    return
  }
  func.func @transform_0(%arg0: i32) -> (i32, i32) {
    %c0_i32 = arith.constant 0 : i32
    %c0_i32_0 = arith.constant 0 : i32
    return %arg0, %c0_i32 : i32, i32
  }
  func.func @transform_1(%arg0: i32) -> (i32, i32) {
    %c0_i32 = arith.constant 0 : i32
    %c0_i32_0 = arith.constant 0 : i32
    %c0_i32_1 = arith.constant 0 : i32
    return %c0_i32, %c0_i32_0 : i32, i32
  }
  func.func @transform_2(%arg0: i32) -> (i32, i32) {
    %c0_i32 = arith.constant 0 : i32
    %c0_i32_0 = arith.constant 0 : i32
    %c0_i32_1 = arith.constant 0 : i32
    return %c0_i32, %c0_i32_0 : i32, i32
  }
  func.func @transform_3(%arg0: i32) -> (i32, i32) {
    %c0_i32 = arith.constant 0 : i32
    %c0_i32_0 = arith.constant 0 : i32
    %c0_i32_1 = arith.constant 0 : i32
    return %c0_i32, %c0_i32_0 : i32, i32
  }
  func.func @transform_4(%arg0: i32) -> (i32, i32) {
    %c0_i32 = arith.constant 0 : i32
    %c0_i32_0 = arith.constant 0 : i32
    %c0_i32_1 = arith.constant 0 : i32
    return %c0_i32, %c0_i32_0 : i32, i32
  }
  func.func @transform_5(%arg0: i32) -> (i32, i32) {
    %c0_i32 = arith.constant 0 : i32
    %c0_i32_0 = arith.constant 0 : i32
    %c0_i32_1 = arith.constant 0 : i32
    return %c0_i32, %c0_i32_0 : i32, i32
  }
  func.func @transform_6(%arg0: i32) -> (i32, i32) {
    %c0_i32 = arith.constant 0 : i32
    %c0_i32_0 = arith.constant 0 : i32
    %c0_i32_1 = arith.constant 0 : i32
    return %c0_i32, %c0_i32_0 : i32, i32
  }
  func.func @transform_7(%arg0: i32) -> (i32, i32) {
    %c0_i32 = arith.constant 0 : i32
    %c0_i32_0 = arith.constant 0 : i32
    %c0_i32_1 = arith.constant 0 : i32
    return %c0_i32, %c0_i32_0 : i32, i32
  }
  func.func @transform_8(%arg0: i32) -> (i32, i32) {
    %c0_i32 = arith.constant 0 : i32
    %c0_i32_0 = arith.constant 0 : i32
    %c0_i32_1 = arith.constant 0 : i32
    return %c0_i32, %c0_i32_0 : i32, i32
  }
  func.func @transform_9(%arg0: i32) -> (i32, i32) {
    %c0_i32 = arith.constant 0 : i32
    %c0_i32_0 = arith.constant 0 : i32
    return %arg0, %c0_i32 : i32, i32
  }
}

</mosaic_0001>

<llo_original>
// kernel: tpu_custom_call.1
$region0: #{tpu_custom_call.1}
  #allocation0 [shape = 'u32[]', space=smem, size = 0x4, offset = 0x4, fixed_abs, tag = 'smem constant byte address 0x4 - core index']
  #allocation1 [shape = 'u32[72,128]{1,0:T(1,128)}', space=vmem, size = 0x9000, scoped, tag = 'internal scratch']
  %s0 = inlined_call_operand.hbm [shape: f32[608,128], index: 0, kind: input, shape index: {}]
  %s1 = inlined_call_operand.hbm [shape: f32[128,256], index: 1, kind: input, shape index: {}]
  %s2 = inlined_call_operand.hbm [shape: f32[1,256], index: 2, kind: input, shape index: {}]
  %s3 = inlined_call_operand.hbm [shape: f32[256,256], index: 3, kind: input, shape index: {}]
  %s4 = inlined_call_operand.vmem [shape: f32[1,256], index: 4, kind: input, shape index: {}]
  %s5 = inlined_call_operand.hbm [shape: f32[128,128], index: 5, kind: input, shape index: {}]
  %s6 = inlined_call_operand.vmem [shape: f32[1,128], index: 6, kind: input, shape index: {}]
  %s7 = inlined_call_operand.hbm [shape: f32[128,128], index: 7, kind: input, shape index: {}]
  %s8 = inlined_call_operand.vmem [shape: f32[1,128], index: 8, kind: input, shape index: {}]
  %s9 = inlined_call_operand.hbm [shape: f32[608,128], index: 9, kind: output, shape index: {}]
  %s10 = sld [smem:[#allocation0]]
  $region93: #{tpu_custom_call.1} parent=0
    _
  %s12 = ssub.s32 1, %s10
  %s13 = scalar_select 0, %s12, %s10
  $region1: #{tpu_custom_call.1} parent=0
    #allocation2 [shape = 'u8[311296]{0}', space=vmem, size = 0x4c000, scoped, tag = 'input window, operand 0']
    #allocation3 [shape = 's32[2]{0}', space=sflag, size = 0x8, scoped, tag = 'scoped memory for tpu_custom_call.1']
    #allocation4 [shape = 's32[2]{0}', space=sflag, size = 0x8, scoped, tag = 'scoped memory for tpu_custom_call.1']
    #allocation5 [shape = 'u8[131072]{0}', space=vmem, size = 0x20000, scoped, tag = 'input window, operand 1, single buffered']
    #allocation6 [shape = 's32[1]{0}', space=sflag, size = 0x4, scoped, tag = 'scoped memory for tpu_custom_call.1']
    #allocation7 [shape = 'u8[1024]{0}', space=vmem, size = 0x400, scoped, tag = 'input window, operand 2, single buffered']
    #allocation8 [shape = 'u8[262144]{0}', space=vmem, size = 0x40000, scoped, tag = 'input window, operand 3, single buffered']
    #allocation9 [shape = 's32[1]{0}', space=sflag, size = 0x4, scoped, tag = 'scoped memory for tpu_custom_call.1']
    #allocation10 [shape = 'u8[65536]{0}', space=vmem, size = 0x10000, scoped, tag = 'input window, operand 5, single buffered']
    #allocation11 [shape = 'u8[65536]{0}', space=vmem, size = 0x10000, scoped, tag = 'input window, operand 7, single buffered']
    #allocation12 [shape = 's32[1]{0}', space=sflag, size = 0x4, scoped, tag = 'scoped memory for tpu_custom_call.1']
    #allocation13 [shape = 'u8[311296]{0}', space=vmem, size = 0x4c000, scoped, tag = 'output window, operand 0']
    %14 = vsyncpa [#allocation3], 0
    %s15 = scalar_lea.sflag [#allocation3], 1
    %16 = vsyncpa %s15, 0
    %17 = vsyncpa [#allocation6], 0
    %18 = vsyncpa [#allocation9], 0
    %19 = vsyncpa [#allocation12], 0
    %20 = vsyncpa [#allocation4], 0
    %s21 = scalar_lea.sflag [#allocation4], 1
    %22 = vsyncpa %s21, 0
    loop: start=0, step=1, limit=4
    $region2: #{tpu_custom_call.1} parent=1 // loop_pre_header
      _
    $region3: #{tpu_custom_call.1} parent=1 // loop_header
      %s24 = sphi 0, %s28
      %p25 = scmp.ge.s32.totalorder %s24, 4
      %s34 = sphi 0, %s36
      %s37 = sphi 0, %s34
      %s38 = sphi 0, %s37
      %s54 = sphi 0, %s38
      %s58 = sphi 0, %s58
      %s60 = sphi 0, %s58
      %s61 = sphi 0, %s60
      %s75 = sphi 0, %s61
      %s79 = sphi 0, %s79
      %s81 = sphi 0, %s79
      %s82 = sphi 0, %s81
      %s96 = sphi 0, %s82
      %s100 = sphi 0, %s100
      %s102 = sphi 0, %s100
      %s103 = sphi 0, %s102
      %s117 = sphi 0, %s103
      %s121 = sphi 0, %s121
      %s123 = sphi 0, %s121
      %s124 = sphi 0, %s123
      %s138 = sphi 0, %s124
      %s142 = sphi 0, %s142
      %s144 = sphi 0, %s142
      %s145 = sphi 0, %s144
      %s159 = sphi 0, %s145
      %s163 = sphi 0, %s163
      %s165 = sphi 0, %s163
      %s166 = sphi 0, %s165
      %s180 = sphi 0, %s166
      %s184 = sphi 0, %s184
      %s186 = sphi 0, %s184
      %s187 = sphi 0, %s186
      %s201 = sphi 0, %s187
      %s205 = sphi 0, %s205
      %s207 = sphi 0, %s205
      %s208 = sphi 0, %s207
      %s222 = sphi 0, %s208
      %s228 = sphi 0, %s230
      %s231 = sphi 0, %s228
      %s232 = sphi 0, %s231
      %s248 = sphi 0, %s232
    $region4: #{tpu_custom_call.1} parent=1 // loop_header_branch
      %27 = sbr.rel (%p25) target = $region8
    $region5: #{tpu_custom_call.1} parent=1 // loop_body
      %s29 = ssub.s32 %s24, 1
      %s30 = ssub.s32 %s24, 2
      %s31 = sadd.s32 %s24, 1
      %s32 = ssub.s32 %s24, %s31
      %p33 = scmp.eq.s32.totalorder %s32, 0
      %s35 = sadd.s32 %s34, 1
      %s36 = scalar_select %p33, %s34, %s35
      %p39 = pneg %p33
      %p40 = scmp.eq.s32.totalorder %s24, 1
      %p41 = por %p39, %p40
      %p42 = scmp.ne.s32.totalorder %s34, %s37
      %p43 = scmp.eq.s32.totalorder %s24, 0
      %p44 = por %p42, %p43
      %p45 = scmp.ne.s32.totalorder %s34, %s37
      %p46 = scmp.eq.s32.totalorder %s29, 1
      %p47 = por %p45, %p46
      %p48 = scmp.ne.s32.totalorder %s37, %s38
      %p49 = scmp.eq.s32.totalorder %s29, 0
      %p50 = por %p48, %p49
      %p51 = scmp.ne.s32.totalorder %s37, %s38
      %p52 = scmp.eq.s32.totalorder %s30, 1
      %p53 = por %p51, %p52
      %p55 = scmp.ne.s32.totalorder %s38, %s54
      %p56 = scmp.eq.s32.totalorder %s30, 0
      %p57 = por %p55, %p56
      %s59 = sadd.s32 %s58, 1
      %p62 = scmp.eq.s32.totalorder %s24, 1
      %p63 = scmp.ne.s32.totalorder %s58, %s60
      %p64 = scmp.eq.s32.totalorder %s24, 0
      %p65 = por %p63, %p64
      %p66 = scmp.ne.s32.totalorder %s58, %s60
      %p67 = scmp.eq.s32.totalorder %s29, 1
      %p68 = por %p66, %p67
      %p69 = scmp.ne.s32.totalorder %s60, %s61
      %p70 = scmp.eq.s32.totalorder %s29, 0
      %p71 = por %p69, %p70
      %p72 = scmp.ne.s32.totalorder %s60, %s61
      %p73 = scmp.eq.s32.totalorder %s30, 1
      %p74 = por %p72, %p73
      %p76 = scmp.ne.s32.totalorder %s61, %s75
      %p77 = scmp.eq.s32.totalorder %s30, 0
      %p78 = por %p76, %p77
      %s80 = sadd.s32 %s79, 1
      %p83 = scmp.eq.s32.totalorder %s24, 1
      %p84 = scmp.ne.s32.totalorder %s79, %s81
      %p85 = scmp.eq.s32.totalorder %s24, 0
      %p86 = por %p84, %p85
      %p87 = scmp.ne.s32.totalorder %s79, %s81
      %p88 = scmp.eq.s32.totalorder %s29, 1
      %p89 = por %p87, %p88
      %p90 = scmp.ne.s32.totalorder %s81, %s82
      %p91 = scmp.eq.s32.totalorder %s29, 0
      %p92 = por %p90, %p91
      %p93 = scmp.ne.s32.totalorder %s81, %s82
      %p94 = scmp.eq.s32.totalorder %s30, 1
      %p95 = por %p93, %p94
      %p97 = scmp.ne.s32.totalorder %s82, %s96
      %p98 = scmp.eq.s32.totalorder %s30, 0
      %p99 = por %p97, %p98
      %s101 = sadd.s32 %s100, 1
      %p104 = scmp.eq.s32.totalorder %s24, 1
      %p105 = scmp.ne.s32.totalorder %s100, %s102
      %p106 = scmp.eq.s32.totalorder %s24, 0
      %p107 = por %p105, %p106
      %p108 = scmp.ne.s32.totalorder %s100, %s102
      %p109 = scmp.eq.s32.totalorder %s29, 1
      %p110 = por %p108, %p109
      %p111 = scmp.ne.s32.totalorder %s102, %s103
      %p112 = scmp.eq.s32.totalorder %s29, 0
      %p113 = por %p111, %p112
      %p114 = scmp.ne.s32.totalorder %s102, %s103
      %p115 = scmp.eq.s32.totalorder %s30, 1
      %p116 = por %p114, %p115
      %p118 = scmp.ne.s32.totalorder %s103, %s117
      %p119 = scmp.eq.s32.totalorder %s30, 0
      %p120 = por %p118, %p119
      %s122 = sadd.s32 %s121, 1
      %p125 = scmp.eq.s32.totalorder %s24, 1
      %p126 = scmp.ne.s32.totalorder %s121, %s123
      %p127 = scmp.eq.s32.totalorder %s24, 0
      %p128 = por %p126, %p127
      %p129 = scmp.ne.s32.totalorder %s121, %s123
      %p130 = scmp.eq.s32.totalorder %s29, 1
      %p131 = por %p129, %p130
      %p132 = scmp.ne.s32.totalorder %s123, %s124
      %p133 = scmp.eq.s32.totalorder %s29, 0
      %p134 = por %p132, %p133
      %p135 = scmp.ne.s32.totalorder %s123, %s124
      %p136 = scmp.eq.s32.totalorder %s30, 1
      %p137 = por %p135, %p136
      %p139 = scmp.ne.s32.totalorder %s124, %s138
      %p140 = scmp.eq.s32.totalorder %s30, 0
      %p141 = por %p139, %p140
      %s143 = sadd.s32 %s142, 1
      %p146 = scmp.eq.s32.totalorder %s24, 1
      %p147 = scmp.ne.s32.totalorder %s142, %s144
      %p148 = scmp.eq.s32.totalorder %s24, 0
      %p149 = por %p147, %p148
      %p150 = scmp.ne.s32.totalorder %s142, %s144
      %p151 = scmp.eq.s32.totalorder %s29, 1
      %p152 = por %p150, %p151
      %p153 = scmp.ne.s32.totalorder %s144, %s145
      %p154 = scmp.eq.s32.totalorder %s29, 0
      %p155 = por %p153, %p154
      %p156 = scmp.ne.s32.totalorder %s144, %s145
      %p157 = scmp.eq.s32.totalorder %s30, 1
      %p158 = por %p156, %p157
      %p160 = scmp.ne.s32.totalorder %s145, %s159
      %p161 = scmp.eq.s32.totalorder %s30, 0
      %p162 = por %p160, %p161
      %s164 = sadd.s32 %s163, 1
      %p167 = scmp.eq.s32.totalorder %s24, 1
      %p168 = scmp.ne.s32.totalorder %s163, %s165
      %p169 = scmp.eq.s32.totalorder %s24, 0
      %p170 = por %p168, %p169
      %p171 = scmp.ne.s32.totalorder %s163, %s165
      %p172 = scmp.eq.s32.totalorder %s29, 1
      %p173 = por %p171, %p172
      %p174 = scmp.ne.s32.totalorder %s165, %s166
      %p175 = scmp.eq.s32.totalorder %s29, 0
      %p176 = por %p174, %p175
      %p177 = scmp.ne.s32.totalorder %s165, %s166
      %p178 = scmp.eq.s32.totalorder %s30, 1
      %p179 = por %p177, %p178
      %p181 = scmp.ne.s32.totalorder %s166, %s180
      %p182 = scmp.eq.s32.totalorder %s30, 0
      %p183 = por %p181, %p182
      %s185 = sadd.s32 %s184, 1
      %p188 = scmp.eq.s32.totalorder %s24, 1
      %p189 = scmp.ne.s32.totalorder %s184, %s186
      %p190 = scmp.eq.s32.totalorder %s24, 0
      %p191 = por %p189, %p190
      %p192 = scmp.ne.s32.totalorder %s184, %s186
      %p193 = scmp.eq.s32.totalorder %s29, 1
      %p194 = por %p192, %p193
      %p195 = scmp.ne.s32.totalorder %s186, %s187
      %p196 = scmp.eq.s32.totalorder %s29, 0
      %p197 = por %p195, %p196
      %p198 = scmp.ne.s32.totalorder %s186, %s187
      %p199 = scmp.eq.s32.totalorder %s30, 1
      %p200 = por %p198, %p199
      %p202 = scmp.ne.s32.totalorder %s187, %s201
      %p203 = scmp.eq.s32.totalorder %s30, 0
      %p204 = por %p202, %p203
      %s206 = sadd.s32 %s205, 1
      %p209 = scmp.eq.s32.totalorder %s24, 1
      %p210 = scmp.ne.s32.totalorder %s205, %s207
      %p211 = scmp.eq.s32.totalorder %s24, 0
      %p212 = por %p210, %p211
      %p213 = scmp.ne.s32.totalorder %s205, %s207
      %p214 = scmp.eq.s32.totalorder %s29, 1
      %p215 = por %p213, %p214
      %p216 = scmp.ne.s32.totalorder %s207, %s208
      %p217 = scmp.eq.s32.totalorder %s29, 0
      %p218 = por %p216, %p217
      %p219 = scmp.ne.s32.totalorder %s207, %s208
      %p220 = scmp.eq.s32.totalorder %s30, 1
      %p221 = por %p219, %p220
      %p223 = scmp.ne.s32.totalorder %s208, %s222
      %p224 = scmp.eq.s32.totalorder %s30, 0
      %p225 = por %p223, %p224
      %s226 = ssub.s32 %s24, %s31
      %p227 = scmp.eq.s32.totalorder %s226, 0
      %s229 = sadd.s32 %s228, 1
      %s230 = scalar_select %p227, %s228, %s229
      %p233 = pneg %p227
      %p234 = scmp.eq.s32.totalorder %s24, 1
      %p235 = por %p233, %p234
      %p236 = scmp.ne.s32.totalorder %s228, %s231
      %p237 = scmp.eq.s32.totalorder %s24, 0
      %p238 = por %p236, %p237
      %p239 = scmp.ne.s32.totalorder %s228, %s231
      %p240 = scmp.eq.s32.totalorder %s29, 1
      %p241 = por %p239, %p240
      %p242 = scmp.ne.s32.totalorder %s231, %s232
      %p243 = scmp.eq.s32.totalorder %s29, 0
      %p244 = por %p242, %p243
      %p245 = scmp.ne.s32.totalorder %s231, %s232
      %p246 = scmp.eq.s32.totalorder %s30, 1
      %p247 = por %p245, %p246
      %p249 = scmp.ne.s32.totalorder %s232, %s248
      %p250 = scmp.eq.s32.totalorder %s30, 0
      %p251 = por %p249, %p250
      %p252 = scmp.le.s32.totalorder 1, %s24
      %p253 = scmp.lt.s32.totalorder %s24, 3
      %p254 = pnand %p252, %p253
      %p255 = pneg %p254
      // Predicated region
      $region9: #{tpu_custom_call.1} parent=5 // pred_check
        _
      $region10: #{tpu_custom_call.1} parent=5 // pred_check_branch
        %257 = sbr.rel (%p254) target = $region12
      $region11: #{tpu_custom_call.1} parent=5 // pred_region
        %s258 = ssub.s32 %s24, 1
        // Predicated region
        $region13: #{tpu_custom_call.1} parent=11 // pred_check
          %p259 = pneg %p71
        $region14: #{tpu_custom_call.1} parent=11 // pred_check_branch
          %261 = sbr.rel (%p259) target = $region16
        $region15: #{tpu_custom_call.1} parent=11 // pred_region
          %263 = vsyncadd [#allocation6], 0
          %s264 = sshll.u32 %s1, 4
          %s265 = int_to_ptr.hbm [resolvable:$true] %s264
          %s266 = sshll.u32 [#allocation5], 4
          %s267 = int_to_ptr.vmem [resolvable:$true] %s266
          %272 = dma.hbm_to_vmem [thread:$0]  %s265, 4096, %s267, [#allocation6], 256, 256, 16
        $region16: #{tpu_custom_call.1} parent=11 // pred_fallthru
          _
        // Predicated region
        $region17: #{tpu_custom_call.1} parent=11 // pred_check
          %p273 = pneg %p92
        $region18: #{tpu_custom_call.1} parent=11 // pred_check_branch
          %275 = sbr.rel (%p273) target = $region20
        $region19: #{tpu_custom_call.1} parent=11 // pred_region
          %277 = vsyncadd [#allocation6], 0
          %s279 = sshll.u32 %s2, 4
          %s280 = int_to_ptr.hbm [resolvable:$true] %s279
          %s281 = sshll.u32 [#allocation7], 4
          %s282 = int_to_ptr.vmem [resolvable:$true] %s281
          %284 = dma.hbm_to_vmem [thread:$0]  %s280, 32, %s282, [#allocation6]
        $region20: #{tpu_custom_call.1} parent=11 // pred_fallthru
          _
        // Predicated region
        $region21: #{tpu_custom_call.1} parent=11 // pred_check
          %p285 = pneg %p113
        $region22: #{tpu_custom_call.1} parent=11 // pred_check_branch
          %287 = sbr.rel (%p285) target = $region24
        $region23: #{tpu_custom_call.1} parent=11 // pred_region
          %289 = vsyncadd [#allocation9], 0
          %s290 = sshll.u32 %s3, 4
          %s291 = int_to_ptr.hbm [resolvable:$true] %s290
          %s292 = sshll.u32 [#allocation8], 4
          %s293 = int_to_ptr.vmem [resolvable:$true] %s292
          %298 = dma.hbm_to_vmem [thread:$0]  %s291, 8192, %s293, [#allocation9], 256, 256, 16
        $region24: #{tpu_custom_call.1} parent=11 // pred_fallthru
          _
        // Predicated region
        $region25: #{tpu_custom_call.1} parent=11 // pred_check
          %p299 = pneg %p134
        $region26: #{tpu_custom_call.1} parent=11 // pred_check_branch
          %301 = sbr.rel (%p299) target = $region28
        $region27: #{tpu_custom_call.1} parent=11 // pred_region
          _
        $region28: #{tpu_custom_call.1} parent=11 // pred_fallthru
          _
        // Predicated region
        $region29: #{tpu_custom_call.1} parent=11 // pred_check
          %p302 = pneg %p155
        $region30: #{tpu_custom_call.1} parent=11 // pred_check_branch
          %304 = sbr.rel (%p302) target = $region32
        $region31: #{tpu_custom_call.1} parent=11 // pred_region
          %306 = vsyncadd [#allocation9], 0
          %s307 = sshll.u32 %s5, 4
          %s308 = int_to_ptr.hbm [resolvable:$true] %s307
          %s309 = sshll.u32 [#allocation10], 4
          %s310 = int_to_ptr.vmem [resolvable:$true] %s309
          %315 = dma.hbm_to_vmem [thread:$0]  %s308, 2048, %s310, [#allocation9], 128, 128, 8
        $region32: #{tpu_custom_call.1} parent=11 // pred_fallthru
          _
        // Predicated region
        $region33: #{tpu_custom_call.1} parent=11 // pred_check
          %p316 = pneg %p176
        $region34: #{tpu_custom_call.1} parent=11 // pred_check_branch
          %318 = sbr.rel (%p316) target = $region36
        $region35: #{tpu_custom_call.1} parent=11 // pred_region
          _
        $region36: #{tpu_custom_call.1} parent=11 // pred_fallthru
          _
        // Predicated region
        $region37: #{tpu_custom_call.1} parent=11 // pred_check
          %p319 = pneg %p197
        $region38: #{tpu_custom_call.1} parent=11 // pred_check_branch
          %321 = sbr.rel (%p319) target = $region40
        $region39: #{tpu_custom_call.1} parent=11 // pred_region
          %323 = vsyncadd [#allocation12], 0
          %s324 = sshll.u32 %s7, 4
          %s325 = int_to_ptr.hbm [resolvable:$true] %s324
          %s326 = sshll.u32 [#allocation11], 4
          %s327 = int_to_ptr.vmem [resolvable:$true] %s326
          %332 = dma.hbm_to_vmem [thread:$0]  %s325, 2048, %s327, [#allocation12], 128, 128, 8
        $region40: #{tpu_custom_call.1} parent=11 // pred_fallthru
          _
        // Predicated region
        $region41: #{tpu_custom_call.1} parent=11 // pred_check
          %p333 = pneg %p218
        $region42: #{tpu_custom_call.1} parent=11 // pred_check_branch
          %335 = sbr.rel (%p333) target = $region44
        $region43: #{tpu_custom_call.1} parent=11 // pred_region
          _
        $region44: #{tpu_custom_call.1} parent=11 // pred_fallthru
          _
      $region12: #{tpu_custom_call.1} parent=5 // pred_fallthru
        _
      %p336 = scmp.lt.s32.totalorder %s24, 2
      // Predicated region
      $region45: #{tpu_custom_call.1} parent=5 // pred_check
        %p337 = pneg %p336
      $region46: #{tpu_custom_call.1} parent=5 // pred_check_branch
        %339 = sbr.rel (%p337) target = $region48
      $region47: #{tpu_custom_call.1} parent=5 // pred_region
        // Predicated region
        $region49: #{tpu_custom_call.1} parent=47 // pred_check
          %p340 = pneg %p44
        $region50: #{tpu_custom_call.1} parent=47 // pred_check_branch
          %342 = sbr.rel (%p340) target = $region52
        $region51: #{tpu_custom_call.1} parent=47 // pred_region
          %s343 = sand.u32 %s34, 1
          %s344 = scalar_lea.sflag [#allocation3], %s343
          %s345 = sand.u32 %s34, 1
          %s346 = smul.addr %s345, 304
          %s347 = scalar_lea.vmem [#allocation2], %s346
          %s348 = smul.u32 38, %s24
          %350 = vsyncadd %s344, 0
          %s351 = smul.addr %s348, 8
          %s352 = scalar_lea.hbm %s0, %s351
          %s353 = sshll.u32 %s352, 4
          %s354 = int_to_ptr.hbm [resolvable:$true] %s353
          %s355 = sshll.u32 %s347, 4
          %s356 = int_to_ptr.vmem [resolvable:$true] %s355
          %361 = dma.hbm_to_vmem [thread:$0]  %s354, 4864, %s356, %s344, 128, 128, 8
        $region52: #{tpu_custom_call.1} parent=47 // pred_fallthru
          _
      $region48: #{tpu_custom_call.1} parent=5 // pred_fallthru
        _
      %p362 = scmp.le.s32.totalorder 1, %s24
      %p363 = scmp.lt.s32.totalorder %s24, 3
      %p364 = pnand %p362, %p363
      %p365 = pneg %p364
      // Predicated region
      $region53: #{tpu_custom_call.1} parent=5 // pred_check
        _
      $region54: #{tpu_custom_call.1} parent=5 // pred_check_branch
        %367 = sbr.rel (%p364) target = $region56
      $region55: #{tpu_custom_call.1} parent=5 // pred_region
        %s368 = ssub.s32 %s24, 1
        %s369 = sand.u32 %s37, 1
        %s370 = scalar_lea.sflag [#allocation3], %s369
        %s371 = sand.u32 %s37, 1
        %s372 = smul.addr %s371, 304
        %s373 = scalar_lea.vmem [#allocation2], %s372
        // Predicated region
        $region57: #{tpu_custom_call.1} parent=55 // pred_check
          %p374 = pneg %p50
        $region58: #{tpu_custom_call.1} parent=55 // pred_check_branch
          %376 = sbr.rel (%p374) target = $region60
        $region59: #{tpu_custom_call.1} parent=55 // pred_region
          %378 = dma.done %s370, 4864
        $region60: #{tpu_custom_call.1} parent=55 // pred_fallthru
          _
        // Predicated region
        $region61: #{tpu_custom_call.1} parent=55 // pred_check
          %p379 = pneg %p71
        $region62: #{tpu_custom_call.1} parent=55 // pred_check_branch
          %381 = sbr.rel (%p379) target = $region64
        $region63: #{tpu_custom_call.1} parent=55 // pred_region
          %383 = dma.done [#allocation6], 4096
        $region64: #{tpu_custom_call.1} parent=55 // pred_fallthru
          _
        // Predicated region
        $region65: #{tpu_custom_call.1} parent=55 // pred_check
          %p384 = pneg %p92
        $region66: #{tpu_custom_call.1} parent=55 // pred_check_branch
          %386 = sbr.rel (%p384) target = $region68
        $region67: #{tpu_custom_call.1} parent=55 // pred_region
          %388 = dma.done [#allocation6], 32
        $region68: #{tpu_custom_call.1} parent=55 // pred_fallthru
          _
        // Predicated region
        $region69: #{tpu_custom_call.1} parent=55 // pred_check
          %p389 = pneg %p113
        $region70: #{tpu_custom_call.1} parent=55 // pred_check_branch
          %391 = sbr.rel (%p389) target = $region72
        $region71: #{tpu_custom_call.1} parent=55 // pred_region
          %393 = dma.done [#allocation9], 8192
        $region72: #{tpu_custom_call.1} parent=55 // pred_fallthru
          _
        // Predicated region
        $region73: #{tpu_custom_call.1} parent=55 // pred_check
          %p394 = pneg %p155
        $region74: #{tpu_custom_call.1} parent=55 // pred_check_branch
          %396 = sbr.rel (%p394) target = $region76
        $region75: #{tpu_custom_call.1} parent=55 // pred_region
          %398 = dma.done [#allocation9], 2048
        $region76: #{tpu_custom_call.1} parent=55 // pred_fallthru
          _
        // Predicated region
        $region77: #{tpu_custom_call.1} parent=55 // pred_check
          %p399 = pneg %p197
        $region78: #{tpu_custom_call.1} parent=55 // pred_check_branch
          %401 = sbr.rel (%p399) target = $region80
        $region79: #{tpu_custom_call.1} parent=55 // pred_region
          %403 = dma.done [#allocation12], 2048
        $region80: #{tpu_custom_call.1} parent=55 // pred_fallthru
          _
        %s404 = sand.u32 %s37, 1
        %s405 = scalar_lea.sflag [#allocation3], %s404
        %s406 = sand.u32 %s37, 1
        %s407 = smul.addr %s406, 304
        %s408 = scalar_lea.vmem [#allocation2], %s407
        %p409 = pneg %p50
        %p410 = pneg %p47
        %p411 = pneg %p71
        %p412 = pneg %p68
        %p413 = pneg %p92
        %p414 = pneg %p89
        %p415 = pneg %p113
        %p416 = pneg %p110
        %p417 = pneg %p134
        %p418 = pneg %p131
        %p419 = pneg %p155
        %p420 = pneg %p152
        %p421 = pneg %p176
        %p422 = pneg %p173
        %p423 = pneg %p197
        %p424 = pneg %p194
        %p425 = pneg %p218
        %p426 = pneg %p215
        %p427 = pneg %p244
        %p428 = pneg %p241
        %s429 = sand.u32 %s231, 1
        %s430 = scalar_lea.sflag [#allocation4], %s429
        %s431 = sand.u32 %s231, 1
        %s432 = smul.addr %s431, 304
        %s433 = scalar_lea.vmem [#allocation13], %s432
        %s434 = smul.u32 38, %s29
        %s435 = smul.u32 38, %s29
        %v436 = vld [vmem:[%s373] sm:$0xff]
        %v437 = vld [vmem:[%s373 + $0x8] sm:$0xff]
        %v438 = vld [vmem:[%s373 + $0x10] sm:$0xff]
        %v439 = vld [vmem:[%s373 + $0x18] sm:$0xff]
        %v440 = vld [vmem:[%s373 + $0x20] sm:$0xff]
        %v441 = vld [vmem:[%s373 + $0x28] sm:$0xff]
        %v442 = vld [vmem:[%s373 + $0x30] sm:$0xff]
        %v443 = vld [vmem:[%s373 + $0x38] sm:$0xff]
        %v444 = vld [vmem:[%s373 + $0x40] sm:$0xff]
        %v445 = vld [vmem:[%s373 + $0x48] sm:$0xff]
        %v446 = vld [vmem:[%s373 + $0x50] sm:$0xff]
        %v447 = vld [vmem:[%s373 + $0x58] sm:$0xff]
        %v448 = vld [vmem:[%s373 + $0x60] sm:$0xff]
        %v449 = vld [vmem:[%s373 + $0x68] sm:$0xff]
        %v450 = vld [vmem:[%s373 + $0x70] sm:$0xff]
        %v451 = vld [vmem:[%s373 + $0x78] sm:$0xff]
        %v452 = vld [vmem:[%s373 + $0x80] sm:$0xff]
        %v453 = vld [vmem:[%s373 + $0x88] sm:$0xff]
        %v454 = vld [vmem:[%s373 + $0x90] sm:$0xff]
        %v455 = vld [vmem:[%s373 + $0x98] sm:$0xff]
        %v456 = vld [vmem:[%s373 + $0xa0] sm:$0xff]
        %v457 = vld [vmem:[%s373 + $0xa8] sm:$0xff]
        %v458 = vld [vmem:[%s373 + $0xb0] sm:$0xff]
        %v459 = vld [vmem:[%s373 + $0xb8] sm:$0xff]
        %v460 = vld [vmem:[%s373 + $0xc0] sm:$0xff]
        %v461 = vld [vmem:[%s373 + $0xc8] sm:$0xff]
        %v462 = vld [vmem:[%s373 + $0xd0] sm:$0xff]
        %v463 = vld [vmem:[%s373 + $0xd8] sm:$0xff]
        %v464 = vld [vmem:[%s373 + $0xe0] sm:$0xff]
        %v465 = vld [vmem:[%s373 + $0xe8] sm:$0xff]
        %v466 = vld [vmem:[%s373 + $0xf0] sm:$0xff]
        %v467 = vld [vmem:[%s373 + $0xf8] sm:$0xff]
        %v468 = vld [vmem:[%s373 + $0x100] sm:$0xff]
        %v469 = vld [vmem:[%s373 + $0x108] sm:$0xff]
        %v470 = vld [vmem:[%s373 + $0x110] sm:$0xff]
        %v471 = vld [vmem:[%s373 + $0x118] sm:$0xff]
        %v472 = vld [vmem:[%s373 + $0x120] sm:$0xff]
        %v473 = vld [vmem:[%s373 + $0x128] sm:$0xff]
        %v474 = vld [vmem:[#allocation5] sm:$0xff]
        %v475 = vld [vmem:[#allocation5 + $0x8] sm:$0xff]
        %v476 = vld [vmem:[#allocation5 + $0x10] sm:$0xff]
        %v477 = vld [vmem:[#allocation5 + $0x18] sm:$0xff]
        %v478 = vld [vmem:[#allocation5 + $0x20] sm:$0xff]
        %v479 = vld [vmem:[#allocation5 + $0x28] sm:$0xff]
        %v480 = vld [vmem:[#allocation5 + $0x30] sm:$0xff]
        %v481 = vld [vmem:[#allocation5 + $0x38] sm:$0xff]
        %v482 = vld [vmem:[#allocation5 + $0x40] sm:$0xff]
        %v483 = vld [vmem:[#allocation5 + $0x48] sm:$0xff]
        %v484 = vld [vmem:[#allocation5 + $0x50] sm:$0xff]
        %v485 = vld [vmem:[#allocation5 + $0x58] sm:$0xff]
        %v486 = vld [vmem:[#allocation5 + $0x60] sm:$0xff]
        %v487 = vld [vmem:[#allocation5 + $0x68] sm:$0xff]
        %v488 = vld [vmem:[#allocation5 + $0x70] sm:$0xff]
        %v489 = vld [vmem:[#allocation5 + $0x78] sm:$0xff]
        %v490 = vld [vmem:[#allocation5 + $0x80] sm:$0xff]
        %v491 = vld [vmem:[#allocation5 + $0x88] sm:$0xff]
        %v492 = vld [vmem:[#allocation5 + $0x90] sm:$0xff]
        %v493 = vld [vmem:[#allocation5 + $0x98] sm:$0xff]
        %v494 = vld [vmem:[#allocation5 + $0xa0] sm:$0xff]
        %v495 = vld [vmem:[#allocation5 + $0xa8] sm:$0xff]
        %v496 = vld [vmem:[#allocation5 + $0xb0] sm:$0xff]
        %v497 = vld [vmem:[#allocation5 + $0xb8] sm:$0xff]
        %v498 = vld [vmem:[#allocation5 + $0xc0] sm:$0xff]
        %v499 = vld [vmem:[#allocation5 + $0xc8] sm:$0xff]
        %v500 = vld [vmem:[#allocation5 + $0xd0] sm:$0xff]
        %v501 = vld [vmem:[#allocation5 + $0xd8] sm:$0xff]
        %v502 = vld [vmem:[#allocation5 + $0xe0] sm:$0xff]
        %v503 = vld [vmem:[#allocation5 + $0xe8] sm:$0xff]
        %v504 = vld [vmem:[#allocation5 + $0xf0] sm:$0xff]
        %v505 = vld [vmem:[#allocation5 + $0xf8] sm:$0xff]
        %v506 = vld [vmem:[#allocation7] sm:$0x3]
        %v507 = vld [vmem:[#allocation8] sm:$0xff]
        %v508 = vld [vmem:[#allocation8 + $0x8] sm:$0xff]
        %v509 = vld [vmem:[#allocation8 + $0x10] sm:$0xff]
        %v510 = vld [vmem:[#allocation8 + $0x18] sm:$0xff]
        %v511 = vld [vmem:[#allocation8 + $0x20] sm:$0xff]
        %v512 = vld [vmem:[#allocation8 + $0x28] sm:$0xff]
        %v513 = vld [vmem:[#allocation8 + $0x30] sm:$0xff]
        %v514 = vld [vmem:[#allocation8 + $0x38] sm:$0xff]
        %v515 = vld [vmem:[#allocation8 + $0x40] sm:$0xff]
        %v516 = vld [vmem:[#allocation8 + $0x48] sm:$0xff]
        %v517 = vld [vmem:[#allocation8 + $0x50] sm:$0xff]
        %v518 = vld [vmem:[#allocation8 + $0x58] sm:$0xff]
        %v519 = vld [vmem:[#allocation8 + $0x60] sm:$0xff]
        %v520 = vld [vmem:[#allocation8 + $0x68] sm:$0xff]
        %v521 = vld [vmem:[#allocation8 + $0x70] sm:$0xff]
        %v522 = vld [vmem:[#allocation8 + $0x78] sm:$0xff]
        %v523 = vld [vmem:[#allocation8 + $0x80] sm:$0xff]
        %v524 = vld [vmem:[#allocation8 + $0x88] sm:$0xff]
        %v525 = vld [vmem:[#allocation8 + $0x90] sm:$0xff]
        %v526 = vld [vmem:[#allocation8 + $0x98] sm:$0xff]
        %v527 = vld [vmem:[#allocation8 + $0xa0] sm:$0xff]
        %v528 = vld [vmem:[#allocation8 + $0xa8] sm:$0xff]
        %v529 = vld [vmem:[#allocation8 + $0xb0] sm:$0xff]
        %v530 = vld [vmem:[#allocation8 + $0xb8] sm:$0xff]
        %v531 = vld [vmem:[#allocation8 + $0xc0] sm:$0xff]
        %v532 = vld [vmem:[#allocation8 + $0xc8] sm:$0xff]
        %v533 = vld [vmem:[#allocation8 + $0xd0] sm:$0xff]
        %v534 = vld [vmem:[#allocation8 + $0xd8] sm:$0xff]
        %v535 = vld [vmem:[#allocation8 + $0xe0] sm:$0xff]
        %v536 = vld [vmem:[#allocation8 + $0xe8] sm:$0xff]
        %v537 = vld [vmem:[#allocation8 + $0xf0] sm:$0xff]
        %v538 = vld [vmem:[#allocation8 + $0xf8] sm:$0xff]
        %v539 = vld [vmem:[#allocation8 + $0x100] sm:$0xff]
        %v540 = vld [vmem:[#allocation8 + $0x108] sm:$0xff]
        %v541 = vld [vmem:[#allocation8 + $0x110] sm:$0xff]
        %v542 = vld [vmem:[#allocation8 + $0x118] sm:$0xff]
        %v543 = vld [vmem:[#allocation8 + $0x120] sm:$0xff]
        %v544 = vld [vmem:[#allocation8 + $0x128] sm:$0xff]
        %v545 = vld [vmem:[#allocation8 + $0x130] sm:$0xff]
        %v546 = vld [vmem:[#allocation8 + $0x138] sm:$0xff]
        %v547 = vld [vmem:[#allocation8 + $0x140] sm:$0xff]
        %v548 = vld [vmem:[#allocation8 + $0x148] sm:$0xff]
        %v549 = vld [vmem:[#allocation8 + $0x150] sm:$0xff]
        %v550 = vld [vmem:[#allocation8 + $0x158] sm:$0xff]
        %v551 = vld [vmem:[#allocation8 + $0x160] sm:$0xff]
        %v552 = vld [vmem:[#allocation8 + $0x168] sm:$0xff]
        %v553 = vld [vmem:[#allocation8 + $0x170] sm:$0xff]
        %v554 = vld [vmem:[#allocation8 + $0x178] sm:$0xff]
        %v555 = vld [vmem:[#allocation8 + $0x180] sm:$0xff]
        %v556 = vld [vmem:[#allocation8 + $0x188] sm:$0xff]
        %v557 = vld [vmem:[#allocation8 + $0x190] sm:$0xff]
        %v558 = vld [vmem:[#allocation8 + $0x198] sm:$0xff]
        %v559 = vld [vmem:[#allocation8 + $0x1a0] sm:$0xff]
        %v560 = vld [vmem:[#allocation8 + $0x1a8] sm:$0xff]
        %v561 = vld [vmem:[#allocation8 + $0x1b0] sm:$0xff]
        %v562 = vld [vmem:[#allocation8 + $0x1b8] sm:$0xff]
        %v563 = vld [vmem:[#allocation8 + $0x1c0] sm:$0xff]
        %v564 = vld [vmem:[#allocation8 + $0x1c8] sm:$0xff]
        %v565 = vld [vmem:[#allocation8 + $0x1d0] sm:$0xff]
        %v566 = vld [vmem:[#allocation8 + $0x1d8] sm:$0xff]
        %v567 = vld [vmem:[#allocation8 + $0x1e0] sm:$0xff]
        %v568 = vld [vmem:[#allocation8 + $0x1e8] sm:$0xff]
        %v569 = vld [vmem:[#allocation8 + $0x1f0] sm:$0xff]
        %v570 = vld [vmem:[#allocation8 + $0x1f8] sm:$0xff]
        %v571 = vld [vmem:[%s4] sm:$0x3]
        %v572 = vld [vmem:[#allocation10] sm:$0xff]
        %v573 = vld [vmem:[#allocation10 + $0x8] sm:$0xff]
        %v574 = vld [vmem:[#allocation10 + $0x10] sm:$0xff]
        %v575 = vld [vmem:[#allocation10 + $0x18] sm:$0xff]
        %v576 = vld [vmem:[#allocation10 + $0x20] sm:$0xff]
        %v577 = vld [vmem:[#allocation10 + $0x28] sm:$0xff]
        %v578 = vld [vmem:[#allocation10 + $0x30] sm:$0xff]
        %v579 = vld [vmem:[#allocation10 + $0x38] sm:$0xff]
        %v580 = vld [vmem:[#allocation10 + $0x40] sm:$0xff]
        %v581 = vld [vmem:[#allocation10 + $0x48] sm:$0xff]
        %v582 = vld [vmem:[#allocation10 + $0x50] sm:$0xff]
        %v583 = vld [vmem:[#allocation10 + $0x58] sm:$0xff]
        %v584 = vld [vmem:[#allocation10 + $0x60] sm:$0xff]
        %v585 = vld [vmem:[#allocation10 + $0x68] sm:$0xff]
        %v586 = vld [vmem:[#allocation10 + $0x70] sm:$0xff]
        %v587 = vld [vmem:[#allocation10 + $0x78] sm:$0xff]
        %v588 = vld [vmem:[%s6] sm:$0x1]
        %v589 = vld [vmem:[#allocation11] sm:$0xff]
        %v590 = vld [vmem:[#allocation11 + $0x8] sm:$0xff]
        %v591 = vld [vmem:[#allocation11 + $0x10] sm:$0xff]
        %v592 = vld [vmem:[#allocation11 + $0x18] sm:$0xff]
        %v593 = vld [vmem:[#allocation11 + $0x20] sm:$0xff]
        %v594 = vld [vmem:[#allocation11 + $0x28] sm:$0xff]
        %v595 = vld [vmem:[#allocation11 + $0x30] sm:$0xff]
        %v596 = vld [vmem:[#allocation11 + $0x38] sm:$0xff]
        %v597 = vld [vmem:[#allocation11 + $0x40] sm:$0xff]
        %v598 = vld [vmem:[#allocation11 + $0x48] sm:$0xff]
        %v599 = vld [vmem:[#allocation11 + $0x50] sm:$0xff]
        %v600 = vld [vmem:[#allocation11 + $0x58] sm:$0xff]
        %v601 = vld [vmem:[#allocation11 + $0x60] sm:$0xff]
        %v602 = vld [vmem:[#allocation11 + $0x68] sm:$0xff]
        %v603 = vld [vmem:[#allocation11 + $0x70] sm:$0xff]
        %v604 = vld [vmem:[#allocation11 + $0x78] sm:$0xff]
        %v605 = vld [vmem:[%s8] sm:$0x1]
        %v607 = vperm.slane %v506, 0
        %v608 = vperm.slane %v506, 1
        %611 = vmatpush.msra.mxu0 %v504
        %612 = vmatpush.msra.mxu0 %v502
        %613 = vmatpush.msra.mxu0 %v500
        %614 = vmatpush.msra.mxu0 %v498
        %615 = vmatpush.msra.mxu0 %v496
        %616 = vmatpush.msra.mxu0 %v494
        %617 = vmatpush.msra.mxu0 %v492
        %618 = vmatpush.msra.mxu0 %v490
        %619 = vmatpush.msra.mxu0 %v488
        %620 = vmatpush.msra.mxu0 %v486
        %621 = vmatpush.msra.mxu0 %v484
        %622 = vmatpush.msra.mxu0 %v482
        %623 = vmatpush.msra.mxu0 %v480
        %624 = vmatpush.msra.mxu0 %v478
        %625 = vmatpush.msra.mxu0 %v476
        %626 = vmatpush.msra.mxu0 %v474
        %627 = vmatmul.f32.gmra.mxu0 %v436
        %v628 = vpop.f32.mrf.mxu0
        %v629 = vadd.f32 %v607, %v628
        %630 = vmatmul.f32.gmra.mxu0 %v437
        %v631 = vpop.f32.mrf.mxu0
        %v632 = vadd.f32 %v607, %v631
        %633 = vmatmul.f32.gmra.mxu0 %v438
        %v634 = vpop.f32.mrf.mxu0
        %v635 = vadd.f32 %v607, %v634
        %636 = vmatmul.f32.gmra.mxu0 %v439
        %v637 = vpop.f32.mrf.mxu0
        %v638 = vadd.f32 %v607, %v637
        %639 = vmatmul.f32.gmra.mxu0 %v440
        %v640 = vpop.f32.mrf.mxu0
        %v641 = vadd.f32 %v607, %v640
        %642 = vmatmul.f32.gmra.mxu0 %v441
        %v643 = vpop.f32.mrf.mxu0
        %v644 = vadd.f32 %v607, %v643
        %645 = vmatmul.f32.gmra.mxu0 %v442
        %v646 = vpop.f32.mrf.mxu0
        %v647 = vadd.f32 %v607, %v646
        %648 = vmatmul.f32.gmra.mxu0 %v443
        %v649 = vpop.f32.mrf.mxu0
        %v650 = vadd.f32 %v607, %v649
        %651 = vmatmul.f32.gmra.mxu0 %v444
        %v652 = vpop.f32.mrf.mxu0
        %v653 = vadd.f32 %v607, %v652
        %654 = vmatmul.f32.gmra.mxu0 %v445
        %v655 = vpop.f32.mrf.mxu0
        %v656 = vadd.f32 %v607, %v655
        %657 = vmatmul.f32.gmra.mxu0 %v446
        %v658 = vpop.f32.mrf.mxu0
        %v659 = vadd.f32 %v607, %v658
        %660 = vmatmul.f32.gmra.mxu0 %v447
        %v661 = vpop.f32.mrf.mxu0
        %v662 = vadd.f32 %v607, %v661
        %663 = vmatmul.f32.gmra.mxu0 %v448
        %v664 = vpop.f32.mrf.mxu0
        %v665 = vadd.f32 %v607, %v664
        %666 = vmatmul.f32.gmra.mxu0 %v449
        %v667 = vpop.f32.mrf.mxu0
        %v668 = vadd.f32 %v607, %v667
        %669 = vmatmul.f32.gmra.mxu0 %v450
        %v670 = vpop.f32.mrf.mxu0
        %v671 = vadd.f32 %v607, %v670
        %672 = vmatmul.f32.gmra.mxu0 %v451
        %v673 = vpop.f32.mrf.mxu0
        %v674 = vadd.f32 %v607, %v673
        %675 = vmatmul.f32.gmra.mxu0 %v452
        %v676 = vpop.f32.mrf.mxu0
        %v677 = vadd.f32 %v607, %v676
        %678 = vmatmul.f32.gmra.mxu0 %v453
        %v679 = vpop.f32.mrf.mxu0
        %v680 = vadd.f32 %v607, %v679
        %681 = vmatmul.f32.gmra.mxu0 %v454
        %v682 = vpop.f32.mrf.mxu0
        %v683 = vadd.f32 %v607, %v682
        %684 = vmatmul.f32.gmra.mxu0 %v455
        %v685 = vpop.f32.mrf.mxu0
        %v686 = vadd.f32 %v607, %v685
        %687 = vmatmul.f32.gmra.mxu0 %v456
        %v688 = vpop.f32.mrf.mxu0
        %v689 = vadd.f32 %v607, %v688
        %690 = vmatmul.f32.gmra.mxu0 %v457
        %v691 = vpop.f32.mrf.mxu0
        %v692 = vadd.f32 %v607, %v691
        %693 = vmatmul.f32.gmra.mxu0 %v458
        %v694 = vpop.f32.mrf.mxu0
        %v695 = vadd.f32 %v607, %v694
        %696 = vmatmul.f32.gmra.mxu0 %v459
        %v697 = vpop.f32.mrf.mxu0
        %v698 = vadd.f32 %v607, %v697
        %699 = vmatmul.f32.gmra.mxu0 %v460
        %v700 = vpop.f32.mrf.mxu0
        %v701 = vadd.f32 %v607, %v700
        %702 = vmatmul.f32.gmra.mxu0 %v461
        %v703 = vpop.f32.mrf.mxu0
        %v704 = vadd.f32 %v607, %v703
        %705 = vmatmul.f32.gmra.mxu0 %v462
        %v706 = vpop.f32.mrf.mxu0
        %v707 = vadd.f32 %v607, %v706
        %708 = vmatmul.f32.gmra.mxu0 %v463
        %v709 = vpop.f32.mrf.mxu0
        %v710 = vadd.f32 %v607, %v709
        %711 = vmatmul.f32.gmra.mxu0 %v464
        %v712 = vpop.f32.mrf.mxu0
        %v713 = vadd.f32 %v607, %v712
        %714 = vmatmul.f32.gmra.mxu0 %v465
        %v715 = vpop.f32.mrf.mxu0
        %v716 = vadd.f32 %v607, %v715
        %717 = vmatmul.f32.gmra.mxu0 %v466
        %v718 = vpop.f32.mrf.mxu0
        %v719 = vadd.f32 %v607, %v718
        %720 = vmatmul.f32.gmra.mxu0 %v467
        %v721 = vpop.f32.mrf.mxu0
        %v722 = vadd.f32 %v607, %v721
        %723 = vmatmul.f32.gmra.mxu0 %v468
        %v724 = vpop.f32.mrf.mxu0
        %v725 = vadd.f32 %v607, %v724
        %726 = vmatmul.f32.gmra.mxu0 %v469
        %v727 = vpop.f32.mrf.mxu0
        %v728 = vadd.f32 %v607, %v727
        %729 = vmatmul.f32.gmra.mxu0 %v470
        %v730 = vpop.f32.mrf.mxu0
        %v731 = vadd.f32 %v607, %v730
        %732 = vmatmul.f32.gmra.mxu0 %v471
        %v733 = vpop.f32.mrf.mxu0
        %v734 = vadd.f32 %v607, %v733
        %735 = vmatmul.f32.gmra.mxu0 %v472
        %v736 = vpop.f32.mrf.mxu0
        %v737 = vadd.f32 %v607, %v736
        %738 = vmatmul.f32.gmra.mxu0 %v473
        %v739 = vpop.f32.mrf.mxu0
        %v740 = vadd.f32 %v607, %v739
        %741 = vdwg.mxu0
        %742 = vmatpush.msra.mxu0 %v505
        %743 = vmatpush.msra.mxu0 %v503
        %744 = vmatpush.msra.mxu0 %v501
        %745 = vmatpush.msra.mxu0 %v499
        %746 = vmatpush.msra.mxu0 %v497
        %747 = vmatpush.msra.mxu0 %v495
        %748 = vmatpush.msra.mxu0 %v493
        %749 = vmatpush.msra.mxu0 %v491
        %750 = vmatpush.msra.mxu0 %v489
        %751 = vmatpush.msra.mxu0 %v487
        %752 = vmatpush.msra.mxu0 %v485
        %753 = vmatpush.msra.mxu0 %v483
        %754 = vmatpush.msra.mxu0 %v481
        %755 = vmatpush.msra.mxu0 %v479
        %756 = vmatpush.msra.mxu0 %v477
        %757 = vmatpush.msra.mxu0 %v475
        %758 = vmatmul.f32.gmra.mxu0 %v436
        %v759 = vpop.f32.mrf.mxu0
        %v760 = vadd.f32 %v608, %v759
        %761 = vmatmul.f32.gmra.mxu0 %v437
        %v762 = vpop.f32.mrf.mxu0
        %v763 = vadd.f32 %v608, %v762
        %764 = vmatmul.f32.gmra.mxu0 %v438
        %v765 = vpop.f32.mrf.mxu0
        %v766 = vadd.f32 %v608, %v765
        %767 = vmatmul.f32.gmra.mxu0 %v439
        %v768 = vpop.f32.mrf.mxu0
        %v769 = vadd.f32 %v608, %v768
        %770 = vmatmul.f32.gmra.mxu0 %v440
        %v771 = vpop.f32.mrf.mxu0
        %v772 = vadd.f32 %v608, %v771
        %773 = vmatmul.f32.gmra.mxu0 %v441
        %v774 = vpop.f32.mrf.mxu0
        %v775 = vadd.f32 %v608, %v774
        %776 = vmatmul.f32.gmra.mxu0 %v442
        %v777 = vpop.f32.mrf.mxu0
        %v778 = vadd.f32 %v608, %v777
        %779 = vmatmul.f32.gmra.mxu0 %v443
        %v780 = vpop.f32.mrf.mxu0
        %v781 = vadd.f32 %v608, %v780
        %782 = vmatmul.f32.gmra.mxu0 %v444
        %v783 = vpop.f32.mrf.mxu0
        %v784 = vadd.f32 %v608, %v783
        %785 = vmatmul.f32.gmra.mxu0 %v445
        %v786 = vpop.f32.mrf.mxu0
        %v787 = vadd.f32 %v608, %v786
        %788 = vmatmul.f32.gmra.mxu0 %v446
        %v789 = vpop.f32.mrf.mxu0
        %v790 = vadd.f32 %v608, %v789
        %791 = vmatmul.f32.gmra.mxu0 %v447
        %v792 = vpop.f32.mrf.mxu0
        %v793 = vadd.f32 %v608, %v792
        %794 = vmatmul.f32.gmra.mxu0 %v448
        %v795 = vpop.f32.mrf.mxu0
        %v796 = vadd.f32 %v608, %v795
        %797 = vmatmul.f32.gmra.mxu0 %v449
        %v798 = vpop.f32.mrf.mxu0
        %v799 = vadd.f32 %v608, %v798
        %800 = vmatmul.f32.gmra.mxu0 %v450
        %v801 = vpop.f32.mrf.mxu0
        %v802 = vadd.f32 %v608, %v801
        %803 = vmatmul.f32.gmra.mxu0 %v451
        %v804 = vpop.f32.mrf.mxu0
        %v805 = vadd.f32 %v608, %v804
        %806 = vmatmul.f32.gmra.mxu0 %v452
        %v807 = vpop.f32.mrf.mxu0
        %v808 = vadd.f32 %v608, %v807
        %809 = vmatmul.f32.gmra.mxu0 %v453
        %v810 = vpop.f32.mrf.mxu0
        %v811 = vadd.f32 %v608, %v810
        %812 = vmatmul.f32.gmra.mxu0 %v454
        %v813 = vpop.f32.mrf.mxu0
        %v814 = vadd.f32 %v608, %v813
        %815 = vmatmul.f32.gmra.mxu0 %v455
        %v816 = vpop.f32.mrf.mxu0
        %v817 = vadd.f32 %v608, %v816
        %818 = vmatmul.f32.gmra.mxu0 %v456
        %v819 = vpop.f32.mrf.mxu0
        %v820 = vadd.f32 %v608, %v819
        %821 = vmatmul.f32.gmra.mxu0 %v457
        %v822 = vpop.f32.mrf.mxu0
        %v823 = vadd.f32 %v608, %v822
        %824 = vmatmul.f32.gmra.mxu0 %v458
        %v825 = vpop.f32.mrf.mxu0
        %v826 = vadd.f32 %v608, %v825
        %827 = vmatmul.f32.gmra.mxu0 %v459
        %v828 = vpop.f32.mrf.mxu0
        %v829 = vadd.f32 %v608, %v828
        %830 = vmatmul.f32.gmra.mxu0 %v460
        %v831 = vpop.f32.mrf.mxu0
        %v832 = vadd.f32 %v608, %v831
        %833 = vmatmul.f32.gmra.mxu0 %v461
        %v834 = vpop.f32.mrf.mxu0
        %v835 = vadd.f32 %v608, %v834
        %836 = vmatmul.f32.gmra.mxu0 %v462
        %v837 = vpop.f32.mrf.mxu0
        %v838 = vadd.f32 %v608, %v837
        %839 = vmatmul.f32.gmra.mxu0 %v463
        %v840 = vpop.f32.mrf.mxu0
        %v841 = vadd.f32 %v608, %v840
        %842 = vmatmul.f32.gmra.mxu0 %v464
        %v843 = vpop.f32.mrf.mxu0
        %v844 = vadd.f32 %v608, %v843
        %845 = vmatmul.f32.gmra.mxu0 %v465
        %v846 = vpop.f32.mrf.mxu0
        %v847 = vadd.f32 %v608, %v846
        %848 = vmatmul.f32.gmra.mxu0 %v466
        %v849 = vpop.f32.mrf.mxu0
        %v850 = vadd.f32 %v608, %v849
        %851 = vmatmul.f32.gmra.mxu0 %v467
        %v852 = vpop.f32.mrf.mxu0
        %v853 = vadd.f32 %v608, %v852
        %854 = vmatmul.f32.gmra.mxu0 %v468
        %v855 = vpop.f32.mrf.mxu0
        %v856 = vadd.f32 %v608, %v855
        %857 = vmatmul.f32.gmra.mxu0 %v469
        %v858 = vpop.f32.mrf.mxu0
        %v859 = vadd.f32 %v608, %v858
        %860 = vmatmul.f32.gmra.mxu0 %v470
        %v861 = vpop.f32.mrf.mxu0
        %v862 = vadd.f32 %v608, %v861
        %863 = vmatmul.f32.gmra.mxu0 %v471
        %v864 = vpop.f32.mrf.mxu0
        %v865 = vadd.f32 %v608, %v864
        %866 = vmatmul.f32.gmra.mxu0 %v472
        %v867 = vpop.f32.mrf.mxu0
        %v868 = vadd.f32 %v608, %v867
        %869 = vmatmul.f32.gmra.mxu0 %v473
        %v870 = vpop.f32.mrf.mxu0
        %v871 = vadd.f32 %v608, %v870
        %872 = vdwg.mxu0
        %v873 = vtanh.pop %v629
        %v874 = vtanh.pop %v760
        %v875 = vtanh.pop %v632
        %v876 = vtanh.pop %v763
        %v877 = vtanh.pop %v635
        %v878 = vtanh.pop %v766
        %v879 = vtanh.pop %v638
        %v880 = vtanh.pop %v769
        %v881 = vtanh.pop %v641
        %v882 = vtanh.pop %v772
        %v883 = vtanh.pop %v644
        %v884 = vtanh.pop %v775
        %v885 = vtanh.pop %v647
        %v886 = vtanh.pop %v778
        %v887 = vtanh.pop %v650
        %v888 = vtanh.pop %v781
        %v889 = vtanh.pop %v653
        %v890 = vtanh.pop %v784
        %v891 = vtanh.pop %v656
        %v892 = vtanh.pop %v787
        %v893 = vtanh.pop %v659
        %v894 = vtanh.pop %v790
        %v895 = vtanh.pop %v662
        %v896 = vtanh.pop %v793
        %v897 = vtanh.pop %v665
        %v898 = vtanh.pop %v796
        %v899 = vtanh.pop %v668
        %v900 = vtanh.pop %v799
        %v901 = vtanh.pop %v671
        %v902 = vtanh.pop %v802
        %v903 = vtanh.pop %v674
        %v904 = vtanh.pop %v805
        %v905 = vtanh.pop %v677
        %v906 = vtanh.pop %v808
        %v907 = vtanh.pop %v680
        %v908 = vtanh.pop %v811
        %v909 = vtanh.pop %v683
        %v910 = vtanh.pop %v814
        %v911 = vtanh.pop %v686
        %v912 = vtanh.pop %v817
        %v913 = vtanh.pop %v689
        %v914 = vtanh.pop %v820
        %v915 = vtanh.pop %v692
        %v916 = vtanh.pop %v823
        %v917 = vtanh.pop %v695
        %v918 = vtanh.pop %v826
        %v919 = vtanh.pop %v698
        %v920 = vtanh.pop %v829
        %v921 = vtanh.pop %v701
        %v922 = vtanh.pop %v832
        %v923 = vtanh.pop %v704
        %v924 = vtanh.pop %v835
        %v925 = vtanh.pop %v707
        %v926 = vtanh.pop %v838
        %v927 = vtanh.pop %v710
        %v928 = vtanh.pop %v841
        %v929 = vtanh.pop %v713
        %v930 = vtanh.pop %v844
        %v931 = vtanh.pop %v716
        %v932 = vtanh.pop %v847
        %v933 = vtanh.pop %v719
        %v934 = vtanh.pop %v850
        %v935 = vtanh.pop %v722
        %v936 = vtanh.pop %v853
        %v937 = vtanh.pop %v725
        %v938 = vtanh.pop %v856
        %v939 = vtanh.pop %v728
        %v940 = vtanh.pop %v859
        %v941 = vtanh.pop %v731
        %v942 = vtanh.pop %v862
        %v943 = vtanh.pop %v734
        %v944 = vtanh.pop %v865
        %v945 = vtanh.pop %v737
        %v946 = vtanh.pop %v868
        %v947 = vtanh.pop %v740
        %v948 = vtanh.pop %v871
        %v950 = vperm.slane %v571, 0
        %v951 = vperm.slane %v571, 1
        %954 = vmatpush.msra.mxu0 %v537
        %955 = vmatpush.msra.mxu0 %v535
        %956 = vmatpush.msra.mxu0 %v533
        %957 = vmatpush.msra.mxu0 %v531
        %958 = vmatpush.msra.mxu0 %v529
        %959 = vmatpush.msra.mxu0 %v527
        %960 = vmatpush.msra.mxu0 %v525
        %961 = vmatpush.msra.mxu0 %v523
        %962 = vmatpush.msra.mxu0 %v521
        %963 = vmatpush.msra.mxu0 %v519
        %964 = vmatpush.msra.mxu0 %v517
        %965 = vmatpush.msra.mxu0 %v515
        %966 = vmatpush.msra.mxu0 %v513
        %967 = vmatpush.msra.mxu0 %v511
        %968 = vmatpush.msra.mxu0 %v509
        %969 = vmatpush.msra.mxu0 %v507
        %970 = vmatmul.f32.gmra.mxu0 %v873
        %v971 = vpop.f32.mrf.mxu0
        %v972 = vadd.f32 %v950, %v971
        %973 = vmatmul.f32.gmra.mxu0 %v875
        %v974 = vpop.f32.mrf.mxu0
        %v975 = vadd.f32 %v950, %v974
        %976 = vmatmul.f32.gmra.mxu0 %v877
        %v977 = vpop.f32.mrf.mxu0
        %v978 = vadd.f32 %v950, %v977
        %979 = vmatmul.f32.gmra.mxu0 %v879
        %v980 = vpop.f32.mrf.mxu0
        %v981 = vadd.f32 %v950, %v980
        %982 = vmatmul.f32.gmra.mxu0 %v881
        %v983 = vpop.f32.mrf.mxu0
        %v984 = vadd.f32 %v950, %v983
        %985 = vmatmul.f32.gmra.mxu0 %v883
        %v986 = vpop.f32.mrf.mxu0
        %v987 = vadd.f32 %v950, %v986
        %988 = vmatmul.f32.gmra.mxu0 %v885
        %v989 = vpop.f32.mrf.mxu0
        %v990 = vadd.f32 %v950, %v989
        %991 = vmatmul.f32.gmra.mxu0 %v887
        %v992 = vpop.f32.mrf.mxu0
        %v993 = vadd.f32 %v950, %v992
        %994 = vmatmul.f32.gmra.mxu0 %v889
        %v995 = vpop.f32.mrf.mxu0
        %v996 = vadd.f32 %v950, %v995
        %997 = vmatmul.f32.gmra.mxu0 %v891
        %v998 = vpop.f32.mrf.mxu0
        %v999 = vadd.f32 %v950, %v998
        %1000 = vmatmul.f32.gmra.mxu0 %v893
        %v1001 = vpop.f32.mrf.mxu0
        %v1002 = vadd.f32 %v950, %v1001
        %1003 = vmatmul.f32.gmra.mxu0 %v895
        %v1004 = vpop.f32.mrf.mxu0
        %v1005 = vadd.f32 %v950, %v1004
        %1006 = vmatmul.f32.gmra.mxu0 %v897
        %v1007 = vpop.f32.mrf.mxu0
        %v1008 = vadd.f32 %v950, %v1007
        %1009 = vmatmul.f32.gmra.mxu0 %v899
        %v1010 = vpop.f32.mrf.mxu0
        %v1011 = vadd.f32 %v950, %v1010
        %1012 = vmatmul.f32.gmra.mxu0 %v901
        %v1013 = vpop.f32.mrf.mxu0
        %v1014 = vadd.f32 %v950, %v1013
        %1015 = vmatmul.f32.gmra.mxu0 %v903
        %v1016 = vpop.f32.mrf.mxu0
        %v1017 = vadd.f32 %v950, %v1016
        %1018 = vmatmul.f32.gmra.mxu0 %v905
        %v1019 = vpop.f32.mrf.mxu0
        %v1020 = vadd.f32 %v950, %v1019
        %1021 = vmatmul.f32.gmra.mxu0 %v907
        %v1022 = vpop.f32.mrf.mxu0
        %v1023 = vadd.f32 %v950, %v1022
        %1024 = vmatmul.f32.gmra.mxu0 %v909
        %v1025 = vpop.f32.mrf.mxu0
        %v1026 = vadd.f32 %v950, %v1025
        %1027 = vmatmul.f32.gmra.mxu0 %v911
        %v1028 = vpop.f32.mrf.mxu0
        %v1029 = vadd.f32 %v950, %v1028
        %1030 = vmatmul.f32.gmra.mxu0 %v913
        %v1031 = vpop.f32.mrf.mxu0
        %v1032 = vadd.f32 %v950, %v1031
        %1033 = vmatmul.f32.gmra.mxu0 %v915
        %v1034 = vpop.f32.mrf.mxu0
        %v1035 = vadd.f32 %v950, %v1034
        %1036 = vmatmul.f32.gmra.mxu0 %v917
        %v1037 = vpop.f32.mrf.mxu0
        %v1038 = vadd.f32 %v950, %v1037
        %1039 = vmatmul.f32.gmra.mxu0 %v919
        %v1040 = vpop.f32.mrf.mxu0
        %v1041 = vadd.f32 %v950, %v1040
        %1042 = vmatmul.f32.gmra.mxu0 %v921
        %v1043 = vpop.f32.mrf.mxu0
        %v1044 = vadd.f32 %v950, %v1043
        %1045 = vmatmul.f32.gmra.mxu0 %v923
        %v1046 = vpop.f32.mrf.mxu0
        %v1047 = vadd.f32 %v950, %v1046
        %1048 = vmatmul.f32.gmra.mxu0 %v925
        %v1049 = vpop.f32.mrf.mxu0
        %v1050 = vadd.f32 %v950, %v1049
        %1051 = vmatmul.f32.gmra.mxu0 %v927
        %v1052 = vpop.f32.mrf.mxu0
        %v1053 = vadd.f32 %v950, %v1052
        %1054 = vmatmul.f32.gmra.mxu0 %v929
        %v1055 = vpop.f32.mrf.mxu0
        %v1056 = vadd.f32 %v950, %v1055
        %1057 = vmatmul.f32.gmra.mxu0 %v931
        %v1058 = vpop.f32.mrf.mxu0
        %v1059 = vadd.f32 %v950, %v1058
        %1060 = vmatmul.f32.gmra.mxu0 %v933
        %v1061 = vpop.f32.mrf.mxu0
        %v1062 = vadd.f32 %v950, %v1061
        %1063 = vmatmul.f32.gmra.mxu0 %v935
        %v1064 = vpop.f32.mrf.mxu0
        %v1065 = vadd.f32 %v950, %v1064
        %1066 = vmatmul.f32.gmra.mxu0 %v937
        %v1067 = vpop.f32.mrf.mxu0
        %v1068 = vadd.f32 %v950, %v1067
        %1069 = vmatmul.f32.gmra.mxu0 %v939
        %v1070 = vpop.f32.mrf.mxu0
        %v1071 = vadd.f32 %v950, %v1070
        %1072 = vmatmul.f32.gmra.mxu0 %v941
        %v1073 = vpop.f32.mrf.mxu0
        %v1074 = vadd.f32 %v950, %v1073
        %1075 = vmatmul.f32.gmra.mxu0 %v943
        %v1076 = vpop.f32.mrf.mxu0
        %v1077 = vadd.f32 %v950, %v1076
        %1078 = vmatmul.f32.gmra.mxu0 %v945
        %v1079 = vpop.f32.mrf.mxu0
        %v1080 = vadd.f32 %v950, %v1079
        %1081 = vmatmul.f32.gmra.mxu0 %v947
        %v1082 = vpop.f32.mrf.mxu0
        %v1083 = vadd.f32 %v950, %v1082
        %1084 = vdwg.mxu0
        %1085 = vmatpush.msra.mxu0 %v569
        %1086 = vmatpush.msra.mxu0 %v567
        %1087 = vmatpush.msra.mxu0 %v565
        %1088 = vmatpush.msra.mxu0 %v563
        %1089 = vmatpush.msra.mxu0 %v561
        %1090 = vmatpush.msra.mxu0 %v559
        %1091 = vmatpush.msra.mxu0 %v557
        %1092 = vmatpush.msra.mxu0 %v555
        %1093 = vmatpush.msra.mxu0 %v553
        %1094 = vmatpush.msra.mxu0 %v551
        %1095 = vmatpush.msra.mxu0 %v549
        %1096 = vmatpush.msra.mxu0 %v547
        %1097 = vmatpush.msra.mxu0 %v545
        %1098 = vmatpush.msra.mxu0 %v543
        %1099 = vmatpush.msra.mxu0 %v541
        %1100 = vmatpush.msra.mxu0 %v539
        %1101 = vmatmul.f32.gmra.mxu0 %v874
        %v1102 = vpop.f32.mrf.mxu0
        %v1103 = vadd.f32 %v972, %v1102
        %1104 = vmatmul.f32.gmra.mxu0 %v876
        %v1105 = vpop.f32.mrf.mxu0
        %v1106 = vadd.f32 %v975, %v1105
        %1107 = vmatmul.f32.gmra.mxu0 %v878
        %v1108 = vpop.f32.mrf.mxu0
        %v1109 = vadd.f32 %v978, %v1108
        %1110 = vmatmul.f32.gmra.mxu0 %v880
        %v1111 = vpop.f32.mrf.mxu0
        %v1112 = vadd.f32 %v981, %v1111
        %1113 = vmatmul.f32.gmra.mxu0 %v882
        %v1114 = vpop.f32.mrf.mxu0
        %v1115 = vadd.f32 %v984, %v1114
        %1116 = vmatmul.f32.gmra.mxu0 %v884
        %v1117 = vpop.f32.mrf.mxu0
        %v1118 = vadd.f32 %v987, %v1117
        %1119 = vmatmul.f32.gmra.mxu0 %v886
        %v1120 = vpop.f32.mrf.mxu0
        %v1121 = vadd.f32 %v990, %v1120
        %1122 = vmatmul.f32.gmra.mxu0 %v888
        %v1123 = vpop.f32.mrf.mxu0
        %v1124 = vadd.f32 %v993, %v1123
        %1125 = vmatmul.f32.gmra.mxu0 %v890
        %v1126 = vpop.f32.mrf.mxu0
        %v1127 = vadd.f32 %v996, %v1126
        %1128 = vmatmul.f32.gmra.mxu0 %v892
        %v1129 = vpop.f32.mrf.mxu0
        %v1130 = vadd.f32 %v999, %v1129
        %1131 = vmatmul.f32.gmra.mxu0 %v894
        %v1132 = vpop.f32.mrf.mxu0
        %v1133 = vadd.f32 %v1002, %v1132
        %1134 = vmatmul.f32.gmra.mxu0 %v896
        %v1135 = vpop.f32.mrf.mxu0
        %v1136 = vadd.f32 %v1005, %v1135
        %1137 = vmatmul.f32.gmra.mxu0 %v898
        %v1138 = vpop.f32.mrf.mxu0
        %v1139 = vadd.f32 %v1008, %v1138
        %1140 = vmatmul.f32.gmra.mxu0 %v900
        %v1141 = vpop.f32.mrf.mxu0
        %v1142 = vadd.f32 %v1011, %v1141
        %1143 = vmatmul.f32.gmra.mxu0 %v902
        %v1144 = vpop.f32.mrf.mxu0
        %v1145 = vadd.f32 %v1014, %v1144
        %1146 = vmatmul.f32.gmra.mxu0 %v904
        %v1147 = vpop.f32.mrf.mxu0
        %v1148 = vadd.f32 %v1017, %v1147
        %1149 = vmatmul.f32.gmra.mxu0 %v906
        %v1150 = vpop.f32.mrf.mxu0
        %v1151 = vadd.f32 %v1020, %v1150
        %1152 = vmatmul.f32.gmra.mxu0 %v908
        %v1153 = vpop.f32.mrf.mxu0
        %v1154 = vadd.f32 %v1023, %v1153
        %1155 = vmatmul.f32.gmra.mxu0 %v910
        %v1156 = vpop.f32.mrf.mxu0
        %v1157 = vadd.f32 %v1026, %v1156
        %1158 = vmatmul.f32.gmra.mxu0 %v912
        %v1159 = vpop.f32.mrf.mxu0
        %v1160 = vadd.f32 %v1029, %v1159
        %1161 = vmatmul.f32.gmra.mxu0 %v914
        %v1162 = vpop.f32.mrf.mxu0
        %v1163 = vadd.f32 %v1032, %v1162
        %1164 = vmatmul.f32.gmra.mxu0 %v916
        %v1165 = vpop.f32.mrf.mxu0
        %v1166 = vadd.f32 %v1035, %v1165
        %1167 = vmatmul.f32.gmra.mxu0 %v918
        %v1168 = vpop.f32.mrf.mxu0
        %v1169 = vadd.f32 %v1038, %v1168
        %1170 = vmatmul.f32.gmra.mxu0 %v920
        %v1171 = vpop.f32.mrf.mxu0
        %v1172 = vadd.f32 %v1041, %v1171
        %1173 = vmatmul.f32.gmra.mxu0 %v922
        %v1174 = vpop.f32.mrf.mxu0
        %v1175 = vadd.f32 %v1044, %v1174
        %1176 = vmatmul.f32.gmra.mxu0 %v924
        %v1177 = vpop.f32.mrf.mxu0
        %v1178 = vadd.f32 %v1047, %v1177
        %1179 = vmatmul.f32.gmra.mxu0 %v926
        %v1180 = vpop.f32.mrf.mxu0
        %v1181 = vadd.f32 %v1050, %v1180
        %1182 = vmatmul.f32.gmra.mxu0 %v928
        %v1183 = vpop.f32.mrf.mxu0
        %v1184 = vadd.f32 %v1053, %v1183
        %1185 = vmatmul.f32.gmra.mxu0 %v930
        %v1186 = vpop.f32.mrf.mxu0
        %v1187 = vadd.f32 %v1056, %v1186
        %1188 = vmatmul.f32.gmra.mxu0 %v932
        %v1189 = vpop.f32.mrf.mxu0
        %v1190 = vadd.f32 %v1059, %v1189
        %1191 = vmatmul.f32.gmra.mxu0 %v934
        %v1192 = vpop.f32.mrf.mxu0
        %v1193 = vadd.f32 %v1062, %v1192
        %1194 = vmatmul.f32.gmra.mxu0 %v936
        %v1195 = vpop.f32.mrf.mxu0
        %v1196 = vadd.f32 %v1065, %v1195
        %1197 = vmatmul.f32.gmra.mxu0 %v938
        %v1198 = vpop.f32.mrf.mxu0
        %v1199 = vadd.f32 %v1068, %v1198
        %1200 = vmatmul.f32.gmra.mxu0 %v940
        %v1201 = vpop.f32.mrf.mxu0
        %v1202 = vadd.f32 %v1071, %v1201
        %1203 = vmatmul.f32.gmra.mxu0 %v942
        %v1204 = vpop.f32.mrf.mxu0
        %v1205 = vadd.f32 %v1074, %v1204
        %1206 = vmatmul.f32.gmra.mxu0 %v944
        %v1207 = vpop.f32.mrf.mxu0
        %v1208 = vadd.f32 %v1077, %v1207
        %1209 = vmatmul.f32.gmra.mxu0 %v946
        %v1210 = vpop.f32.mrf.mxu0
        %v1211 = vadd.f32 %v1080, %v1210
        %1212 = vmatmul.f32.gmra.mxu0 %v948
        %v1213 = vpop.f32.mrf.mxu0
        %v1214 = vadd.f32 %v1083, %v1213
        %1215 = vdwg.mxu0
        %1216 = vmatpush.msra.mxu0 %v538
        %1217 = vmatpush.msra.mxu0 %v536
        %1218 = vmatpush.msra.mxu0 %v534
        %1219 = vmatpush.msra.mxu0 %v532
        %1220 = vmatpush.msra.mxu0 %v530
        %1221 = vmatpush.msra.mxu0 %v528
        %1222 = vmatpush.msra.mxu0 %v526
        %1223 = vmatpush.msra.mxu0 %v524
        %1224 = vmatpush.msra.mxu0 %v522
        %1225 = vmatpush.msra.mxu0 %v520
        %1226 = vmatpush.msra.mxu0 %v518
        %1227 = vmatpush.msra.mxu0 %v516
        %1228 = vmatpush.msra.mxu0 %v514
        %1229 = vmatpush.msra.mxu0 %v512
        %1230 = vmatpush.msra.mxu0 %v510
        %1231 = vmatpush.msra.mxu0 %v508
        %1232 = vmatmul.f32.gmra.mxu0 %v873
        %v1233 = vpop.f32.mrf.mxu0
        %v1234 = vadd.f32 %v951, %v1233
        %1235 = vmatmul.f32.gmra.mxu0 %v875
        %v1236 = vpop.f32.mrf.mxu0
        %v1237 = vadd.f32 %v951, %v1236
        %1238 = vmatmul.f32.gmra.mxu0 %v877
        %v1239 = vpop.f32.mrf.mxu0
        %v1240 = vadd.f32 %v951, %v1239
        %1241 = vmatmul.f32.gmra.mxu0 %v879
        %v1242 = vpop.f32.mrf.mxu0
        %v1243 = vadd.f32 %v951, %v1242
        %1244 = vmatmul.f32.gmra.mxu0 %v881
        %v1245 = vpop.f32.mrf.mxu0
        %v1246 = vadd.f32 %v951, %v1245
        %1247 = vmatmul.f32.gmra.mxu0 %v883
        %v1248 = vpop.f32.mrf.mxu0
        %v1249 = vadd.f32 %v951, %v1248
        %1250 = vmatmul.f32.gmra.mxu0 %v885
        %v1251 = vpop.f32.mrf.mxu0
        %v1252 = vadd.f32 %v951, %v1251
        %1253 = vmatmul.f32.gmra.mxu0 %v887
        %v1254 = vpop.f32.mrf.mxu0
        %v1255 = vadd.f32 %v951, %v1254
        %1256 = vmatmul.f32.gmra.mxu0 %v889
        %v1257 = vpop.f32.mrf.mxu0
        %v1258 = vadd.f32 %v951, %v1257
        %1259 = vmatmul.f32.gmra.mxu0 %v891
        %v1260 = vpop.f32.mrf.mxu0
        %v1261 = vadd.f32 %v951, %v1260
        %1262 = vmatmul.f32.gmra.mxu0 %v893
        %v1263 = vpop.f32.mrf.mxu0
        %v1264 = vadd.f32 %v951, %v1263
        %1265 = vmatmul.f32.gmra.mxu0 %v895
        %v1266 = vpop.f32.mrf.mxu0
        %v1267 = vadd.f32 %v951, %v1266
        %1268 = vmatmul.f32.gmra.mxu0 %v897
        %v1269 = vpop.f32.mrf.mxu0
        %v1270 = vadd.f32 %v951, %v1269
        %1271 = vmatmul.f32.gmra.mxu0 %v899
        %v1272 = vpop.f32.mrf.mxu0
        %v1273 = vadd.f32 %v951, %v1272
        %1274 = vmatmul.f32.gmra.mxu0 %v901
        %v1275 = vpop.f32.mrf.mxu0
        %v1276 = vadd.f32 %v951, %v1275
        %1277 = vmatmul.f32.gmra.mxu0 %v903
        %v1278 = vpop.f32.mrf.mxu0
        %v1279 = vadd.f32 %v951, %v1278
        %1280 = vmatmul.f32.gmra.mxu0 %v905
        %v1281 = vpop.f32.mrf.mxu0
        %v1282 = vadd.f32 %v951, %v1281
        %1283 = vmatmul.f32.gmra.mxu0 %v907
        %v1284 = vpop.f32.mrf.mxu0
        %v1285 = vadd.f32 %v951, %v1284
        %1286 = vmatmul.f32.gmra.mxu0 %v909
        %v1287 = vpop.f32.mrf.mxu0
        %v1288 = vadd.f32 %v951, %v1287
        %1289 = vmatmul.f32.gmra.mxu0 %v911
        %v1290 = vpop.f32.mrf.mxu0
        %v1291 = vadd.f32 %v951, %v1290
        %1292 = vmatmul.f32.gmra.mxu0 %v913
        %v1293 = vpop.f32.mrf.mxu0
        %v1294 = vadd.f32 %v951, %v1293
        %1295 = vmatmul.f32.gmra.mxu0 %v915
        %v1296 = vpop.f32.mrf.mxu0
        %v1297 = vadd.f32 %v951, %v1296
        %1298 = vmatmul.f32.gmra.mxu0 %v917
        %v1299 = vpop.f32.mrf.mxu0
        %v1300 = vadd.f32 %v951, %v1299
        %1301 = vmatmul.f32.gmra.mxu0 %v919
        %v1302 = vpop.f32.mrf.mxu0
        %v1303 = vadd.f32 %v951, %v1302
        %1304 = vmatmul.f32.gmra.mxu0 %v921
        %v1305 = vpop.f32.mrf.mxu0
        %v1306 = vadd.f32 %v951, %v1305
        %1307 = vmatmul.f32.gmra.mxu0 %v923
        %v1308 = vpop.f32.mrf.mxu0
        %v1309 = vadd.f32 %v951, %v1308
        %1310 = vmatmul.f32.gmra.mxu0 %v925
        %v1311 = vpop.f32.mrf.mxu0
        %v1312 = vadd.f32 %v951, %v1311
        %1313 = vmatmul.f32.gmra.mxu0 %v927
        %v1314 = vpop.f32.mrf.mxu0
        %v1315 = vadd.f32 %v951, %v1314
        %1316 = vmatmul.f32.gmra.mxu0 %v929
        %v1317 = vpop.f32.mrf.mxu0
        %v1318 = vadd.f32 %v951, %v1317
        %1319 = vmatmul.f32.gmra.mxu0 %v931
        %v1320 = vpop.f32.mrf.mxu0
        %v1321 = vadd.f32 %v951, %v1320
        %1322 = vmatmul.f32.gmra.mxu0 %v933
        %v1323 = vpop.f32.mrf.mxu0
        %v1324 = vadd.f32 %v951, %v1323
        %1325 = vmatmul.f32.gmra.mxu0 %v935
        %v1326 = vpop.f32.mrf.mxu0
        %v1327 = vadd.f32 %v951, %v1326
        %1328 = vmatmul.f32.gmra.mxu0 %v937
        %v1329 = vpop.f32.mrf.mxu0
        %v1330 = vadd.f32 %v951, %v1329
        %1331 = vmatmul.f32.gmra.mxu0 %v939
        %v1332 = vpop.f32.mrf.mxu0
        %v1333 = vadd.f32 %v951, %v1332
        %1334 = vmatmul.f32.gmra.mxu0 %v941
        %v1335 = vpop.f32.mrf.mxu0
        %v1336 = vadd.f32 %v951, %v1335
        %1337 = vmatmul.f32.gmra.mxu0 %v943
        %v1338 = vpop.f32.mrf.mxu0
        %v1339 = vadd.f32 %v951, %v1338
        %1340 = vmatmul.f32.gmra.mxu0 %v945
        %v1341 = vpop.f32.mrf.mxu0
        %v1342 = vadd.f32 %v951, %v1341
        %1343 = vmatmul.f32.gmra.mxu0 %v947
        %v1344 = vpop.f32.mrf.mxu0
        %v1345 = vadd.f32 %v951, %v1344
        %1346 = vdwg.mxu0
        %1347 = vmatpush.msra.mxu0 %v570
        %1348 = vmatpush.msra.mxu0 %v568
        %1349 = vmatpush.msra.mxu0 %v566
        %1350 = vmatpush.msra.mxu0 %v564
        %1351 = vmatpush.msra.mxu0 %v562
        %1352 = vmatpush.msra.mxu0 %v560
        %1353 = vmatpush.msra.mxu0 %v558
        %1354 = vmatpush.msra.mxu0 %v556
        %1355 = vmatpush.msra.mxu0 %v554
        %1356 = vmatpush.msra.mxu0 %v552
        %1357 = vmatpush.msra.mxu0 %v550
        %1358 = vmatpush.msra.mxu0 %v548
        %1359 = vmatpush.msra.mxu0 %v546
        %1360 = vmatpush.msra.mxu0 %v544
        %1361 = vmatpush.msra.mxu0 %v542
        %1362 = vmatpush.msra.mxu0 %v540
        %1363 = vmatmul.f32.gmra.mxu0 %v874
        %v1364 = vpop.f32.mrf.mxu0
        %v1365 = vadd.f32 %v1234, %v1364
        %1366 = vmatmul.f32.gmra.mxu0 %v876
        %v1367 = vpop.f32.mrf.mxu0
        %v1368 = vadd.f32 %v1237, %v1367
        %1369 = vmatmul.f32.gmra.mxu0 %v878
        %v1370 = vpop.f32.mrf.mxu0
        %v1371 = vadd.f32 %v1240, %v1370
        %1372 = vmatmul.f32.gmra.mxu0 %v880
        %v1373 = vpop.f32.mrf.mxu0
        %v1374 = vadd.f32 %v1243, %v1373
        %1375 = vmatmul.f32.gmra.mxu0 %v882
        %v1376 = vpop.f32.mrf.mxu0
        %v1377 = vadd.f32 %v1246, %v1376
        %1378 = vmatmul.f32.gmra.mxu0 %v884
        %v1379 = vpop.f32.mrf.mxu0
        %v1380 = vadd.f32 %v1249, %v1379
        %1381 = vmatmul.f32.gmra.mxu0 %v886
        %v1382 = vpop.f32.mrf.mxu0
        %v1383 = vadd.f32 %v1252, %v1382
        %1384 = vmatmul.f32.gmra.mxu0 %v888
        %v1385 = vpop.f32.mrf.mxu0
        %v1386 = vadd.f32 %v1255, %v1385
        %1387 = vmatmul.f32.gmra.mxu0 %v890
        %v1388 = vpop.f32.mrf.mxu0
        %v1389 = vadd.f32 %v1258, %v1388
        %1390 = vmatmul.f32.gmra.mxu0 %v892
        %v1391 = vpop.f32.mrf.mxu0
        %v1392 = vadd.f32 %v1261, %v1391
        %1393 = vmatmul.f32.gmra.mxu0 %v894
        %v1394 = vpop.f32.mrf.mxu0
        %v1395 = vadd.f32 %v1264, %v1394
        %1396 = vmatmul.f32.gmra.mxu0 %v896
        %v1397 = vpop.f32.mrf.mxu0
        %v1398 = vadd.f32 %v1267, %v1397
        %1399 = vmatmul.f32.gmra.mxu0 %v898
        %v1400 = vpop.f32.mrf.mxu0
        %v1401 = vadd.f32 %v1270, %v1400
        %1402 = vmatmul.f32.gmra.mxu0 %v900
        %v1403 = vpop.f32.mrf.mxu0
        %v1404 = vadd.f32 %v1273, %v1403
        %1405 = vmatmul.f32.gmra.mxu0 %v902
        %v1406 = vpop.f32.mrf.mxu0
        %v1407 = vadd.f32 %v1276, %v1406
        %1408 = vmatmul.f32.gmra.mxu0 %v904
        %v1409 = vpop.f32.mrf.mxu0
        %v1410 = vadd.f32 %v1279, %v1409
        %1411 = vmatmul.f32.gmra.mxu0 %v906
        %v1412 = vpop.f32.mrf.mxu0
        %v1413 = vadd.f32 %v1282, %v1412
        %1414 = vmatmul.f32.gmra.mxu0 %v908
        %v1415 = vpop.f32.mrf.mxu0
        %v1416 = vadd.f32 %v1285, %v1415
        %1417 = vmatmul.f32.gmra.mxu0 %v910
        %v1418 = vpop.f32.mrf.mxu0
        %v1419 = vadd.f32 %v1288, %v1418
        %1420 = vmatmul.f32.gmra.mxu0 %v912
        %v1421 = vpop.f32.mrf.mxu0
        %v1422 = vadd.f32 %v1291, %v1421
        %1423 = vmatmul.f32.gmra.mxu0 %v914
        %v1424 = vpop.f32.mrf.mxu0
        %v1425 = vadd.f32 %v1294, %v1424
        %1426 = vmatmul.f32.gmra.mxu0 %v916
        %v1427 = vpop.f32.mrf.mxu0
        %v1428 = vadd.f32 %v1297, %v1427
        %1429 = vmatmul.f32.gmra.mxu0 %v918
        %v1430 = vpop.f32.mrf.mxu0
        %v1431 = vadd.f32 %v1300, %v1430
        %1432 = vmatmul.f32.gmra.mxu0 %v920
        %v1433 = vpop.f32.mrf.mxu0
        %v1434 = vadd.f32 %v1303, %v1433
        %1435 = vmatmul.f32.gmra.mxu0 %v922
        %v1436 = vpop.f32.mrf.mxu0
        %v1437 = vadd.f32 %v1306, %v1436
        %1438 = vmatmul.f32.gmra.mxu0 %v924
        %v1439 = vpop.f32.mrf.mxu0
        %v1440 = vadd.f32 %v1309, %v1439
        %1441 = vmatmul.f32.gmra.mxu0 %v926
        %v1442 = vpop.f32.mrf.mxu0
        %v1443 = vadd.f32 %v1312, %v1442
        %1444 = vmatmul.f32.gmra.mxu0 %v928
        %v1445 = vpop.f32.mrf.mxu0
        %v1446 = vadd.f32 %v1315, %v1445
        %1447 = vmatmul.f32.gmra.mxu0 %v930
        %v1448 = vpop.f32.mrf.mxu0
        %v1449 = vadd.f32 %v1318, %v1448
        %1450 = vmatmul.f32.gmra.mxu0 %v932
        %v1451 = vpop.f32.mrf.mxu0
        %v1452 = vadd.f32 %v1321, %v1451
        %1453 = vmatmul.f32.gmra.mxu0 %v934
        %v1454 = vpop.f32.mrf.mxu0
        %v1455 = vadd.f32 %v1324, %v1454
        %1456 = vmatmul.f32.gmra.mxu0 %v936
        %v1457 = vpop.f32.mrf.mxu0
        %v1458 = vadd.f32 %v1327, %v1457
        %1459 = vmatmul.f32.gmra.mxu0 %v938
        %v1460 = vpop.f32.mrf.mxu0
        %v1461 = vadd.f32 %v1330, %v1460
        %1462 = vmatmul.f32.gmra.mxu0 %v940
        %v1463 = vpop.f32.mrf.mxu0
        %v1464 = vadd.f32 %v1333, %v1463
        %1465 = vmatmul.f32.gmra.mxu0 %v942
        %v1466 = vpop.f32.mrf.mxu0
        %v1467 = vadd.f32 %v1336, %v1466
        %1468 = vmatmul.f32.gmra.mxu0 %v944
        %v1469 = vpop.f32.mrf.mxu0
        %v1470 = vadd.f32 %v1339, %v1469
        %1471 = vmatmul.f32.gmra.mxu0 %v946
        %v1472 = vpop.f32.mrf.mxu0
        %v1473 = vadd.f32 %v1342, %v1472
        %1474 = vmatmul.f32.gmra.mxu0 %v948
        %v1475 = vpop.f32.mrf.mxu0
        %v1476 = vadd.f32 %v1345, %v1475
        %1477 = vdwg.mxu0
        %v1478 = vxor.u32 %v1103, 2147483648
        %v1479 = vxor.u32 %v1365, 2147483648
        %v1480 = vxor.u32 %v1106, 2147483648
        %v1481 = vxor.u32 %v1368, 2147483648
        %v1482 = vxor.u32 %v1109, 2147483648
        %v1483 = vxor.u32 %v1371, 2147483648
        %v1484 = vxor.u32 %v1112, 2147483648
        %v1485 = vxor.u32 %v1374, 2147483648
        %v1486 = vxor.u32 %v1115, 2147483648
        %v1487 = vxor.u32 %v1377, 2147483648
        %v1488 = vxor.u32 %v1118, 2147483648
        %v1489 = vxor.u32 %v1380, 2147483648
        %v1490 = vxor.u32 %v1121, 2147483648
        %v1491 = vxor.u32 %v1383, 2147483648
        %v1492 = vxor.u32 %v1124, 2147483648
        %v1493 = vxor.u32 %v1386, 2147483648
        %v1494 = vxor.u32 %v1127, 2147483648
        %v1495 = vxor.u32 %v1389, 2147483648
        %v1496 = vxor.u32 %v1130, 2147483648
        %v1497 = vxor.u32 %v1392, 2147483648
        %v1498 = vxor.u32 %v1133, 2147483648
        %v1499 = vxor.u32 %v1395, 2147483648
        %v1500 = vxor.u32 %v1136, 2147483648
        %v1501 = vxor.u32 %v1398, 2147483648
        %v1502 = vxor.u32 %v1139, 2147483648
        %v1503 = vxor.u32 %v1401, 2147483648
        %v1504 = vxor.u32 %v1142, 2147483648
        %v1505 = vxor.u32 %v1404, 2147483648
        %v1506 = vxor.u32 %v1145, 2147483648
        %v1507 = vxor.u32 %v1407, 2147483648
        %v1508 = vxor.u32 %v1148, 2147483648
        %v1509 = vxor.u32 %v1410, 2147483648
        %v1510 = vxor.u32 %v1151, 2147483648
        %v1511 = vxor.u32 %v1413, 2147483648
        %v1512 = vxor.u32 %v1154, 2147483648
        %v1513 = vxor.u32 %v1416, 2147483648
        %v1514 = vxor.u32 %v1157, 2147483648
        %v1515 = vxor.u32 %v1419, 2147483648
        %v1516 = vxor.u32 %v1160, 2147483648
        %v1517 = vxor.u32 %v1422, 2147483648
        %v1518 = vxor.u32 %v1163, 2147483648
        %v1519 = vxor.u32 %v1425, 2147483648
        %v1520 = vxor.u32 %v1166, 2147483648
        %v1521 = vxor.u32 %v1428, 2147483648
        %v1522 = vxor.u32 %v1169, 2147483648
        %v1523 = vxor.u32 %v1431, 2147483648
        %v1524 = vxor.u32 %v1172, 2147483648
        %v1525 = vxor.u32 %v1434, 2147483648
        %v1526 = vxor.u32 %v1175, 2147483648
        %v1527 = vxor.u32 %v1437, 2147483648
        %v1528 = vxor.u32 %v1178, 2147483648
        %v1529 = vxor.u32 %v1440, 2147483648
        %v1530 = vxor.u32 %v1181, 2147483648
        %v1531 = vxor.u32 %v1443, 2147483648
        %v1532 = vxor.u32 %v1184, 2147483648
        %v1533 = vxor.u32 %v1446, 2147483648
        %v1534 = vxor.u32 %v1187, 2147483648
        %v1535 = vxor.u32 %v1449, 2147483648
        %v1536 = vxor.u32 %v1190, 2147483648
        %v1537 = vxor.u32 %v1452, 2147483648
        %v1538 = vxor.u32 %v1193, 2147483648
        %v1539 = vxor.u32 %v1455, 2147483648
        %v1540 = vxor.u32 %v1196, 2147483648
        %v1541 = vxor.u32 %v1458, 2147483648
        %v1542 = vxor.u32 %v1199, 2147483648
        %v1543 = vxor.u32 %v1461, 2147483648
        %v1544 = vxor.u32 %v1202, 2147483648
        %v1545 = vxor.u32 %v1464, 2147483648
        %v1546 = vxor.u32 %v1205, 2147483648
        %v1547 = vxor.u32 %v1467, 2147483648
        %v1548 = vxor.u32 %v1208, 2147483648
        %v1549 = vxor.u32 %v1470, 2147483648
        %v1550 = vxor.u32 %v1211, 2147483648
        %v1551 = vxor.u32 %v1473, 2147483648
        %v1552 = vxor.u32 %v1214, 2147483648
        %v1553 = vxor.u32 %v1476, 2147483648
        %v1554 = vmul.f32 %v1478, 1.442695
        %v1555 = vpow.pop %v1554
        %v1556 = vmul.f32 %v1479, 1.442695
        %v1557 = vpow.pop %v1556
        %v1558 = vmul.f32 %v1480, 1.442695
        %v1559 = vpow.pop %v1558
        %v1560 = vmul.f32 %v1481, 1.442695
        %v1561 = vpow.pop %v1560
        %v1562 = vmul.f32 %v1482, 1.442695
        %v1563 = vpow.pop %v1562
        %v1564 = vmul.f32 %v1483, 1.442695
        %v1565 = vpow.pop %v1564
        %v1566 = vmul.f32 %v1484, 1.442695
        %v1567 = vpow.pop %v1566
        %v1568 = vmul.f32 %v1485, 1.442695
        %v1569 = vpow.pop %v1568
        %v1570 = vmul.f32 %v1486, 1.442695
        %v1571 = vpow.pop %v1570
        %v1572 = vmul.f32 %v1487, 1.442695
        %v1573 = vpow.pop %v1572
        %v1574 = vmul.f32 %v1488, 1.442695
        %v1575 = vpow.pop %v1574
        %v1576 = vmul.f32 %v1489, 1.442695
        %v1577 = vpow.pop %v1576
        %v1578 = vmul.f32 %v1490, 1.442695
        %v1579 = vpow.pop %v1578
        %v1580 = vmul.f32 %v1491, 1.442695
        %v1581 = vpow.pop %v1580
        %v1582 = vmul.f32 %v1492, 1.442695
        %v1583 = vpow.pop %v1582
        %v1584 = vmul.f32 %v1493, 1.442695
        %v1585 = vpow.pop %v1584
        %v1586 = vmul.f32 %v1494, 1.442695
        %v1587 = vpow.pop %v1586
        %v1588 = vmul.f32 %v1495, 1.442695
        %v1589 = vpow.pop %v1588
        %v1590 = vmul.f32 %v1496, 1.442695
        %v1591 = vpow.pop %v1590
        %v1592 = vmul.f32 %v1497, 1.442695
        %v1593 = vpow.pop %v1592
        %v1594 = vmul.f32 %v1498, 1.442695
        %v1595 = vpow.pop %v1594
        %v1596 = vmul.f32 %v1499, 1.442695
        %v1597 = vpow.pop %v1596
        %v1598 = vmul.f32 %v1500, 1.442695
        %v1599 = vpow.pop %v1598
        %v1600 = vmul.f32 %v1501, 1.442695
        %v1601 = vpow.pop %v1600
        %v1602 = vmul.f32 %v1502, 1.442695
        %v1603 = vpow.pop %v1602
        %v1604 = vmul.f32 %v1503, 1.442695
        %v1605 = vpow.pop %v1604
        %v1606 = vmul.f32 %v1504, 1.442695
        %v1607 = vpow.pop %v1606
        %v1608 = vmul.f32 %v1505, 1.442695
        %v1609 = vpow.pop %v1608
        %v1610 = vmul.f32 %v1506, 1.442695
        %v1611 = vpow.pop %v1610
        %v1612 = vmul.f32 %v1507, 1.442695
        %v1613 = vpow.pop %v1612
        %v1614 = vmul.f32 %v1508, 1.442695
        %v1615 = vpow.pop %v1614
        %v1616 = vmul.f32 %v1509, 1.442695
        %v1617 = vpow.pop %v1616
        %v1618 = vmul.f32 %v1510, 1.442695
        %v1619 = vpow.pop %v1618
        %v1620 = vmul.f32 %v1511, 1.442695
        %v1621 = vpow.pop %v1620
        %v1622 = vmul.f32 %v1512, 1.442695
        %v1623 = vpow.pop %v1622
        %v1624 = vmul.f32 %v1513, 1.442695
        %v1625 = vpow.pop %v1624
        %v1626 = vmul.f32 %v1514, 1.442695
        %v1627 = vpow.pop %v1626
        %v1628 = vmul.f32 %v1515, 1.442695
        %v1629 = vpow.pop %v1628
        %v1630 = vmul.f32 %v1516, 1.442695
        %v1631 = vpow.pop %v1630
        %v1632 = vmul.f32 %v1517, 1.442695
        %v1633 = vpow.pop %v1632
        %v1634 = vmul.f32 %v1518, 1.442695
        %v1635 = vpow.pop %v1634
        %v1636 = vmul.f32 %v1519, 1.442695
        %v1637 = vpow.pop %v1636
        %v1638 = vmul.f32 %v1520, 1.442695
        %v1639 = vpow.pop %v1638
        %v1640 = vmul.f32 %v1521, 1.442695
        %v1641 = vpow.pop %v1640
        %v1642 = vmul.f32 %v1522, 1.442695
        %v1643 = vpow.pop %v1642
        %v1644 = vmul.f32 %v1523, 1.442695
        %v1645 = vpow.pop %v1644
        %v1646 = vmul.f32 %v1524, 1.442695
        %v1647 = vpow.pop %v1646
        %v1648 = vmul.f32 %v1525, 1.442695
        %v1649 = vpow.pop %v1648
        %v1650 = vmul.f32 %v1526, 1.442695
        %v1651 = vpow.pop %v1650
        %v1652 = vmul.f32 %v1527, 1.442695
        %v1653 = vpow.pop %v1652
        %v1654 = vmul.f32 %v1528, 1.442695
        %v1655 = vpow.pop %v1654
        %v1656 = vmul.f32 %v1529, 1.442695
        %v1657 = vpow.pop %v1656
        %v1658 = vmul.f32 %v1530, 1.442695
        %v1659 = vpow.pop %v1658
        %v1660 = vmul.f32 %v1531, 1.442695
        %v1661 = vpow.pop %v1660
        %v1662 = vmul.f32 %v1532, 1.442695
        %v1663 = vpow.pop %v1662
        %v1664 = vmul.f32 %v1533, 1.442695
        %v1665 = vpow.pop %v1664
        %v1666 = vmul.f32 %v1534, 1.442695
        %v1667 = vpow.pop %v1666
        %v1668 = vmul.f32 %v1535, 1.442695
        %v1669 = vpow.pop %v1668
        %v1670 = vmul.f32 %v1536, 1.442695
        %v1671 = vpow.pop %v1670
        %v1672 = vmul.f32 %v1537, 1.442695
        %v1673 = vpow.pop %v1672
        %v1674 = vmul.f32 %v1538, 1.442695
        %v1675 = vpow.pop %v1674
        %v1676 = vmul.f32 %v1539, 1.442695
        %v1677 = vpow.pop %v1676
        %v1678 = vmul.f32 %v1540, 1.442695
        %v1679 = vpow.pop %v1678
        %v1680 = vmul.f32 %v1541, 1.442695
        %v1681 = vpow.pop %v1680
        %v1682 = vmul.f32 %v1542, 1.442695
        %v1683 = vpow.pop %v1682
        %v1684 = vmul.f32 %v1543, 1.442695
        %v1685 = vpow.pop %v1684
        %v1686 = vmul.f32 %v1544, 1.442695
        %v1687 = vpow.pop %v1686
        %v1688 = vmul.f32 %v1545, 1.442695
        %v1689 = vpow.pop %v1688
        %v1690 = vmul.f32 %v1546, 1.442695
        %v1691 = vpow.pop %v1690
        %v1692 = vmul.f32 %v1547, 1.442695
        %v1693 = vpow.pop %v1692
        %v1694 = vmul.f32 %v1548, 1.442695
        %v1695 = vpow.pop %v1694
        %v1696 = vmul.f32 %v1549, 1.442695
        %v1697 = vpow.pop %v1696
        %v1698 = vmul.f32 %v1550, 1.442695
        %v1699 = vpow.pop %v1698
        %v1700 = vmul.f32 %v1551, 1.442695
        %v1701 = vpow.pop %v1700
        %v1702 = vmul.f32 %v1552, 1.442695
        %v1703 = vpow.pop %v1702
        %v1704 = vmul.f32 %v1553, 1.442695
        %v1705 = vpow.pop %v1704
        %v1706 = vadd.f32 %v1555, 1.0
        %v1707 = vadd.f32 %v1557, 1.0
        %v1708 = vadd.f32 %v1559, 1.0
        %v1709 = vadd.f32 %v1561, 1.0
        %v1710 = vadd.f32 %v1563, 1.0
        %v1711 = vadd.f32 %v1565, 1.0
        %v1712 = vadd.f32 %v1567, 1.0
        %v1713 = vadd.f32 %v1569, 1.0
        %v1714 = vadd.f32 %v1571, 1.0
        %v1715 = vadd.f32 %v1573, 1.0
        %v1716 = vadd.f32 %v1575, 1.0
        %v1717 = vadd.f32 %v1577, 1.0
        %v1718 = vadd.f32 %v1579, 1.0
        %v1719 = vadd.f32 %v1581, 1.0
        %v1720 = vadd.f32 %v1583, 1.0
        %v1721 = vadd.f32 %v1585, 1.0
        %v1722 = vadd.f32 %v1587, 1.0
        %v1723 = vadd.f32 %v1589, 1.0
        %v1724 = vadd.f32 %v1591, 1.0
        %v1725 = vadd.f32 %v1593, 1.0
        %v1726 = vadd.f32 %v1595, 1.0
        %v1727 = vadd.f32 %v1597, 1.0
        %v1728 = vadd.f32 %v1599, 1.0
        %v1729 = vadd.f32 %v1601, 1.0
        %v1730 = vadd.f32 %v1603, 1.0
        %v1731 = vadd.f32 %v1605, 1.0
        %v1732 = vadd.f32 %v1607, 1.0
        %v1733 = vadd.f32 %v1609, 1.0
        %v1734 = vadd.f32 %v1611, 1.0
        %v1735 = vadd.f32 %v1613, 1.0
        %v1736 = vadd.f32 %v1615, 1.0
        %v1737 = vadd.f32 %v1617, 1.0
        %v1738 = vadd.f32 %v1619, 1.0
        %v1739 = vadd.f32 %v1621, 1.0
        %v1740 = vadd.f32 %v1623, 1.0
        %v1741 = vadd.f32 %v1625, 1.0
        %v1742 = vadd.f32 %v1627, 1.0
        %v1743 = vadd.f32 %v1629, 1.0
        %v1744 = vadd.f32 %v1631, 1.0
        %v1745 = vadd.f32 %v1633, 1.0
        %v1746 = vadd.f32 %v1635, 1.0
        %v1747 = vadd.f32 %v1637, 1.0
        %v1748 = vadd.f32 %v1639, 1.0
        %v1749 = vadd.f32 %v1641, 1.0
        %v1750 = vadd.f32 %v1643, 1.0
        %v1751 = vadd.f32 %v1645, 1.0
        %v1752 = vadd.f32 %v1647, 1.0
        %v1753 = vadd.f32 %v1649, 1.0
        %v1754 = vadd.f32 %v1651, 1.0
        %v1755 = vadd.f32 %v1653, 1.0
        %v1756 = vadd.f32 %v1655, 1.0
        %v1757 = vadd.f32 %v1657, 1.0
        %v1758 = vadd.f32 %v1659, 1.0
        %v1759 = vadd.f32 %v1661, 1.0
        %v1760 = vadd.f32 %v1663, 1.0
        %v1761 = vadd.f32 %v1665, 1.0
        %v1762 = vadd.f32 %v1667, 1.0
        %v1763 = vadd.f32 %v1669, 1.0
        %v1764 = vadd.f32 %v1671, 1.0
        %v1765 = vadd.f32 %v1673, 1.0
        %v1766 = vadd.f32 %v1675, 1.0
        %v1767 = vadd.f32 %v1677, 1.0
        %v1768 = vadd.f32 %v1679, 1.0
        %v1769 = vadd.f32 %v1681, 1.0
        %v1770 = vadd.f32 %v1683, 1.0
        %v1771 = vadd.f32 %v1685, 1.0
        %v1772 = vadd.f32 %v1687, 1.0
        %v1773 = vadd.f32 %v1689, 1.0
        %v1774 = vadd.f32 %v1691, 1.0
        %v1775 = vadd.f32 %v1693, 1.0
        %v1776 = vadd.f32 %v1695, 1.0
        %v1777 = vadd.f32 %v1697, 1.0
        %v1778 = vadd.f32 %v1699, 1.0
        %v1779 = vadd.f32 %v1701, 1.0
        %v1780 = vadd.f32 %v1703, 1.0
        %v1781 = vadd.f32 %v1705, 1.0
        %v1782 = vrcp.pop %v1706
        %v1783 = vmul.f32 %v1706, %v1782
        %v1784 = vsub.f32 1.0, %v1783
        %v1785 = vmul.f32 %v1782, %v1784
        %v1786 = vadd.f32 %v1782, %v1785
        %vm1787 = vweird.f32 %v1706
        %vm1788 = vweird.f32 %v1782
        %vm1789 = vmor %vm1787, %vm1788
        %v1790 = vsel %vm1789, %v1782, %v1786
        %v1791 = vand.u32 2147483647, %v1706
        %vm1792 = vcmp.eq.f32.partialorder %v1791, 8.507059e+37
        %v1793 = vand.u32 %v1706, 2147483648
        %v1794 = vor.u32 1.1754944e-38, %v1793
        %v1795 = vsel %vm1792, %v1794, %v1790
        %v1796 = vmul.f32 1.0, %v1795
        %v1797 = vrcp.pop %v1707
        %v1798 = vmul.f32 %v1707, %v1797
        %v1799 = vsub.f32 1.0, %v1798
        %v1800 = vmul.f32 %v1797, %v1799
        %v1801 = vadd.f32 %v1797, %v1800
        %vm1802 = vweird.f32 %v1707
        %vm1803 = vweird.f32 %v1797
        %vm1804 = vmor %vm1802, %vm1803
        %v1805 = vsel %vm1804, %v1797, %v1801
        %v1806 = vand.u32 2147483647, %v1707
        %vm1807 = vcmp.eq.f32.partialorder %v1806, 8.507059e+37
        %v1808 = vand.u32 %v1707, 2147483648
        %v1809 = vor.u32 1.1754944e-38, %v1808
        %v1810 = vsel %vm1807, %v1809, %v1805
        %v1811 = vmul.f32 1.0, %v1810
        %v1812 = vrcp.pop %v1708
        %v1813 = vmul.f32 %v1708, %v1812
        %v1814 = vsub.f32 1.0, %v1813
        %v1815 = vmul.f32 %v1812, %v1814
        %v1816 = vadd.f32 %v1812, %v1815
        %vm1817 = vweird.f32 %v1708
        %vm1818 = vweird.f32 %v1812
        %vm1819 = vmor %vm1817, %vm1818
        %v1820 = vsel %vm1819, %v1812, %v1816
        %v1821 = vand.u32 2147483647, %v1708
        %vm1822 = vcmp.eq.f32.partialorder %v1821, 8.507059e+37
        %v1823 = vand.u32 %v1708, 2147483648
        %v1824 = vor.u32 1.1754944e-38, %v1823
        %v1825 = vsel %vm1822, %v1824, %v1820
        %v1826 = vmul.f32 1.0, %v1825
        %v1827 = vrcp.pop %v1709
        %v1828 = vmul.f32 %v1709, %v1827
        %v1829 = vsub.f32 1.0, %v1828
        %v1830 = vmul.f32 %v1827, %v1829
        %v1831 = vadd.f32 %v1827, %v1830
        %vm1832 = vweird.f32 %v1709
        %vm1833 = vweird.f32 %v1827
        %vm1834 = vmor %vm1832, %vm1833
        %v1835 = vsel %vm1834, %v1827, %v1831
        %v1836 = vand.u32 2147483647, %v1709
        %vm1837 = vcmp.eq.f32.partialorder %v1836, 8.507059e+37
        %v1838 = vand.u32 %v1709, 2147483648
        %v1839 = vor.u32 1.1754944e-38, %v1838
        %v1840 = vsel %vm1837, %v1839, %v1835
        %v1841 = vmul.f32 1.0, %v1840
        %v1842 = vrcp.pop %v1710
        %v1843 = vmul.f32 %v1710, %v1842
        %v1844 = vsub.f32 1.0, %v1843
        %v1845 = vmul.f32 %v1842, %v1844
        %v1846 = vadd.f32 %v1842, %v1845
        %vm1847 = vweird.f32 %v1710
        %vm1848 = vweird.f32 %v1842
        %vm1849 = vmor %vm1847, %vm1848
        %v1850 = vsel %vm1849, %v1842, %v1846
        %v1851 = vand.u32 2147483647, %v1710
        %vm1852 = vcmp.eq.f32.partialorder %v1851, 8.507059e+37
        %v1853 = vand.u32 %v1710, 2147483648
        %v1854 = vor.u32 1.1754944e-38, %v1853
        %v1855 = vsel %vm1852, %v1854, %v1850
        %v1856 = vmul.f32 1.0, %v1855
        %v1857 = vrcp.pop %v1711
        %v1858 = vmul.f32 %v1711, %v1857
        %v1859 = vsub.f32 1.0, %v1858
        %v1860 = vmul.f32 %v1857, %v1859
        %v1861 = vadd.f32 %v1857, %v1860
        %vm1862 = vweird.f32 %v1711
        %vm1863 = vweird.f32 %v1857
        %vm1864 = vmor %vm1862, %vm1863
        %v1865 = vsel %vm1864, %v1857, %v1861
        %v1866 = vand.u32 2147483647, %v1711
        %vm1867 = vcmp.eq.f32.partialorder %v1866, 8.507059e+37
        %v1868 = vand.u32 %v1711, 2147483648
        %v1869 = vor.u32 1.1754944e-38, %v1868
        %v1870 = vsel %vm1867, %v1869, %v1865
        %v1871 = vmul.f32 1.0, %v1870
        %v1872 = vrcp.pop %v1712
        %v1873 = vmul.f32 %v1712, %v1872
        %v1874 = vsub.f32 1.0, %v1873
        %v1875 = vmul.f32 %v1872, %v1874
        %v1876 = vadd.f32 %v1872, %v1875
        %vm1877 = vweird.f32 %v1712
        %vm1878 = vweird.f32 %v1872
        %vm1879 = vmor %vm1877, %vm1878
        %v1880 = vsel %vm1879, %v1872, %v1876
        %v1881 = vand.u32 2147483647, %v1712
        %vm1882 = vcmp.eq.f32.partialorder %v1881, 8.507059e+37
        %v1883 = vand.u32 %v1712, 2147483648
        %v1884 = vor.u32 1.1754944e-38, %v1883
        %v1885 = vsel %vm1882, %v1884, %v1880
        %v1886 = vmul.f32 1.0, %v1885
        %v1887 = vrcp.pop %v1713
        %v1888 = vmul.f32 %v1713, %v1887
        %v1889 = vsub.f32 1.0, %v1888
        %v1890 = vmul.f32 %v1887, %v1889
        %v1891 = vadd.f32 %v1887, %v1890
        %vm1892 = vweird.f32 %v1713
        %vm1893 = vweird.f32 %v1887
        %vm1894 = vmor %vm1892, %vm1893
        %v1895 = vsel %vm1894, %v1887, %v1891
        %v1896 = vand.u32 2147483647, %v1713
        %vm1897 = vcmp.eq.f32.partialorder %v1896, 8.507059e+37
        %v1898 = vand.u32 %v1713, 2147483648
        %v1899 = vor.u32 1.1754944e-38, %v1898
        %v1900 = vsel %vm1897, %v1899, %v1895
        %v1901 = vmul.f32 1.0, %v1900
        %v1902 = vrcp.pop %v1714
        %v1903 = vmul.f32 %v1714, %v1902
        %v1904 = vsub.f32 1.0, %v1903
        %v1905 = vmul.f32 %v1902, %v1904
        %v1906 = vadd.f32 %v1902, %v1905
        %vm1907 = vweird.f32 %v1714
        %vm1908 = vweird.f32 %v1902
        %vm1909 = vmor %vm1907, %vm1908
        %v1910 = vsel %vm1909, %v1902, %v1906
        %v1911 = vand.u32 2147483647, %v1714
        %vm1912 = vcmp.eq.f32.partialorder %v1911, 8.507059e+37
        %v1913 = vand.u32 %v1714, 2147483648
        %v1914 = vor.u32 1.1754944e-38, %v1913
        %v1915 = vsel %vm1912, %v1914, %v1910
        %v1916 = vmul.f32 1.0, %v1915
        %v1917 = vrcp.pop %v1715
        %v1918 = vmul.f32 %v1715, %v1917
        %v1919 = vsub.f32 1.0, %v1918
        %v1920 = vmul.f32 %v1917, %v1919
        %v1921 = vadd.f32 %v1917, %v1920
        %vm1922 = vweird.f32 %v1715
        %vm1923 = vweird.f32 %v1917
        %vm1924 = vmor %vm1922, %vm1923
        %v1925 = vsel %vm1924, %v1917, %v1921
        %v1926 = vand.u32 2147483647, %v1715
        %vm1927 = vcmp.eq.f32.partialorder %v1926, 8.507059e+37
        %v1928 = vand.u32 %v1715, 2147483648
        %v1929 = vor.u32 1.1754944e-38, %v1928
        %v1930 = vsel %vm1927, %v1929, %v1925
        %v1931 = vmul.f32 1.0, %v1930
        %v1932 = vrcp.pop %v1716
        %v1933 = vmul.f32 %v1716, %v1932
        %v1934 = vsub.f32 1.0, %v1933
        %v1935 = vmul.f32 %v1932, %v1934
        %v1936 = vadd.f32 %v1932, %v1935
        %vm1937 = vweird.f32 %v1716
        %vm1938 = vweird.f32 %v1932
        %vm1939 = vmor %vm1937, %vm1938
        %v1940 = vsel %vm1939, %v1932, %v1936
        %v1941 = vand.u32 2147483647, %v1716
        %vm1942 = vcmp.eq.f32.partialorder %v1941, 8.507059e+37
        %v1943 = vand.u32 %v1716, 2147483648
        %v1944 = vor.u32 1.1754944e-38, %v1943
        %v1945 = vsel %vm1942, %v1944, %v1940
        %v1946 = vmul.f32 1.0, %v1945
        %v1947 = vrcp.pop %v1717
        %v1948 = vmul.f32 %v1717, %v1947
        %v1949 = vsub.f32 1.0, %v1948
        %v1950 = vmul.f32 %v1947, %v1949
        %v1951 = vadd.f32 %v1947, %v1950
        %vm1952 = vweird.f32 %v1717
        %vm1953 = vweird.f32 %v1947
        %vm1954 = vmor %vm1952, %vm1953
        %v1955 = vsel %vm1954, %v1947, %v1951
        %v1956 = vand.u32 2147483647, %v1717
        %vm1957 = vcmp.eq.f32.partialorder %v1956, 8.507059e+37
        %v1958 = vand.u32 %v1717, 2147483648
        %v1959 = vor.u32 1.1754944e-38, %v1958
        %v1960 = vsel %vm1957, %v1959, %v1955
        %v1961 = vmul.f32 1.0, %v1960
        %v1962 = vrcp.pop %v1718
        %v1963 = vmul.f32 %v1718, %v1962
        %v1964 = vsub.f32 1.0, %v1963
        %v1965 = vmul.f32 %v1962, %v1964
        %v1966 = vadd.f32 %v1962, %v1965
        %vm1967 = vweird.f32 %v1718
        %vm1968 = vweird.f32 %v1962
        %vm1969 = vmor %vm1967, %vm1968
        %v1970 = vsel %vm1969, %v1962, %v1966
        %v1971 = vand.u32 2147483647, %v1718
        %vm1972 = vcmp.eq.f32.partialorder %v1971, 8.507059e+37
        %v1973 = vand.u32 %v1718, 2147483648
        %v1974 = vor.u32 1.1754944e-38, %v1973
        %v1975 = vsel %vm1972, %v1974, %v1970
        %v1976 = vmul.f32 1.0, %v1975
        %v1977 = vrcp.pop %v1719
        %v1978 = vmul.f32 %v1719, %v1977
        %v1979 = vsub.f32 1.0, %v1978
        %v1980 = vmul.f32 %v1977, %v1979
        %v1981 = vadd.f32 %v1977, %v1980
        %vm1982 = vweird.f32 %v1719
        %vm1983 = vweird.f32 %v1977
        %vm1984 = vmor %vm1982, %vm1983
        %v1985 = vsel %vm1984, %v1977, %v1981
        %v1986 = vand.u32 2147483647, %v1719
        %vm1987 = vcmp.eq.f32.partialorder %v1986, 8.507059e+37
        %v1988 = vand.u32 %v1719, 2147483648
        %v1989 = vor.u32 1.1754944e-38, %v1988
        %v1990 = vsel %vm1987, %v1989, %v1985
        %v1991 = vmul.f32 1.0, %v1990
        %v1992 = vrcp.pop %v1720
        %v1993 = vmul.f32 %v1720, %v1992
        %v1994 = vsub.f32 1.0, %v1993
        %v1995 = vmul.f32 %v1992, %v1994
        %v1996 = vadd.f32 %v1992, %v1995
        %vm1997 = vweird.f32 %v1720
        %vm1998 = vweird.f32 %v1992
        %vm1999 = vmor %vm1997, %vm1998
        %v2000 = vsel %vm1999, %v1992, %v1996
        %v2001 = vand.u32 2147483647, %v1720
        %vm2002 = vcmp.eq.f32.partialorder %v2001, 8.507059e+37
        %v2003 = vand.u32 %v1720, 2147483648
        %v2004 = vor.u32 1.1754944e-38, %v2003
        %v2005 = vsel %vm2002, %v2004, %v2000
        %v2006 = vmul.f32 1.0, %v2005
        %v2007 = vrcp.pop %v1721
        %v2008 = vmul.f32 %v1721, %v2007
        %v2009 = vsub.f32 1.0, %v2008
        %v2010 = vmul.f32 %v2007, %v2009
        %v2011 = vadd.f32 %v2007, %v2010
        %vm2012 = vweird.f32 %v1721
        %vm2013 = vweird.f32 %v2007
        %vm2014 = vmor %vm2012, %vm2013
        %v2015 = vsel %vm2014, %v2007, %v2011
        %v2016 = vand.u32 2147483647, %v1721
        %vm2017 = vcmp.eq.f32.partialorder %v2016, 8.507059e+37
        %v2018 = vand.u32 %v1721, 2147483648
        %v2019 = vor.u32 1.1754944e-38, %v2018
        %v2020 = vsel %vm2017, %v2019, %v2015
        %v2021 = vmul.f32 1.0, %v2020
        %v2022 = vrcp.pop %v1722
        %v2023 = vmul.f32 %v1722, %v2022
        %v2024 = vsub.f32 1.0, %v2023
        %v2025 = vmul.f32 %v2022, %v2024
        %v2026 = vadd.f32 %v2022, %v2025
        %vm2027 = vweird.f32 %v1722
        %vm2028 = vweird.f32 %v2022
        %vm2029 = vmor %vm2027, %vm2028
        %v2030 = vsel %vm2029, %v2022, %v2026
        %v2031 = vand.u32 2147483647, %v1722
        %vm2032 = vcmp.eq.f32.partialorder %v2031, 8.507059e+37
        %v2033 = vand.u32 %v1722, 2147483648
        %v2034 = vor.u32 1.1754944e-38, %v2033
        %v2035 = vsel %vm2032, %v2034, %v2030
        %v2036 = vmul.f32 1.0, %v2035
        %v2037 = vrcp.pop %v1723
        %v2038 = vmul.f32 %v1723, %v2037
        %v2039 = vsub.f32 1.0, %v2038
        %v2040 = vmul.f32 %v2037, %v2039
        %v2041 = vadd.f32 %v2037, %v2040
        %vm2042 = vweird.f32 %v1723
        %vm2043 = vweird.f32 %v2037
        %vm2044 = vmor %vm2042, %vm2043
        %v2045 = vsel %vm2044, %v2037, %v2041
        %v2046 = vand.u32 2147483647, %v1723
        %vm2047 = vcmp.eq.f32.partialorder %v2046, 8.507059e+37
        %v2048 = vand.u32 %v1723, 2147483648
        %v2049 = vor.u32 1.1754944e-38, %v2048
        %v2050 = vsel %vm2047, %v2049, %v2045
        %v2051 = vmul.f32 1.0, %v2050
        %v2052 = vrcp.pop %v1724
        %v2053 = vmul.f32 %v1724, %v2052
        %v2054 = vsub.f32 1.0, %v2053
        %v2055 = vmul.f32 %v2052, %v2054
        %v2056 = vadd.f32 %v2052, %v2055
        %vm2057 = vweird.f32 %v1724
        %vm2058 = vweird.f32 %v2052
        %vm2059 = vmor %vm2057, %vm2058
        %v2060 = vsel %vm2059, %v2052, %v2056
        %v2061 = vand.u32 2147483647, %v1724
        %vm2062 = vcmp.eq.f32.partialorder %v2061, 8.507059e+37
        %v2063 = vand.u32 %v1724, 2147483648
        %v2064 = vor.u32 1.1754944e-38, %v2063
        %v2065 = vsel %vm2062, %v2064, %v2060
        %v2066 = vmul.f32 1.0, %v2065
        %v2067 = vrcp.pop %v1725
        %v2068 = vmul.f32 %v1725, %v2067
        %v2069 = vsub.f32 1.0, %v2068
        %v2070 = vmul.f32 %v2067, %v2069
        %v2071 = vadd.f32 %v2067, %v2070
        %vm2072 = vweird.f32 %v1725
        %vm2073 = vweird.f32 %v2067
        %vm2074 = vmor %vm2072, %vm2073
        %v2075 = vsel %vm2074, %v2067, %v2071
        %v2076 = vand.u32 2147483647, %v1725
        %vm2077 = vcmp.eq.f32.partialorder %v2076, 8.507059e+37
        %v2078 = vand.u32 %v1725, 2147483648
        %v2079 = vor.u32 1.1754944e-38, %v2078
        %v2080 = vsel %vm2077, %v2079, %v2075
        %v2081 = vmul.f32 1.0, %v2080
        %v2082 = vrcp.pop %v1726
        %v2083 = vmul.f32 %v1726, %v2082
        %v2084 = vsub.f32 1.0, %v2083
        %v2085 = vmul.f32 %v2082, %v2084
        %v2086 = vadd.f32 %v2082, %v2085
        %vm2087 = vweird.f32 %v1726
        %vm2088 = vweird.f32 %v2082
        %vm2089 = vmor %vm2087, %vm2088
        %v2090 = vsel %vm2089, %v2082, %v2086
        %v2091 = vand.u32 2147483647, %v1726
        %vm2092 = vcmp.eq.f32.partialorder %v2091, 8.507059e+37
        %v2093 = vand.u32 %v1726, 2147483648
        %v2094 = vor.u32 1.1754944e-38, %v2093
        %v2095 = vsel %vm2092, %v2094, %v2090
        %v2096 = vmul.f32 1.0, %v2095
        %v2097 = vrcp.pop %v1727
        %v2098 = vmul.f32 %v1727, %v2097
        %v2099 = vsub.f32 1.0, %v2098
        %v2100 = vmul.f32 %v2097, %v2099
        %v2101 = vadd.f32 %v2097, %v2100
        %vm2102 = vweird.f32 %v1727
        %vm2103 = vweird.f32 %v2097
        %vm2104 = vmor %vm2102, %vm2103
        %v2105 = vsel %vm2104, %v2097, %v2101
        %v2106 = vand.u32 2147483647, %v1727
        %vm2107 = vcmp.eq.f32.partialorder %v2106, 8.507059e+37
        %v2108 = vand.u32 %v1727, 2147483648
        %v2109 = vor.u32 1.1754944e-38, %v2108
        %v2110 = vsel %vm2107, %v2109, %v2105
        %v2111 = vmul.f32 1.0, %v2110
        %v2112 = vrcp.pop %v1728
        %v2113 = vmul.f32 %v1728, %v2112
        %v2114 = vsub.f32 1.0, %v2113
        %v2115 = vmul.f32 %v2112, %v2114
        %v2116 = vadd.f32 %v2112, %v2115
        %vm2117 = vweird.f32 %v1728
        %vm2118 = vweird.f32 %v2112
        %vm2119 = vmor %vm2117, %vm2118
        %v2120 = vsel %vm2119, %v2112, %v2116
        %v2121 = vand.u32 2147483647, %v1728
        %vm2122 = vcmp.eq.f32.partialorder %v2121, 8.507059e+37
        %v2123 = vand.u32 %v1728, 2147483648
        %v2124 = vor.u32 1.1754944e-38, %v2123
        %v2125 = vsel %vm2122, %v2124, %v2120
        %v2126 = vmul.f32 1.0, %v2125
        %v2127 = vrcp.pop %v1729
        %v2128 = vmul.f32 %v1729, %v2127
        %v2129 = vsub.f32 1.0, %v2128
        %v2130 = vmul.f32 %v2127, %v2129
        %v2131 = vadd.f32 %v2127, %v2130
        %vm2132 = vweird.f32 %v1729
        %vm2133 = vweird.f32 %v2127
        %vm2134 = vmor %vm2132, %vm2133
        %v2135 = vsel %vm2134, %v2127, %v2131
        %v2136 = vand.u32 2147483647, %v1729
        %vm2137 = vcmp.eq.f32.partialorder %v2136, 8.507059e+37
        %v2138 = vand.u32 %v1729, 2147483648
        %v2139 = vor.u32 1.1754944e-38, %v2138
        %v2140 = vsel %vm2137, %v2139, %v2135
        %v2141 = vmul.f32 1.0, %v2140
        %v2142 = vrcp.pop %v1730
        %v2143 = vmul.f32 %v1730, %v2142
        %v2144 = vsub.f32 1.0, %v2143
        %v2145 = vmul.f32 %v2142, %v2144
        %v2146 = vadd.f32 %v2142, %v2145
        %vm2147 = vweird.f32 %v1730
        %vm2148 = vweird.f32 %v2142
        %vm2149 = vmor %vm2147, %vm2148
        %v2150 = vsel %vm2149, %v2142, %v2146
        %v2151 = vand.u32 2147483647, %v1730
        %vm2152 = vcmp.eq.f32.partialorder %v2151, 8.507059e+37
        %v2153 = vand.u32 %v1730, 2147483648
        %v2154 = vor.u32 1.1754944e-38, %v2153
        %v2155 = vsel %vm2152, %v2154, %v2150
        %v2156 = vmul.f32 1.0, %v2155
        %v2157 = vrcp.pop %v1731
        %v2158 = vmul.f32 %v1731, %v2157
        %v2159 = vsub.f32 1.0, %v2158
        %v2160 = vmul.f32 %v2157, %v2159
        %v2161 = vadd.f32 %v2157, %v2160
        %vm2162 = vweird.f32 %v1731
        %vm2163 = vweird.f32 %v2157
        %vm2164 = vmor %vm2162, %vm2163
        %v2165 = vsel %vm2164, %v2157, %v2161
        %v2166 = vand.u32 2147483647, %v1731
        %vm2167 = vcmp.eq.f32.partialorder %v2166, 8.507059e+37
        %v2168 = vand.u32 %v1731, 2147483648
        %v2169 = vor.u32 1.1754944e-38, %v2168
        %v2170 = vsel %vm2167, %v2169, %v2165
        %v2171 = vmul.f32 1.0, %v2170
        %v2172 = vrcp.pop %v1732
        %v2173 = vmul.f32 %v1732, %v2172
        %v2174 = vsub.f32 1.0, %v2173
        %v2175 = vmul.f32 %v2172, %v2174
        %v2176 = vadd.f32 %v2172, %v2175
        %vm2177 = vweird.f32 %v1732
        %vm2178 = vweird.f32 %v2172
        %vm2179 = vmor %vm2177, %vm2178
        %v2180 = vsel %vm2179, %v2172, %v2176
        %v2181 = vand.u32 2147483647, %v1732
        %vm2182 = vcmp.eq.f32.partialorder %v2181, 8.507059e+37
        %v2183 = vand.u32 %v1732, 2147483648
        %v2184 = vor.u32 1.1754944e-38, %v2183
        %v2185 = vsel %vm2182, %v2184, %v2180
        %v2186 = vmul.f32 1.0, %v2185
        %v2187 = vrcp.pop %v1733
        %v2188 = vmul.f32 %v1733, %v2187
        %v2189 = vsub.f32 1.0, %v2188
        %v2190 = vmul.f32 %v2187, %v2189
        %v2191 = vadd.f32 %v2187, %v2190
        %vm2192 = vweird.f32 %v1733
        %vm2193 = vweird.f32 %v2187
        %vm2194 = vmor %vm2192, %vm2193
        %v2195 = vsel %vm2194, %v2187, %v2191
        %v2196 = vand.u32 2147483647, %v1733
        %vm2197 = vcmp.eq.f32.partialorder %v2196, 8.507059e+37
        %v2198 = vand.u32 %v1733, 2147483648
        %v2199 = vor.u32 1.1754944e-38, %v2198
        %v2200 = vsel %vm2197, %v2199, %v2195
        %v2201 = vmul.f32 1.0, %v2200
        %v2202 = vrcp.pop %v1734
        %v2203 = vmul.f32 %v1734, %v2202
        %v2204 = vsub.f32 1.0, %v2203
        %v2205 = vmul.f32 %v2202, %v2204
        %v2206 = vadd.f32 %v2202, %v2205
        %vm2207 = vweird.f32 %v1734
        %vm2208 = vweird.f32 %v2202
        %vm2209 = vmor %vm2207, %vm2208
        %v2210 = vsel %vm2209, %v2202, %v2206
        %v2211 = vand.u32 2147483647, %v1734
        %vm2212 = vcmp.eq.f32.partialorder %v2211, 8.507059e+37
        %v2213 = vand.u32 %v1734, 2147483648
        %v2214 = vor.u32 1.1754944e-38, %v2213
        %v2215 = vsel %vm2212, %v2214, %v2210
        %v2216 = vmul.f32 1.0, %v2215
        %v2217 = vrcp.pop %v1735
        %v2218 = vmul.f32 %v1735, %v2217
        %v2219 = vsub.f32 1.0, %v2218
        %v2220 = vmul.f32 %v2217, %v2219
        %v2221 = vadd.f32 %v2217, %v2220
        %vm2222 = vweird.f32 %v1735
        %vm2223 = vweird.f32 %v2217
        %vm2224 = vmor %vm2222, %vm2223
        %v2225 = vsel %vm2224, %v2217, %v2221
        %v2226 = vand.u32 2147483647, %v1735
        %vm2227 = vcmp.eq.f32.partialorder %v2226, 8.507059e+37
        %v2228 = vand.u32 %v1735, 2147483648
        %v2229 = vor.u32 1.1754944e-38, %v2228
        %v2230 = vsel %vm2227, %v2229, %v2225
        %v2231 = vmul.f32 1.0, %v2230
        %v2232 = vrcp.pop %v1736
        %v2233 = vmul.f32 %v1736, %v2232
        %v2234 = vsub.f32 1.0, %v2233
        %v2235 = vmul.f32 %v2232, %v2234
        %v2236 = vadd.f32 %v2232, %v2235
        %vm2237 = vweird.f32 %v1736
        %vm2238 = vweird.f32 %v2232
        %vm2239 = vmor %vm2237, %vm2238
        %v2240 = vsel %vm2239, %v2232, %v2236
        %v2241 = vand.u32 2147483647, %v1736
        %vm2242 = vcmp.eq.f32.partialorder %v2241, 8.507059e+37
        %v2243 = vand.u32 %v1736, 2147483648
        %v2244 = vor.u32 1.1754944e-38, %v2243
        %v2245 = vsel %vm2242, %v2244, %v2240
        %v2246 = vmul.f32 1.0, %v2245
        %v2247 = vrcp.pop %v1737
        %v2248 = vmul.f32 %v1737, %v2247
        %v2249 = vsub.f32 1.0, %v2248
        %v2250 = vmul.f32 %v2247, %v2249
        %v2251 = vadd.f32 %v2247, %v2250
        %vm2252 = vweird.f32 %v1737
        %vm2253 = vweird.f32 %v2247
        %vm2254 = vmor %vm2252, %vm2253
        %v2255 = vsel %vm2254, %v2247, %v2251
        %v2256 = vand.u32 2147483647, %v1737
        %vm2257 = vcmp.eq.f32.partialorder %v2256, 8.507059e+37
        %v2258 = vand.u32 %v1737, 2147483648
        %v2259 = vor.u32 1.1754944e-38, %v2258
        %v2260 = vsel %vm2257, %v2259, %v2255
        %v2261 = vmul.f32 1.0, %v2260
        %v2262 = vrcp.pop %v1738
        %v2263 = vmul.f32 %v1738, %v2262
        %v2264 = vsub.f32 1.0, %v2263
        %v2265 = vmul.f32 %v2262, %v2264
        %v2266 = vadd.f32 %v2262, %v2265
        %vm2267 = vweird.f32 %v1738
        %vm2268 = vweird.f32 %v2262
        %vm2269 = vmor %vm2267, %vm2268
        %v2270 = vsel %vm2269, %v2262, %v2266
        %v2271 = vand.u32 2147483647, %v1738
        %vm2272 = vcmp.eq.f32.partialorder %v2271, 8.507059e+37
        %v2273 = vand.u32 %v1738, 2147483648
        %v2274 = vor.u32 1.1754944e-38, %v2273
        %v2275 = vsel %vm2272, %v2274, %v2270
        %v2276 = vmul.f32 1.0, %v2275
        %v2277 = vrcp.pop %v1739
        %v2278 = vmul.f32 %v1739, %v2277
        %v2279 = vsub.f32 1.0, %v2278
        %v2280 = vmul.f32 %v2277, %v2279
        %v2281 = vadd.f32 %v2277, %v2280
        %vm2282 = vweird.f32 %v1739
        %vm2283 = vweird.f32 %v2277
        %vm2284 = vmor %vm2282, %vm2283
        %v2285 = vsel %vm2284, %v2277, %v2281
        %v2286 = vand.u32 2147483647, %v1739
        %vm2287 = vcmp.eq.f32.partialorder %v2286, 8.507059e+37
        %v2288 = vand.u32 %v1739, 2147483648
        %v2289 = vor.u32 1.1754944e-38, %v2288
        %v2290 = vsel %vm2287, %v2289, %v2285
        %v2291 = vmul.f32 1.0, %v2290
        %v2292 = vrcp.pop %v1740
        %v2293 = vmul.f32 %v1740, %v2292
        %v2294 = vsub.f32 1.0, %v2293
        %v2295 = vmul.f32 %v2292, %v2294
        %v2296 = vadd.f32 %v2292, %v2295
        %vm2297 = vweird.f32 %v1740
        %vm2298 = vweird.f32 %v2292
        %vm2299 = vmor %vm2297, %vm2298
        %v2300 = vsel %vm2299, %v2292, %v2296
        %v2301 = vand.u32 2147483647, %v1740
        %vm2302 = vcmp.eq.f32.partialorder %v2301, 8.507059e+37
        %v2303 = vand.u32 %v1740, 2147483648
        %v2304 = vor.u32 1.1754944e-38, %v2303
        %v2305 = vsel %vm2302, %v2304, %v2300
        %v2306 = vmul.f32 1.0, %v2305
        %v2307 = vrcp.pop %v1741
        %v2308 = vmul.f32 %v1741, %v2307
        %v2309 = vsub.f32 1.0, %v2308
        %v2310 = vmul.f32 %v2307, %v2309
        %v2311 = vadd.f32 %v2307, %v2310
        %vm2312 = vweird.f32 %v1741
        %vm2313 = vweird.f32 %v2307
        %vm2314 = vmor %vm2312, %vm2313
        %v2315 = vsel %vm2314, %v2307, %v2311
        %v2316 = vand.u32 2147483647, %v1741
        %vm2317 = vcmp.eq.f32.partialorder %v2316, 8.507059e+37
        %v2318 = vand.u32 %v1741, 2147483648
        %v2319 = vor.u32 1.1754944e-38, %v2318
        %v2320 = vsel %vm2317, %v2319, %v2315
        %v2321 = vmul.f32 1.0, %v2320
        %v2322 = vrcp.pop %v1742
        %v2323 = vmul.f32 %v1742, %v2322
        %v2324 = vsub.f32 1.0, %v2323
        %v2325 = vmul.f32 %v2322, %v2324
        %v2326 = vadd.f32 %v2322, %v2325
        %vm2327 = vweird.f32 %v1742
        %vm2328 = vweird.f32 %v2322
        %vm2329 = vmor %vm2327, %vm2328
        %v2330 = vsel %vm2329, %v2322, %v2326
        %v2331 = vand.u32 2147483647, %v1742
        %vm2332 = vcmp.eq.f32.partialorder %v2331, 8.507059e+37
        %v2333 = vand.u32 %v1742, 2147483648
        %v2334 = vor.u32 1.1754944e-38, %v2333
        %v2335 = vsel %vm2332, %v2334, %v2330
        %v2336 = vmul.f32 1.0, %v2335
        %v2337 = vrcp.pop %v1743
        %v2338 = vmul.f32 %v1743, %v2337
        %v2339 = vsub.f32 1.0, %v2338
        %v2340 = vmul.f32 %v2337, %v2339
        %v2341 = vadd.f32 %v2337, %v2340
        %vm2342 = vweird.f32 %v1743
        %vm2343 = vweird.f32 %v2337
        %vm2344 = vmor %vm2342, %vm2343
        %v2345 = vsel %vm2344, %v2337, %v2341
        %v2346 = vand.u32 2147483647, %v1743
        %vm2347 = vcmp.eq.f32.partialorder %v2346, 8.507059e+37
        %v2348 = vand.u32 %v1743, 2147483648
        %v2349 = vor.u32 1.1754944e-38, %v2348
        %v2350 = vsel %vm2347, %v2349, %v2345
        %v2351 = vmul.f32 1.0, %v2350
        %v2352 = vrcp.pop %v1744
        %v2353 = vmul.f32 %v1744, %v2352
        %v2354 = vsub.f32 1.0, %v2353
        %v2355 = vmul.f32 %v2352, %v2354
        %v2356 = vadd.f32 %v2352, %v2355
        %vm2357 = vweird.f32 %v1744
        %vm2358 = vweird.f32 %v2352
        %vm2359 = vmor %vm2357, %vm2358
        %v2360 = vsel %vm2359, %v2352, %v2356
        %v2361 = vand.u32 2147483647, %v1744
        %vm2362 = vcmp.eq.f32.partialorder %v2361, 8.507059e+37
        %v2363 = vand.u32 %v1744, 2147483648
        %v2364 = vor.u32 1.1754944e-38, %v2363
        %v2365 = vsel %vm2362, %v2364, %v2360
        %v2366 = vmul.f32 1.0, %v2365
        %v2367 = vrcp.pop %v1745
        %v2368 = vmul.f32 %v1745, %v2367
        %v2369 = vsub.f32 1.0, %v2368
        %v2370 = vmul.f32 %v2367, %v2369
        %v2371 = vadd.f32 %v2367, %v2370
        %vm2372 = vweird.f32 %v1745
        %vm2373 = vweird.f32 %v2367
        %vm2374 = vmor %vm2372, %vm2373
        %v2375 = vsel %vm2374, %v2367, %v2371
        %v2376 = vand.u32 2147483647, %v1745
        %vm2377 = vcmp.eq.f32.partialorder %v2376, 8.507059e+37
        %v2378 = vand.u32 %v1745, 2147483648
        %v2379 = vor.u32 1.1754944e-38, %v2378
        %v2380 = vsel %vm2377, %v2379, %v2375
        %v2381 = vmul.f32 1.0, %v2380
        %v2382 = vrcp.pop %v1746
        %v2383 = vmul.f32 %v1746, %v2382
        %v2384 = vsub.f32 1.0, %v2383
        %v2385 = vmul.f32 %v2382, %v2384
        %v2386 = vadd.f32 %v2382, %v2385
        %vm2387 = vweird.f32 %v1746
        %vm2388 = vweird.f32 %v2382
        %vm2389 = vmor %vm2387, %vm2388
        %v2390 = vsel %vm2389, %v2382, %v2386
        %v2391 = vand.u32 2147483647, %v1746
        %vm2392 = vcmp.eq.f32.partialorder %v2391, 8.507059e+37
        %v2393 = vand.u32 %v1746, 2147483648
        %v2394 = vor.u32 1.1754944e-38, %v2393
        %v2395 = vsel %vm2392, %v2394, %v2390
        %v2396 = vmul.f32 1.0, %v2395
        %v2397 = vrcp.pop %v1747
        %v2398 = vmul.f32 %v1747, %v2397
        %v2399 = vsub.f32 1.0, %v2398
        %v2400 = vmul.f32 %v2397, %v2399
        %v2401 = vadd.f32 %v2397, %v2400
        %vm2402 = vweird.f32 %v1747
        %vm2403 = vweird.f32 %v2397
        %vm2404 = vmor %vm2402, %vm2403
        %v2405 = vsel %vm2404, %v2397, %v2401
        %v2406 = vand.u32 2147483647, %v1747
        %vm2407 = vcmp.eq.f32.partialorder %v2406, 8.507059e+37
        %v2408 = vand.u32 %v1747, 2147483648
        %v2409 = vor.u32 1.1754944e-38, %v2408
        %v2410 = vsel %vm2407, %v2409, %v2405
        %v2411 = vmul.f32 1.0, %v2410
        %v2412 = vrcp.pop %v1748
        %v2413 = vmul.f32 %v1748, %v2412
        %v2414 = vsub.f32 1.0, %v2413
        %v2415 = vmul.f32 %v2412, %v2414
        %v2416 = vadd.f32 %v2412, %v2415
        %vm2417 = vweird.f32 %v1748
        %vm2418 = vweird.f32 %v2412
        %vm2419 = vmor %vm2417, %vm2418
        %v2420 = vsel %vm2419, %v2412, %v2416
        %v2421 = vand.u32 2147483647, %v1748
        %vm2422 = vcmp.eq.f32.partialorder %v2421, 8.507059e+37
        %v2423 = vand.u32 %v1748, 2147483648
        %v2424 = vor.u32 1.1754944e-38, %v2423
        %v2425 = vsel %vm2422, %v2424, %v2420
        %v2426 = vmul.f32 1.0, %v2425
        %v2427 = vrcp.pop %v1749
        %v2428 = vmul.f32 %v1749, %v2427
        %v2429 = vsub.f32 1.0, %v2428
        %v2430 = vmul.f32 %v2427, %v2429
        %v2431 = vadd.f32 %v2427, %v2430
        %vm2432 = vweird.f32 %v1749
        %vm2433 = vweird.f32 %v2427
        %vm2434 = vmor %vm2432, %vm2433
        %v2435 = vsel %vm2434, %v2427, %v2431
        %v2436 = vand.u32 2147483647, %v1749
        %vm2437 = vcmp.eq.f32.partialorder %v2436, 8.507059e+37
        %v2438 = vand.u32 %v1749, 2147483648
        %v2439 = vor.u32 1.1754944e-38, %v2438
        %v2440 = vsel %vm2437, %v2439, %v2435
        %v2441 = vmul.f32 1.0, %v2440
        %v2442 = vrcp.pop %v1750
        %v2443 = vmul.f32 %v1750, %v2442
        %v2444 = vsub.f32 1.0, %v2443
        %v2445 = vmul.f32 %v2442, %v2444
        %v2446 = vadd.f32 %v2442, %v2445
        %vm2447 = vweird.f32 %v1750
        %vm2448 = vweird.f32 %v2442
        %vm2449 = vmor %vm2447, %vm2448
        %v2450 = vsel %vm2449, %v2442, %v2446
        %v2451 = vand.u32 2147483647, %v1750
        %vm2452 = vcmp.eq.f32.partialorder %v2451, 8.507059e+37
        %v2453 = vand.u32 %v1750, 2147483648
        %v2454 = vor.u32 1.1754944e-38, %v2453
        %v2455 = vsel %vm2452, %v2454, %v2450
        %v2456 = vmul.f32 1.0, %v2455
        %v2457 = vrcp.pop %v1751
        %v2458 = vmul.f32 %v1751, %v2457
        %v2459 = vsub.f32 1.0, %v2458
        %v2460 = vmul.f32 %v2457, %v2459
        %v2461 = vadd.f32 %v2457, %v2460
        %vm2462 = vweird.f32 %v1751
        %vm2463 = vweird.f32 %v2457
        %vm2464 = vmor %vm2462, %vm2463
        %v2465 = vsel %vm2464, %v2457, %v2461
        %v2466 = vand.u32 2147483647, %v1751
        %vm2467 = vcmp.eq.f32.partialorder %v2466, 8.507059e+37
        %v2468 = vand.u32 %v1751, 2147483648
        %v2469 = vor.u32 1.1754944e-38, %v2468
        %v2470 = vsel %vm2467, %v2469, %v2465
        %v2471 = vmul.f32 1.0, %v2470
        %v2472 = vrcp.pop %v1752
        %v2473 = vmul.f32 %v1752, %v2472
        %v2474 = vsub.f32 1.0, %v2473
        %v2475 = vmul.f32 %v2472, %v2474
        %v2476 = vadd.f32 %v2472, %v2475
        %vm2477 = vweird.f32 %v1752
        %vm2478 = vweird.f32 %v2472
        %vm2479 = vmor %vm2477, %vm2478
        %v2480 = vsel %vm2479, %v2472, %v2476
        %v2481 = vand.u32 2147483647, %v1752
        %vm2482 = vcmp.eq.f32.partialorder %v2481, 8.507059e+37
        %v2483 = vand.u32 %v1752, 2147483648
        %v2484 = vor.u32 1.1754944e-38, %v2483
        %v2485 = vsel %vm2482, %v2484, %v2480
        %v2486 = vmul.f32 1.0, %v2485
        %v2487 = vrcp.pop %v1753
        %v2488 = vmul.f32 %v1753, %v2487
        %v2489 = vsub.f32 1.0, %v2488
        %v2490 = vmul.f32 %v2487, %v2489
        %v2491 = vadd.f32 %v2487, %v2490
        %vm2492 = vweird.f32 %v1753
        %vm2493 = vweird.f32 %v2487
        %vm2494 = vmor %vm2492, %vm2493
        %v2495 = vsel %vm2494, %v2487, %v2491
        %v2496 = vand.u32 2147483647, %v1753
        %vm2497 = vcmp.eq.f32.partialorder %v2496, 8.507059e+37
        %v2498 = vand.u32 %v1753, 2147483648
        %v2499 = vor.u32 1.1754944e-38, %v2498
        %v2500 = vsel %vm2497, %v2499, %v2495
        %v2501 = vmul.f32 1.0, %v2500
        %v2502 = vrcp.pop %v1754
        %v2503 = vmul.f32 %v1754, %v2502
        %v2504 = vsub.f32 1.0, %v2503
        %v2505 = vmul.f32 %v2502, %v2504
        %v2506 = vadd.f32 %v2502, %v2505
        %vm2507 = vweird.f32 %v1754
        %vm2508 = vweird.f32 %v2502
        %vm2509 = vmor %vm2507, %vm2508
        %v2510 = vsel %vm2509, %v2502, %v2506
        %v2511 = vand.u32 2147483647, %v1754
        %vm2512 = vcmp.eq.f32.partialorder %v2511, 8.507059e+37
        %v2513 = vand.u32 %v1754, 2147483648
        %v2514 = vor.u32 1.1754944e-38, %v2513
        %v2515 = vsel %vm2512, %v2514, %v2510
        %v2516 = vmul.f32 1.0, %v2515
        %v2517 = vrcp.pop %v1755
        %v2518 = vmul.f32 %v1755, %v2517
        %v2519 = vsub.f32 1.0, %v2518
        %v2520 = vmul.f32 %v2517, %v2519
        %v2521 = vadd.f32 %v2517, %v2520
        %vm2522 = vweird.f32 %v1755
        %vm2523 = vweird.f32 %v2517
        %vm2524 = vmor %vm2522, %vm2523
        %v2525 = vsel %vm2524, %v2517, %v2521
        %v2526 = vand.u32 2147483647, %v1755
        %vm2527 = vcmp.eq.f32.partialorder %v2526, 8.507059e+37
        %v2528 = vand.u32 %v1755, 2147483648
        %v2529 = vor.u32 1.1754944e-38, %v2528
        %v2530 = vsel %vm2527, %v2529, %v2525
        %v2531 = vmul.f32 1.0, %v2530
        %v2532 = vrcp.pop %v1756
        %v2533 = vmul.f32 %v1756, %v2532
        %v2534 = vsub.f32 1.0, %v2533
        %v2535 = vmul.f32 %v2532, %v2534
        %v2536 = vadd.f32 %v2532, %v2535
        %vm2537 = vweird.f32 %v1756
        %vm2538 = vweird.f32 %v2532
        %vm2539 = vmor %vm2537, %vm2538
        %v2540 = vsel %vm2539, %v2532, %v2536
        %v2541 = vand.u32 2147483647, %v1756
        %vm2542 = vcmp.eq.f32.partialorder %v2541, 8.507059e+37
        %v2543 = vand.u32 %v1756, 2147483648
        %v2544 = vor.u32 1.1754944e-38, %v2543
        %v2545 = vsel %vm2542, %v2544, %v2540
        %v2546 = vmul.f32 1.0, %v2545
        %v2547 = vrcp.pop %v1757
        %v2548 = vmul.f32 %v1757, %v2547
        %v2549 = vsub.f32 1.0, %v2548
        %v2550 = vmul.f32 %v2547, %v2549
        %v2551 = vadd.f32 %v2547, %v2550
        %vm2552 = vweird.f32 %v1757
        %vm2553 = vweird.f32 %v2547
        %vm2554 = vmor %vm2552, %vm2553
        %v2555 = vsel %vm2554, %v2547, %v2551
        %v2556 = vand.u32 2147483647, %v1757
        %vm2557 = vcmp.eq.f32.partialorder %v2556, 8.507059e+37
        %v2558 = vand.u32 %v1757, 2147483648
        %v2559 = vor.u32 1.1754944e-38, %v2558
        %v2560 = vsel %vm2557, %v2559, %v2555
        %v2561 = vmul.f32 1.0, %v2560
        %v2562 = vrcp.pop %v1758
        %v2563 = vmul.f32 %v1758, %v2562
        %v2564 = vsub.f32 1.0, %v2563
        %v2565 = vmul.f32 %v2562, %v2564
        %v2566 = vadd.f32 %v2562, %v2565
        %vm2567 = vweird.f32 %v1758
        %vm2568 = vweird.f32 %v2562
        %vm2569 = vmor %vm2567, %vm2568
        %v2570 = vsel %vm2569, %v2562, %v2566
        %v2571 = vand.u32 2147483647, %v1758
        %vm2572 = vcmp.eq.f32.partialorder %v2571, 8.507059e+37
        %v2573 = vand.u32 %v1758, 2147483648
        %v2574 = vor.u32 1.1754944e-38, %v2573
        %v2575 = vsel %vm2572, %v2574, %v2570
        %v2576 = vmul.f32 1.0, %v2575
        %v2577 = vrcp.pop %v1759
        %v2578 = vmul.f32 %v1759, %v2577
        %v2579 = vsub.f32 1.0, %v2578
        %v2580 = vmul.f32 %v2577, %v2579
        %v2581 = vadd.f32 %v2577, %v2580
        %vm2582 = vweird.f32 %v1759
        %vm2583 = vweird.f32 %v2577
        %vm2584 = vmor %vm2582, %vm2583
        %v2585 = vsel %vm2584, %v2577, %v2581
        %v2586 = vand.u32 2147483647, %v1759
        %vm2587 = vcmp.eq.f32.partialorder %v2586, 8.507059e+37
        %v2588 = vand.u32 %v1759, 2147483648
        %v2589 = vor.u32 1.1754944e-38, %v2588
        %v2590 = vsel %vm2587, %v2589, %v2585
        %v2591 = vmul.f32 1.0, %v2590
        %v2592 = vrcp.pop %v1760
        %v2593 = vmul.f32 %v1760, %v2592
        %v2594 = vsub.f32 1.0, %v2593
        %v2595 = vmul.f32 %v2592, %v2594
        %v2596 = vadd.f32 %v2592, %v2595
        %vm2597 = vweird.f32 %v1760
        %vm2598 = vweird.f32 %v2592
        %vm2599 = vmor %vm2597, %vm2598
        %v2600 = vsel %vm2599, %v2592, %v2596
        %v2601 = vand.u32 2147483647, %v1760
        %vm2602 = vcmp.eq.f32.partialorder %v2601, 8.507059e+37
        %v2603 = vand.u32 %v1760, 2147483648
        %v2604 = vor.u32 1.1754944e-38, %v2603
        %v2605 = vsel %vm2602, %v2604, %v2600
        %v2606 = vmul.f32 1.0, %v2605
        %v2607 = vrcp.pop %v1761
        %v2608 = vmul.f32 %v1761, %v2607
        %v2609 = vsub.f32 1.0, %v2608
        %v2610 = vmul.f32 %v2607, %v2609
        %v2611 = vadd.f32 %v2607, %v2610
        %vm2612 = vweird.f32 %v1761
        %vm2613 = vweird.f32 %v2607
        %vm2614 = vmor %vm2612, %vm2613
        %v2615 = vsel %vm2614, %v2607, %v2611
        %v2616 = vand.u32 2147483647, %v1761
        %vm2617 = vcmp.eq.f32.partialorder %v2616, 8.507059e+37
        %v2618 = vand.u32 %v1761, 2147483648
        %v2619 = vor.u32 1.1754944e-38, %v2618
        %v2620 = vsel %vm2617, %v2619, %v2615
        %v2621 = vmul.f32 1.0, %v2620
        %v2622 = vrcp.pop %v1762
        %v2623 = vmul.f32 %v1762, %v2622
        %v2624 = vsub.f32 1.0, %v2623
        %v2625 = vmul.f32 %v2622, %v2624
        %v2626 = vadd.f32 %v2622, %v2625
        %vm2627 = vweird.f32 %v1762
        %vm2628 = vweird.f32 %v2622
        %vm2629 = vmor %vm2627, %vm2628
        %v2630 = vsel %vm2629, %v2622, %v2626
        %v2631 = vand.u32 2147483647, %v1762
        %vm2632 = vcmp.eq.f32.partialorder %v2631, 8.507059e+37
        %v2633 = vand.u32 %v1762, 2147483648
        %v2634 = vor.u32 1.1754944e-38, %v2633
        %v2635 = vsel %vm2632, %v2634, %v2630
        %v2636 = vmul.f32 1.0, %v2635
        %v2637 = vrcp.pop %v1763
        %v2638 = vmul.f32 %v1763, %v2637
        %v2639 = vsub.f32 1.0, %v2638
        %v2640 = vmul.f32 %v2637, %v2639
        %v2641 = vadd.f32 %v2637, %v2640
        %vm2642 = vweird.f32 %v1763
        %vm2643 = vweird.f32 %v2637
        %vm2644 = vmor %vm2642, %vm2643
        %v2645 = vsel %vm2644, %v2637, %v2641
        %v2646 = vand.u32 2147483647, %v1763
        %vm2647 = vcmp.eq.f32.partialorder %v2646, 8.507059e+37
        %v2648 = vand.u32 %v1763, 2147483648
        %v2649 = vor.u32 1.1754944e-38, %v2648
        %v2650 = vsel %vm2647, %v2649, %v2645
        %v2651 = vmul.f32 1.0, %v2650
        %v2652 = vrcp.pop %v1764
        %v2653 = vmul.f32 %v1764, %v2652
        %v2654 = vsub.f32 1.0, %v2653
        %v2655 = vmul.f32 %v2652, %v2654
        %v2656 = vadd.f32 %v2652, %v2655
        %vm2657 = vweird.f32 %v1764
        %vm2658 = vweird.f32 %v2652
        %vm2659 = vmor %vm2657, %vm2658
        %v2660 = vsel %vm2659, %v2652, %v2656
        %v2661 = vand.u32 2147483647, %v1764
        %vm2662 = vcmp.eq.f32.partialorder %v2661, 8.507059e+37
        %v2663 = vand.u32 %v1764, 2147483648
        %v2664 = vor.u32 1.1754944e-38, %v2663
        %v2665 = vsel %vm2662, %v2664, %v2660
        %v2666 = vmul.f32 1.0, %v2665
        %v2667 = vrcp.pop %v1765
        %v2668 = vmul.f32 %v1765, %v2667
        %v2669 = vsub.f32 1.0, %v2668
        %v2670 = vmul.f32 %v2667, %v2669
        %v2671 = vadd.f32 %v2667, %v2670
        %vm2672 = vweird.f32 %v1765
        %vm2673 = vweird.f32 %v2667
        %vm2674 = vmor %vm2672, %vm2673
        %v2675 = vsel %vm2674, %v2667, %v2671
        %v2676 = vand.u32 2147483647, %v1765
        %vm2677 = vcmp.eq.f32.partialorder %v2676, 8.507059e+37
        %v2678 = vand.u32 %v1765, 2147483648
        %v2679 = vor.u32 1.1754944e-38, %v2678
        %v2680 = vsel %vm2677, %v2679, %v2675
        %v2681 = vmul.f32 1.0, %v2680
        %v2682 = vrcp.pop %v1766
        %v2683 = vmul.f32 %v1766, %v2682
        %v2684 = vsub.f32 1.0, %v2683
        %v2685 = vmul.f32 %v2682, %v2684
        %v2686 = vadd.f32 %v2682, %v2685
        %vm2687 = vweird.f32 %v1766
        %vm2688 = vweird.f32 %v2682
        %vm2689 = vmor %vm2687, %vm2688
        %v2690 = vsel %vm2689, %v2682, %v2686
        %v2691 = vand.u32 2147483647, %v1766
        %vm2692 = vcmp.eq.f32.partialorder %v2691, 8.507059e+37
        %v2693 = vand.u32 %v1766, 2147483648
        %v2694 = vor.u32 1.1754944e-38, %v2693
        %v2695 = vsel %vm2692, %v2694, %v2690
        %v2696 = vmul.f32 1.0, %v2695
        %v2697 = vrcp.pop %v1767
        %v2698 = vmul.f32 %v1767, %v2697
        %v2699 = vsub.f32 1.0, %v2698
        %v2700 = vmul.f32 %v2697, %v2699
        %v2701 = vadd.f32 %v2697, %v2700
        %vm2702 = vweird.f32 %v1767
        %vm2703 = vweird.f32 %v2697
        %vm2704 = vmor %vm2702, %vm2703
        %v2705 = vsel %vm2704, %v2697, %v2701
        %v2706 = vand.u32 2147483647, %v1767
        %vm2707 = vcmp.eq.f32.partialorder %v2706, 8.507059e+37
        %v2708 = vand.u32 %v1767, 2147483648
        %v2709 = vor.u32 1.1754944e-38, %v2708
        %v2710 = vsel %vm2707, %v2709, %v2705
        %v2711 = vmul.f32 1.0, %v2710
        %v2712 = vrcp.pop %v1768
        %v2713 = vmul.f32 %v1768, %v2712
        %v2714 = vsub.f32 1.0, %v2713
        %v2715 = vmul.f32 %v2712, %v2714
        %v2716 = vadd.f32 %v2712, %v2715
        %vm2717 = vweird.f32 %v1768
        %vm2718 = vweird.f32 %v2712
        %vm2719 = vmor %vm2717, %vm2718
        %v2720 = vsel %vm2719, %v2712, %v2716
        %v2721 = vand.u32 2147483647, %v1768
        %vm2722 = vcmp.eq.f32.partialorder %v2721, 8.507059e+37
        %v2723 = vand.u32 %v1768, 2147483648
        %v2724 = vor.u32 1.1754944e-38, %v2723
        %v2725 = vsel %vm2722, %v2724, %v2720
        %v2726 = vmul.f32 1.0, %v2725
        %v2727 = vrcp.pop %v1769
        %v2728 = vmul.f32 %v1769, %v2727
        %v2729 = vsub.f32 1.0, %v2728
        %v2730 = vmul.f32 %v2727, %v2729
        %v2731 = vadd.f32 %v2727, %v2730
        %vm2732 = vweird.f32 %v1769
        %vm2733 = vweird.f32 %v2727
        %vm2734 = vmor %vm2732, %vm2733
        %v2735 = vsel %vm2734, %v2727, %v2731
        %v2736 = vand.u32 2147483647, %v1769
        %vm2737 = vcmp.eq.f32.partialorder %v2736, 8.507059e+37
        %v2738 = vand.u32 %v1769, 2147483648
        %v2739 = vor.u32 1.1754944e-38, %v2738
        %v2740 = vsel %vm2737, %v2739, %v2735
        %v2741 = vmul.f32 1.0, %v2740
        %v2742 = vrcp.pop %v1770
        %v2743 = vmul.f32 %v1770, %v2742
        %v2744 = vsub.f32 1.0, %v2743
        %v2745 = vmul.f32 %v2742, %v2744
        %v2746 = vadd.f32 %v2742, %v2745
        %vm2747 = vweird.f32 %v1770
        %vm2748 = vweird.f32 %v2742
        %vm2749 = vmor %vm2747, %vm2748
        %v2750 = vsel %vm2749, %v2742, %v2746
        %v2751 = vand.u32 2147483647, %v1770
        %vm2752 = vcmp.eq.f32.partialorder %v2751, 8.507059e+37
        %v2753 = vand.u32 %v1770, 2147483648
        %v2754 = vor.u32 1.1754944e-38, %v2753
        %v2755 = vsel %vm2752, %v2754, %v2750
        %v2756 = vmul.f32 1.0, %v2755
        %v2757 = vrcp.pop %v1771
        %v2758 = vmul.f32 %v1771, %v2757
        %v2759 = vsub.f32 1.0, %v2758
        %v2760 = vmul.f32 %v2757, %v2759
        %v2761 = vadd.f32 %v2757, %v2760
        %vm2762 = vweird.f32 %v1771
        %vm2763 = vweird.f32 %v2757
        %vm2764 = vmor %vm2762, %vm2763
        %v2765 = vsel %vm2764, %v2757, %v2761
        %v2766 = vand.u32 2147483647, %v1771
        %vm2767 = vcmp.eq.f32.partialorder %v2766, 8.507059e+37
        %v2768 = vand.u32 %v1771, 2147483648
        %v2769 = vor.u32 1.1754944e-38, %v2768
        %v2770 = vsel %vm2767, %v2769, %v2765
        %v2771 = vmul.f32 1.0, %v2770
        %v2772 = vrcp.pop %v1772
        %v2773 = vmul.f32 %v1772, %v2772
        %v2774 = vsub.f32 1.0, %v2773
        %v2775 = vmul.f32 %v2772, %v2774
        %v2776 = vadd.f32 %v2772, %v2775
        %vm2777 = vweird.f32 %v1772
        %vm2778 = vweird.f32 %v2772
        %vm2779 = vmor %vm2777, %vm2778
        %v2780 = vsel %vm2779, %v2772, %v2776
        %v2781 = vand.u32 2147483647, %v1772
        %vm2782 = vcmp.eq.f32.partialorder %v2781, 8.507059e+37
        %v2783 = vand.u32 %v1772, 2147483648
        %v2784 = vor.u32 1.1754944e-38, %v2783
        %v2785 = vsel %vm2782, %v2784, %v2780
        %v2786 = vmul.f32 1.0, %v2785
        %v2787 = vrcp.pop %v1773
        %v2788 = vmul.f32 %v1773, %v2787
        %v2789 = vsub.f32 1.0, %v2788
        %v2790 = vmul.f32 %v2787, %v2789
        %v2791 = vadd.f32 %v2787, %v2790
        %vm2792 = vweird.f32 %v1773
        %vm2793 = vweird.f32 %v2787
        %vm2794 = vmor %vm2792, %vm2793
        %v2795 = vsel %vm2794, %v2787, %v2791
        %v2796 = vand.u32 2147483647, %v1773
        %vm2797 = vcmp.eq.f32.partialorder %v2796, 8.507059e+37
        %v2798 = vand.u32 %v1773, 2147483648
        %v2799 = vor.u32 1.1754944e-38, %v2798
        %v2800 = vsel %vm2797, %v2799, %v2795
        %v2801 = vmul.f32 1.0, %v2800
        %v2802 = vrcp.pop %v1774
        %v2803 = vmul.f32 %v1774, %v2802
        %v2804 = vsub.f32 1.0, %v2803
        %v2805 = vmul.f32 %v2802, %v2804
        %v2806 = vadd.f32 %v2802, %v2805
        %vm2807 = vweird.f32 %v1774
        %vm2808 = vweird.f32 %v2802
        %vm2809 = vmor %vm2807, %vm2808
        %v2810 = vsel %vm2809, %v2802, %v2806
        %v2811 = vand.u32 2147483647, %v1774
        %vm2812 = vcmp.eq.f32.partialorder %v2811, 8.507059e+37
        %v2813 = vand.u32 %v1774, 2147483648
        %v2814 = vor.u32 1.1754944e-38, %v2813
        %v2815 = vsel %vm2812, %v2814, %v2810
        %v2816 = vmul.f32 1.0, %v2815
        %v2817 = vrcp.pop %v1775
        %v2818 = vmul.f32 %v1775, %v2817
        %v2819 = vsub.f32 1.0, %v2818
        %v2820 = vmul.f32 %v2817, %v2819
        %v2821 = vadd.f32 %v2817, %v2820
        %vm2822 = vweird.f32 %v1775
        %vm2823 = vweird.f32 %v2817
        %vm2824 = vmor %vm2822, %vm2823
        %v2825 = vsel %vm2824, %v2817, %v2821
        %v2826 = vand.u32 2147483647, %v1775
        %vm2827 = vcmp.eq.f32.partialorder %v2826, 8.507059e+37
        %v2828 = vand.u32 %v1775, 2147483648
        %v2829 = vor.u32 1.1754944e-38, %v2828
        %v2830 = vsel %vm2827, %v2829, %v2825
        %v2831 = vmul.f32 1.0, %v2830
        %v2832 = vrcp.pop %v1776
        %v2833 = vmul.f32 %v1776, %v2832
        %v2834 = vsub.f32 1.0, %v2833
        %v2835 = vmul.f32 %v2832, %v2834
        %v2836 = vadd.f32 %v2832, %v2835
        %vm2837 = vweird.f32 %v1776
        %vm2838 = vweird.f32 %v2832
        %vm2839 = vmor %vm2837, %vm2838
        %v2840 = vsel %vm2839, %v2832, %v2836
        %v2841 = vand.u32 2147483647, %v1776
        %vm2842 = vcmp.eq.f32.partialorder %v2841, 8.507059e+37
        %v2843 = vand.u32 %v1776, 2147483648
        %v2844 = vor.u32 1.1754944e-38, %v2843
        %v2845 = vsel %vm2842, %v2844, %v2840
        %v2846 = vmul.f32 1.0, %v2845
        %v2847 = vrcp.pop %v1777
        %v2848 = vmul.f32 %v1777, %v2847
        %v2849 = vsub.f32 1.0, %v2848
        %v2850 = vmul.f32 %v2847, %v2849
        %v2851 = vadd.f32 %v2847, %v2850
        %vm2852 = vweird.f32 %v1777
        %vm2853 = vweird.f32 %v2847
        %vm2854 = vmor %vm2852, %vm2853
        %v2855 = vsel %vm2854, %v2847, %v2851
        %v2856 = vand.u32 2147483647, %v1777
        %vm2857 = vcmp.eq.f32.partialorder %v2856, 8.507059e+37
        %v2858 = vand.u32 %v1777, 2147483648
        %v2859 = vor.u32 1.1754944e-38, %v2858
        %v2860 = vsel %vm2857, %v2859, %v2855
        %v2861 = vmul.f32 1.0, %v2860
        %v2862 = vrcp.pop %v1778
        %v2863 = vmul.f32 %v1778, %v2862
        %v2864 = vsub.f32 1.0, %v2863
        %v2865 = vmul.f32 %v2862, %v2864
        %v2866 = vadd.f32 %v2862, %v2865
        %vm2867 = vweird.f32 %v1778
        %vm2868 = vweird.f32 %v2862
        %vm2869 = vmor %vm2867, %vm2868
        %v2870 = vsel %vm2869, %v2862, %v2866
        %v2871 = vand.u32 2147483647, %v1778
        %vm2872 = vcmp.eq.f32.partialorder %v2871, 8.507059e+37
        %v2873 = vand.u32 %v1778, 2147483648
        %v2874 = vor.u32 1.1754944e-38, %v2873
        %v2875 = vsel %vm2872, %v2874, %v2870
        %v2876 = vmul.f32 1.0, %v2875
        %v2877 = vrcp.pop %v1779
        %v2878 = vmul.f32 %v1779, %v2877
        %v2879 = vsub.f32 1.0, %v2878
        %v2880 = vmul.f32 %v2877, %v2879
        %v2881 = vadd.f32 %v2877, %v2880
        %vm2882 = vweird.f32 %v1779
        %vm2883 = vweird.f32 %v2877
        %vm2884 = vmor %vm2882, %vm2883
        %v2885 = vsel %vm2884, %v2877, %v2881
        %v2886 = vand.u32 2147483647, %v1779
        %vm2887 = vcmp.eq.f32.partialorder %v2886, 8.507059e+37
        %v2888 = vand.u32 %v1779, 2147483648
        %v2889 = vor.u32 1.1754944e-38, %v2888
        %v2890 = vsel %vm2887, %v2889, %v2885
        %v2891 = vmul.f32 1.0, %v2890
        %v2892 = vrcp.pop %v1780
        %v2893 = vmul.f32 %v1780, %v2892
        %v2894 = vsub.f32 1.0, %v2893
        %v2895 = vmul.f32 %v2892, %v2894
        %v2896 = vadd.f32 %v2892, %v2895
        %vm2897 = vweird.f32 %v1780
        %vm2898 = vweird.f32 %v2892
        %vm2899 = vmor %vm2897, %vm2898
        %v2900 = vsel %vm2899, %v2892, %v2896
        %v2901 = vand.u32 2147483647, %v1780
        %vm2902 = vcmp.eq.f32.partialorder %v2901, 8.507059e+37
        %v2903 = vand.u32 %v1780, 2147483648
        %v2904 = vor.u32 1.1754944e-38, %v2903
        %v2905 = vsel %vm2902, %v2904, %v2900
        %v2906 = vmul.f32 1.0, %v2905
        %v2907 = vrcp.pop %v1781
        %v2908 = vmul.f32 %v1781, %v2907
        %v2909 = vsub.f32 1.0, %v2908
        %v2910 = vmul.f32 %v2907, %v2909
        %v2911 = vadd.f32 %v2907, %v2910
        %vm2912 = vweird.f32 %v1781
        %vm2913 = vweird.f32 %v2907
        %vm2914 = vmor %vm2912, %vm2913
        %v2915 = vsel %vm2914, %v2907, %v2911
        %v2916 = vand.u32 2147483647, %v1781
        %vm2917 = vcmp.eq.f32.partialorder %v2916, 8.507059e+37
        %v2918 = vand.u32 %v1781, 2147483648
        %v2919 = vor.u32 1.1754944e-38, %v2918
        %v2920 = vsel %vm2917, %v2919, %v2915
        %v2921 = vmul.f32 1.0, %v2920
        %v2922 = vmul.f32 %v436, %v1796
        %v2923 = vmul.f32 %v437, %v1826
        %v2924 = vmul.f32 %v438, %v1856
        %v2925 = vmul.f32 %v439, %v1886
        %v2926 = vmul.f32 %v440, %v1916
        %v2927 = vmul.f32 %v441, %v1946
        %v2928 = vmul.f32 %v442, %v1976
        %v2929 = vmul.f32 %v443, %v2006
        %v2930 = vmul.f32 %v444, %v2036
        %v2931 = vmul.f32 %v445, %v2066
        %v2932 = vmul.f32 %v446, %v2096
        %v2933 = vmul.f32 %v447, %v2126
        %v2934 = vmul.f32 %v448, %v2156
        %v2935 = vmul.f32 %v449, %v2186
        %v2936 = vmul.f32 %v450, %v2216
        %v2937 = vmul.f32 %v451, %v2246
        %v2938 = vmul.f32 %v452, %v2276
        %v2939 = vmul.f32 %v453, %v2306
        %v2940 = vmul.f32 %v454, %v2336
        %v2941 = vmul.f32 %v455, %v2366
        %v2942 = vmul.f32 %v456, %v2396
        %v2943 = vmul.f32 %v457, %v2426
        %v2944 = vmul.f32 %v458, %v2456
        %v2945 = vmul.f32 %v459, %v2486
        %v2946 = vmul.f32 %v460, %v2516
        %v2947 = vmul.f32 %v461, %v2546
        %v2948 = vmul.f32 %v462, %v2576
        %v2949 = vmul.f32 %v463, %v2606
        %v2950 = vmul.f32 %v464, %v2636
        %v2951 = vmul.f32 %v465, %v2666
        %v2952 = vmul.f32 %v466, %v2696
        %v2953 = vmul.f32 %v467, %v2726
        %v2954 = vmul.f32 %v468, %v2756
        %v2955 = vmul.f32 %v469, %v2786
        %v2956 = vmul.f32 %v470, %v2816
        %v2957 = vmul.f32 %v471, %v2846
        %v2958 = vmul.f32 %v472, %v2876
        %v2959 = vmul.f32 %v473, %v2906
        %v2961 = vperm.slane %v588, 0
        %2963 = vmatpush.msra.mxu0 %v587
        %2964 = vmatpush.msra.mxu0 %v586
        %2965 = vmatpush.msra.mxu0 %v585
        %2966 = vmatpush.msra.mxu0 %v584
        %2967 = vmatpush.msra.mxu0 %v583
        %2968 = vmatpush.msra.mxu0 %v582
        %2969 = vmatpush.msra.mxu0 %v581
        %2970 = vmatpush.msra.mxu0 %v580
        %2971 = vmatpush.msra.mxu0 %v579
        %2972 = vmatpush.msra.mxu0 %v578
        %2973 = vmatpush.msra.mxu0 %v577
        %2974 = vmatpush.msra.mxu0 %v576
        %2975 = vmatpush.msra.mxu0 %v575
        %2976 = vmatpush.msra.mxu0 %v574
        %2977 = vmatpush.msra.mxu0 %v573
        %2978 = vmatpush.msra.mxu0 %v572
        %2979 = vmatmul.f32.gmra.mxu0 %v2922
        %v2980 = vpop.f32.mrf.mxu0
        %v2981 = vadd.f32 %v2961, %v2980
        %2982 = vmatmul.f32.gmra.mxu0 %v2923
        %v2983 = vpop.f32.mrf.mxu0
        %v2984 = vadd.f32 %v2961, %v2983
        %2985 = vmatmul.f32.gmra.mxu0 %v2924
        %v2986 = vpop.f32.mrf.mxu0
        %v2987 = vadd.f32 %v2961, %v2986
        %2988 = vmatmul.f32.gmra.mxu0 %v2925
        %v2989 = vpop.f32.mrf.mxu0
        %v2990 = vadd.f32 %v2961, %v2989
        %2991 = vmatmul.f32.gmra.mxu0 %v2926
        %v2992 = vpop.f32.mrf.mxu0
        %v2993 = vadd.f32 %v2961, %v2992
        %2994 = vmatmul.f32.gmra.mxu0 %v2927
        %v2995 = vpop.f32.mrf.mxu0
        %v2996 = vadd.f32 %v2961, %v2995
        %2997 = vmatmul.f32.gmra.mxu0 %v2928
        %v2998 = vpop.f32.mrf.mxu0
        %v2999 = vadd.f32 %v2961, %v2998
        %3000 = vmatmul.f32.gmra.mxu0 %v2929
        %v3001 = vpop.f32.mrf.mxu0
        %v3002 = vadd.f32 %v2961, %v3001
        %3003 = vmatmul.f32.gmra.mxu0 %v2930
        %v3004 = vpop.f32.mrf.mxu0
        %v3005 = vadd.f32 %v2961, %v3004
        %3006 = vmatmul.f32.gmra.mxu0 %v2931
        %v3007 = vpop.f32.mrf.mxu0
        %v3008 = vadd.f32 %v2961, %v3007
        %3009 = vmatmul.f32.gmra.mxu0 %v2932
        %v3010 = vpop.f32.mrf.mxu0
        %v3011 = vadd.f32 %v2961, %v3010
        %3012 = vmatmul.f32.gmra.mxu0 %v2933
        %v3013 = vpop.f32.mrf.mxu0
        %v3014 = vadd.f32 %v2961, %v3013
        %3015 = vmatmul.f32.gmra.mxu0 %v2934
        %v3016 = vpop.f32.mrf.mxu0
        %v3017 = vadd.f32 %v2961, %v3016
        %3018 = vmatmul.f32.gmra.mxu0 %v2935
        %v3019 = vpop.f32.mrf.mxu0
        %v3020 = vadd.f32 %v2961, %v3019
        %3021 = vmatmul.f32.gmra.mxu0 %v2936
        %v3022 = vpop.f32.mrf.mxu0
        %v3023 = vadd.f32 %v2961, %v3022
        %3024 = vmatmul.f32.gmra.mxu0 %v2937
        %v3025 = vpop.f32.mrf.mxu0
        %v3026 = vadd.f32 %v2961, %v3025
        %3027 = vmatmul.f32.gmra.mxu0 %v2938
        %v3028 = vpop.f32.mrf.mxu0
        %v3029 = vadd.f32 %v2961, %v3028
        %3030 = vmatmul.f32.gmra.mxu0 %v2939
        %v3031 = vpop.f32.mrf.mxu0
        %v3032 = vadd.f32 %v2961, %v3031
        %3033 = vmatmul.f32.gmra.mxu0 %v2940
        %v3034 = vpop.f32.mrf.mxu0
        %v3035 = vadd.f32 %v2961, %v3034
        %3036 = vmatmul.f32.gmra.mxu0 %v2941
        %v3037 = vpop.f32.mrf.mxu0
        %v3038 = vadd.f32 %v2961, %v3037
        %3039 = vmatmul.f32.gmra.mxu0 %v2942
        %v3040 = vpop.f32.mrf.mxu0
        %v3041 = vadd.f32 %v2961, %v3040
        %3042 = vmatmul.f32.gmra.mxu0 %v2943
        %v3043 = vpop.f32.mrf.mxu0
        %v3044 = vadd.f32 %v2961, %v3043
        %3045 = vmatmul.f32.gmra.mxu0 %v2944
        %v3046 = vpop.f32.mrf.mxu0
        %v3047 = vadd.f32 %v2961, %v3046
        %3048 = vmatmul.f32.gmra.mxu0 %v2945
        %v3049 = vpop.f32.mrf.mxu0
        %v3050 = vadd.f32 %v2961, %v3049
        %3051 = vmatmul.f32.gmra.mxu0 %v2946
        %v3052 = vpop.f32.mrf.mxu0
        %v3053 = vadd.f32 %v2961, %v3052
        %3054 = vmatmul.f32.gmra.mxu0 %v2947
        %v3055 = vpop.f32.mrf.mxu0
        %v3056 = vadd.f32 %v2961, %v3055
        %3057 = vmatmul.f32.gmra.mxu0 %v2948
        %v3058 = vpop.f32.mrf.mxu0
        %v3059 = vadd.f32 %v2961, %v3058
        %3060 = vmatmul.f32.gmra.mxu0 %v2949
        %v3061 = vpop.f32.mrf.mxu0
        %v3062 = vadd.f32 %v2961, %v3061
        %3063 = vmatmul.f32.gmra.mxu0 %v2950
        %v3064 = vpop.f32.mrf.mxu0
        %v3065 = vadd.f32 %v2961, %v3064
        %3066 = vmatmul.f32.gmra.mxu0 %v2951
        %v3067 = vpop.f32.mrf.mxu0
        %v3068 = vadd.f32 %v2961, %v3067
        %3069 = vmatmul.f32.gmra.mxu0 %v2952
        %v3070 = vpop.f32.mrf.mxu0
        %v3071 = vadd.f32 %v2961, %v3070
        %3072 = vmatmul.f32.gmra.mxu0 %v2953
        %v3073 = vpop.f32.mrf.mxu0
        %v3074 = vadd.f32 %v2961, %v3073
        %3075 = vmatmul.f32.gmra.mxu0 %v2954
        %v3076 = vpop.f32.mrf.mxu0
        %v3077 = vadd.f32 %v2961, %v3076
        %3078 = vmatmul.f32.gmra.mxu0 %v2955
        %v3079 = vpop.f32.mrf.mxu0
        %v3080 = vadd.f32 %v2961, %v3079
        %3081 = vmatmul.f32.gmra.mxu0 %v2956
        %v3082 = vpop.f32.mrf.mxu0
        %v3083 = vadd.f32 %v2961, %v3082
        %3084 = vmatmul.f32.gmra.mxu0 %v2957
        %v3085 = vpop.f32.mrf.mxu0
        %v3086 = vadd.f32 %v2961, %v3085
        %3087 = vmatmul.f32.gmra.mxu0 %v2958
        %v3088 = vpop.f32.mrf.mxu0
        %v3089 = vadd.f32 %v2961, %v3088
        %3090 = vmatmul.f32.gmra.mxu0 %v2959
        %v3091 = vpop.f32.mrf.mxu0
        %v3092 = vadd.f32 %v2961, %v3091
        %3093 = vdwg.mxu0
        %v3094 = vtanh.pop %v2981
        %v3095 = vtanh.pop %v2984
        %v3096 = vtanh.pop %v2987
        %v3097 = vtanh.pop %v2990
        %v3098 = vtanh.pop %v2993
        %v3099 = vtanh.pop %v2996
        %v3100 = vtanh.pop %v2999
        %v3101 = vtanh.pop %v3002
        %v3102 = vtanh.pop %v3005
        %v3103 = vtanh.pop %v3008
        %v3104 = vtanh.pop %v3011
        %v3105 = vtanh.pop %v3014
        %v3106 = vtanh.pop %v3017
        %v3107 = vtanh.pop %v3020
        %v3108 = vtanh.pop %v3023
        %v3109 = vtanh.pop %v3026
        %v3110 = vtanh.pop %v3029
        %v3111 = vtanh.pop %v3032
        %v3112 = vtanh.pop %v3035
        %v3113 = vtanh.pop %v3038
        %v3114 = vtanh.pop %v3041
        %v3115 = vtanh.pop %v3044
        %v3116 = vtanh.pop %v3047
        %v3117 = vtanh.pop %v3050
        %v3118 = vtanh.pop %v3053
        %v3119 = vtanh.pop %v3056
        %v3120 = vtanh.pop %v3059
        %v3121 = vtanh.pop %v3062
        %v3122 = vtanh.pop %v3065
        %v3123 = vtanh.pop %v3068
        %v3124 = vtanh.pop %v3071
        %v3125 = vtanh.pop %v3074
        %v3126 = vtanh.pop %v3077
        %v3127 = vtanh.pop %v3080
        %v3128 = vtanh.pop %v3083
        %v3129 = vtanh.pop %v3086
        %v3130 = vtanh.pop %v3089
        %v3131 = vtanh.pop %v3092
        %v3133 = vperm.slane %v605, 0
        %3135 = vmatpush.msra.mxu0 %v604
        %3136 = vmatpush.msra.mxu0 %v603
        %3137 = vmatpush.msra.mxu0 %v602
        %3138 = vmatpush.msra.mxu0 %v601
        %3139 = vmatpush.msra.mxu0 %v600
        %3140 = vmatpush.msra.mxu0 %v599
        %3141 = vmatpush.msra.mxu0 %v598
        %3142 = vmatpush.msra.mxu0 %v597
        %3143 = vmatpush.msra.mxu0 %v596
        %3144 = vmatpush.msra.mxu0 %v595
        %3145 = vmatpush.msra.mxu0 %v594
        %3146 = vmatpush.msra.mxu0 %v593
        %3147 = vmatpush.msra.mxu0 %v592
        %3148 = vmatpush.msra.mxu0 %v591
        %3149 = vmatpush.msra.mxu0 %v590
        %3150 = vmatpush.msra.mxu0 %v589
        %3151 = vmatmul.f32.gmra.mxu0 %v3094
        %v3152 = vpop.f32.mrf.mxu0
        %v3153 = vadd.f32 %v3133, %v3152
        %3154 = vmatmul.f32.gmra.mxu0 %v3095
        %v3155 = vpop.f32.mrf.mxu0
        %v3156 = vadd.f32 %v3133, %v3155
        %3157 = vmatmul.f32.gmra.mxu0 %v3096
        %v3158 = vpop.f32.mrf.mxu0
        %v3159 = vadd.f32 %v3133, %v3158
        %3160 = vmatmul.f32.gmra.mxu0 %v3097
        %v3161 = vpop.f32.mrf.mxu0
        %v3162 = vadd.f32 %v3133, %v3161
        %3163 = vmatmul.f32.gmra.mxu0 %v3098
        %v3164 = vpop.f32.mrf.mxu0
        %v3165 = vadd.f32 %v3133, %v3164
        %3166 = vmatmul.f32.gmra.mxu0 %v3099
        %v3167 = vpop.f32.mrf.mxu0
        %v3168 = vadd.f32 %v3133, %v3167
        %3169 = vmatmul.f32.gmra.mxu0 %v3100
        %v3170 = vpop.f32.mrf.mxu0
        %v3171 = vadd.f32 %v3133, %v3170
        %3172 = vmatmul.f32.gmra.mxu0 %v3101
        %v3173 = vpop.f32.mrf.mxu0
        %v3174 = vadd.f32 %v3133, %v3173
        %3175 = vmatmul.f32.gmra.mxu0 %v3102
        %v3176 = vpop.f32.mrf.mxu0
        %v3177 = vadd.f32 %v3133, %v3176
        %3178 = vmatmul.f32.gmra.mxu0 %v3103
        %v3179 = vpop.f32.mrf.mxu0
        %v3180 = vadd.f32 %v3133, %v3179
        %3181 = vmatmul.f32.gmra.mxu0 %v3104
        %v3182 = vpop.f32.mrf.mxu0
        %v3183 = vadd.f32 %v3133, %v3182
        %3184 = vmatmul.f32.gmra.mxu0 %v3105
        %v3185 = vpop.f32.mrf.mxu0
        %v3186 = vadd.f32 %v3133, %v3185
        %3187 = vmatmul.f32.gmra.mxu0 %v3106
        %v3188 = vpop.f32.mrf.mxu0
        %v3189 = vadd.f32 %v3133, %v3188
        %3190 = vmatmul.f32.gmra.mxu0 %v3107
        %v3191 = vpop.f32.mrf.mxu0
        %v3192 = vadd.f32 %v3133, %v3191
        %3193 = vmatmul.f32.gmra.mxu0 %v3108
        %v3194 = vpop.f32.mrf.mxu0
        %v3195 = vadd.f32 %v3133, %v3194
        %3196 = vmatmul.f32.gmra.mxu0 %v3109
        %v3197 = vpop.f32.mrf.mxu0
        %v3198 = vadd.f32 %v3133, %v3197
        %3199 = vmatmul.f32.gmra.mxu0 %v3110
        %v3200 = vpop.f32.mrf.mxu0
        %v3201 = vadd.f32 %v3133, %v3200
        %3202 = vmatmul.f32.gmra.mxu0 %v3111
        %v3203 = vpop.f32.mrf.mxu0
        %v3204 = vadd.f32 %v3133, %v3203
        %3205 = vmatmul.f32.gmra.mxu0 %v3112
        %v3206 = vpop.f32.mrf.mxu0
        %v3207 = vadd.f32 %v3133, %v3206
        %3208 = vmatmul.f32.gmra.mxu0 %v3113
        %v3209 = vpop.f32.mrf.mxu0
        %v3210 = vadd.f32 %v3133, %v3209
        %3211 = vmatmul.f32.gmra.mxu0 %v3114
        %v3212 = vpop.f32.mrf.mxu0
        %v3213 = vadd.f32 %v3133, %v3212
        %3214 = vmatmul.f32.gmra.mxu0 %v3115
        %v3215 = vpop.f32.mrf.mxu0
        %v3216 = vadd.f32 %v3133, %v3215
        %3217 = vmatmul.f32.gmra.mxu0 %v3116
        %v3218 = vpop.f32.mrf.mxu0
        %v3219 = vadd.f32 %v3133, %v3218
        %3220 = vmatmul.f32.gmra.mxu0 %v3117
        %v3221 = vpop.f32.mrf.mxu0
        %v3222 = vadd.f32 %v3133, %v3221
        %3223 = vmatmul.f32.gmra.mxu0 %v3118
        %v3224 = vpop.f32.mrf.mxu0
        %v3225 = vadd.f32 %v3133, %v3224
        %3226 = vmatmul.f32.gmra.mxu0 %v3119
        %v3227 = vpop.f32.mrf.mxu0
        %v3228 = vadd.f32 %v3133, %v3227
        %3229 = vmatmul.f32.gmra.mxu0 %v3120
        %v3230 = vpop.f32.mrf.mxu0
        %v3231 = vadd.f32 %v3133, %v3230
        %3232 = vmatmul.f32.gmra.mxu0 %v3121
        %v3233 = vpop.f32.mrf.mxu0
        %v3234 = vadd.f32 %v3133, %v3233
        %3235 = vmatmul.f32.gmra.mxu0 %v3122
        %v3236 = vpop.f32.mrf.mxu0
        %v3237 = vadd.f32 %v3133, %v3236
        %3238 = vmatmul.f32.gmra.mxu0 %v3123
        %v3239 = vpop.f32.mrf.mxu0
        %v3240 = vadd.f32 %v3133, %v3239
        %3241 = vmatmul.f32.gmra.mxu0 %v3124
        %v3242 = vpop.f32.mrf.mxu0
        %v3243 = vadd.f32 %v3133, %v3242
        %3244 = vmatmul.f32.gmra.mxu0 %v3125
        %v3245 = vpop.f32.mrf.mxu0
        %v3246 = vadd.f32 %v3133, %v3245
        %3247 = vmatmul.f32.gmra.mxu0 %v3126
        %v3248 = vpop.f32.mrf.mxu0
        %v3249 = vadd.f32 %v3133, %v3248
        %3250 = vmatmul.f32.gmra.mxu0 %v3127
        %v3251 = vpop.f32.mrf.mxu0
        %v3252 = vadd.f32 %v3133, %v3251
        %3253 = vmatmul.f32.gmra.mxu0 %v3128
        %v3254 = vpop.f32.mrf.mxu0
        %v3255 = vadd.f32 %v3133, %v3254
        %3256 = vmatmul.f32.gmra.mxu0 %v3129
        %v3257 = vpop.f32.mrf.mxu0
        %v3258 = vadd.f32 %v3133, %v3257
        %3259 = vmatmul.f32.gmra.mxu0 %v3130
        %v3260 = vpop.f32.mrf.mxu0
        %v3261 = vadd.f32 %v3133, %v3260
        %3262 = vmatmul.f32.gmra.mxu0 %v3131
        %v3263 = vpop.f32.mrf.mxu0
        %v3264 = vadd.f32 %v3133, %v3263
        %3265 = vdwg.mxu0
        %v3266 = vlaneseq
        %v3267 = vand.u32 %v3266, 127
        %vm3268 = vcmp.ge.s32.totalorder %v3267, 32
        %vm3269 = vcmp.lt.s32.totalorder %v3267, 64
        %vm3270 = vmand %vm3268, %vm3269
        %v3271 = vand.u32 2147483647, %v3153
        %v3272 = vand.u32 2147483647, %v3156
        %v3273 = vand.u32 2147483647, %v3159
        %v3274 = vand.u32 2147483647, %v3162
        %v3275 = vand.u32 2147483647, %v3165
        %v3276 = vand.u32 2147483647, %v3168
        %v3277 = vand.u32 2147483647, %v3171
        %v3278 = vand.u32 2147483647, %v3174
        %v3279 = vand.u32 2147483647, %v3177
        %v3280 = vand.u32 2147483647, %v3180
        %v3281 = vand.u32 2147483647, %v3183
        %v3282 = vand.u32 2147483647, %v3186
        %v3283 = vand.u32 2147483647, %v3189
        %v3284 = vand.u32 2147483647, %v3192
        %v3285 = vand.u32 2147483647, %v3195
        %v3286 = vand.u32 2147483647, %v3198
        %v3287 = vand.u32 2147483647, %v3201
        %v3288 = vand.u32 2147483647, %v3204
        %v3289 = vand.u32 2147483647, %v3207
        %v3290 = vand.u32 2147483647, %v3210
        %v3291 = vand.u32 2147483647, %v3213
        %v3292 = vand.u32 2147483647, %v3216
        %v3293 = vand.u32 2147483647, %v3219
        %v3294 = vand.u32 2147483647, %v3222
        %v3295 = vand.u32 2147483647, %v3225
        %v3296 = vand.u32 2147483647, %v3228
        %v3297 = vand.u32 2147483647, %v3231
        %v3298 = vand.u32 2147483647, %v3234
        %v3299 = vand.u32 2147483647, %v3237
        %v3300 = vand.u32 2147483647, %v3240
        %v3301 = vand.u32 2147483647, %v3243
        %v3302 = vand.u32 2147483647, %v3246
        %v3303 = vand.u32 2147483647, %v3249
        %v3304 = vand.u32 2147483647, %v3252
        %v3305 = vand.u32 2147483647, %v3255
        %v3306 = vand.u32 2147483647, %v3258
        %v3307 = vand.u32 2147483647, %v3261
        %v3308 = vand.u32 2147483647, %v3264
        %v3309 = vsel %vm3270, %v3271, %v3153
        %v3310 = vsel %vm3270, %v3272, %v3156
        %v3311 = vsel %vm3270, %v3273, %v3159
        %v3312 = vsel %vm3270, %v3274, %v3162
        %v3313 = vsel %vm3270, %v3275, %v3165
        %v3314 = vsel %vm3270, %v3276, %v3168
        %v3315 = vsel %vm3270, %v3277, %v3171
        %v3316 = vsel %vm3270, %v3278, %v3174
        %v3317 = vsel %vm3270, %v3279, %v3177
        %v3318 = vsel %vm3270, %v3280, %v3180
        %v3319 = vsel %vm3270, %v3281, %v3183
        %v3320 = vsel %vm3270, %v3282, %v3186
        %v3321 = vsel %vm3270, %v3283, %v3189
        %v3322 = vsel %vm3270, %v3284, %v3192
        %v3323 = vsel %vm3270, %v3285, %v3195
        %v3324 = vsel %vm3270, %v3286, %v3198
        %v3325 = vsel %vm3270, %v3287, %v3201
        %v3326 = vsel %vm3270, %v3288, %v3204
        %v3327 = vsel %vm3270, %v3289, %v3207
        %v3328 = vsel %vm3270, %v3290, %v3210
        %v3329 = vsel %vm3270, %v3291, %v3213
        %v3330 = vsel %vm3270, %v3292, %v3216
        %v3331 = vsel %vm3270, %v3293, %v3219
        %v3332 = vsel %vm3270, %v3294, %v3222
        %v3333 = vsel %vm3270, %v3295, %v3225
        %v3334 = vsel %vm3270, %v3296, %v3228
        %v3335 = vsel %vm3270, %v3297, %v3231
        %v3336 = vsel %vm3270, %v3298, %v3234
        %v3337 = vsel %vm3270, %v3299, %v3237
        %v3338 = vsel %vm3270, %v3300, %v3240
        %v3339 = vsel %vm3270, %v3301, %v3243
        %v3340 = vsel %vm3270, %v3302, %v3246
        %v3341 = vsel %vm3270, %v3303, %v3249
        %v3342 = vsel %vm3270, %v3304, %v3252
        %v3343 = vsel %vm3270, %v3305, %v3255
        %v3344 = vsel %vm3270, %v3306, %v3258
        %v3345 = vsel %vm3270, %v3307, %v3261
        %v3346 = vsel %vm3270, %v3308, %v3264
        %v3347 = vsub.f32 1.0, %v1811
        %v3348 = vsub.f32 1.0, %v1841
        %v3349 = vsub.f32 1.0, %v1871
        %v3350 = vsub.f32 1.0, %v1901
        %v3351 = vsub.f32 1.0, %v1931
        %v3352 = vsub.f32 1.0, %v1961
        %v3353 = vsub.f32 1.0, %v1991
        %v3354 = vsub.f32 1.0, %v2021
        %v3355 = vsub.f32 1.0, %v2051
        %v3356 = vsub.f32 1.0, %v2081
        %v3357 = vsub.f32 1.0, %v2111
        %v3358 = vsub.f32 1.0, %v2141
        %v3359 = vsub.f32 1.0, %v2171
        %v3360 = vsub.f32 1.0, %v2201
        %v3361 = vsub.f32 1.0, %v2231
        %v3362 = vsub.f32 1.0, %v2261
        %v3363 = vsub.f32 1.0, %v2291
        %v3364 = vsub.f32 1.0, %v2321
        %v3365 = vsub.f32 1.0, %v2351
        %v3366 = vsub.f32 1.0, %v2381
        %v3367 = vsub.f32 1.0, %v2411
        %v3368 = vsub.f32 1.0, %v2441
        %v3369 = vsub.f32 1.0, %v2471
        %v3370 = vsub.f32 1.0, %v2501
        %v3371 = vsub.f32 1.0, %v2531
        %v3372 = vsub.f32 1.0, %v2561
        %v3373 = vsub.f32 1.0, %v2591
        %v3374 = vsub.f32 1.0, %v2621
        %v3375 = vsub.f32 1.0, %v2651
        %v3376 = vsub.f32 1.0, %v2681
        %v3377 = vsub.f32 1.0, %v2711
        %v3378 = vsub.f32 1.0, %v2741
        %v3379 = vsub.f32 1.0, %v2771
        %v3380 = vsub.f32 1.0, %v2801
        %v3381 = vsub.f32 1.0, %v2831
        %v3382 = vsub.f32 1.0, %v2861
        %v3383 = vsub.f32 1.0, %v2891
        %v3384 = vsub.f32 1.0, %v2921
        %v3385 = vmul.f32 %v3347, %v3309
        %v3386 = vmul.f32 %v3348, %v3310
        %v3387 = vmul.f32 %v3349, %v3311
        %v3388 = vmul.f32 %v3350, %v3312
        %v3389 = vmul.f32 %v3351, %v3313
        %v3390 = vmul.f32 %v3352, %v3314
        %v3391 = vmul.f32 %v3353, %v3315
        %v3392 = vmul.f32 %v3354, %v3316
        %v3393 = vmul.f32 %v3355, %v3317
        %v3394 = vmul.f32 %v3356, %v3318
        %v3395 = vmul.f32 %v3357, %v3319
        %v3396 = vmul.f32 %v3358, %v3320
        %v3397 = vmul.f32 %v3359, %v3321
        %v3398 = vmul.f32 %v3360, %v3322
        %v3399 = vmul.f32 %v3361, %v3323
        %v3400 = vmul.f32 %v3362, %v3324
        %v3401 = vmul.f32 %v3363, %v3325
        %v3402 = vmul.f32 %v3364, %v3326
        %v3403 = vmul.f32 %v3365, %v3327
        %v3404 = vmul.f32 %v3366, %v3328
        %v3405 = vmul.f32 %v3367, %v3329
        %v3406 = vmul.f32 %v3368, %v3330
        %v3407 = vmul.f32 %v3369, %v3331
        %v3408 = vmul.f32 %v3370, %v3332
        %v3409 = vmul.f32 %v3371, %v3333
        %v3410 = vmul.f32 %v3372, %v3334
        %v3411 = vmul.f32 %v3373, %v3335
        %v3412 = vmul.f32 %v3374, %v3336
        %v3413 = vmul.f32 %v3375, %v3337
        %v3414 = vmul.f32 %v3376, %v3338
        %v3415 = vmul.f32 %v3377, %v3339
        %v3416 = vmul.f32 %v3378, %v3340
        %v3417 = vmul.f32 %v3379, %v3341
        %v3418 = vmul.f32 %v3380, %v3342
        %v3419 = vmul.f32 %v3381, %v3343
        %v3420 = vmul.f32 %v3382, %v3344
        %v3421 = vmul.f32 %v3383, %v3345
        %v3422 = vmul.f32 %v3384, %v3346
        %v3423 = vmul.f32 %v1811, %v436
        %v3424 = vmul.f32 %v1841, %v437
        %v3425 = vmul.f32 %v1871, %v438
        %v3426 = vmul.f32 %v1901, %v439
        %v3427 = vmul.f32 %v1931, %v440
        %v3428 = vmul.f32 %v1961, %v441
        %v3429 = vmul.f32 %v1991, %v442
        %v3430 = vmul.f32 %v2021, %v443
        %v3431 = vmul.f32 %v2051, %v444
        %v3432 = vmul.f32 %v2081, %v445
        %v3433 = vmul.f32 %v2111, %v446
        %v3434 = vmul.f32 %v2141, %v447
        %v3435 = vmul.f32 %v2171, %v448
        %v3436 = vmul.f32 %v2201, %v449
        %v3437 = vmul.f32 %v2231, %v450
        %v3438 = vmul.f32 %v2261, %v451
        %v3439 = vmul.f32 %v2291, %v452
        %v3440 = vmul.f32 %v2321, %v453
        %v3441 = vmul.f32 %v2351, %v454
        %v3442 = vmul.f32 %v2381, %v455
        %v3443 = vmul.f32 %v2411, %v456
        %v3444 = vmul.f32 %v2441, %v457
        %v3445 = vmul.f32 %v2471, %v458
        %v3446 = vmul.f32 %v2501, %v459
        %v3447 = vmul.f32 %v2531, %v460
        %v3448 = vmul.f32 %v2561, %v461
        %v3449 = vmul.f32 %v2591, %v462
        %v3450 = vmul.f32 %v2621, %v463
        %v3451 = vmul.f32 %v2651, %v464
        %v3452 = vmul.f32 %v2681, %v465
        %v3453 = vmul.f32 %v2711, %v466
        %v3454 = vmul.f32 %v2741, %v467
        %v3455 = vmul.f32 %v2771, %v468
        %v3456 = vmul.f32 %v2801, %v469
        %v3457 = vmul.f32 %v2831, %v470
        %v3458 = vmul.f32 %v2861, %v471
        %v3459 = vmul.f32 %v2891, %v472
        %v3460 = vmul.f32 %v2921, %v473
        %v3461 = vadd.f32 %v3385, %v3423
        %v3462 = vadd.f32 %v3386, %v3424
        %v3463 = vadd.f32 %v3387, %v3425
        %v3464 = vadd.f32 %v3388, %v3426
        %v3465 = vadd.f32 %v3389, %v3427
        %v3466 = vadd.f32 %v3390, %v3428
        %v3467 = vadd.f32 %v3391, %v3429
        %v3468 = vadd.f32 %v3392, %v3430
        %v3469 = vadd.f32 %v3393, %v3431
        %v3470 = vadd.f32 %v3394, %v3432
        %v3471 = vadd.f32 %v3395, %v3433
        %v3472 = vadd.f32 %v3396, %v3434
        %v3473 = vadd.f32 %v3397, %v3435
        %v3474 = vadd.f32 %v3398, %v3436
        %v3475 = vadd.f32 %v3399, %v3437
        %v3476 = vadd.f32 %v3400, %v3438
        %v3477 = vadd.f32 %v3401, %v3439
        %v3478 = vadd.f32 %v3402, %v3440
        %v3479 = vadd.f32 %v3403, %v3441
        %v3480 = vadd.f32 %v3404, %v3442
        %v3481 = vadd.f32 %v3405, %v3443
        %v3482 = vadd.f32 %v3406, %v3444
        %v3483 = vadd.f32 %v3407, %v3445
        %v3484 = vadd.f32 %v3408, %v3446
        %v3485 = vadd.f32 %v3409, %v3447
        %v3486 = vadd.f32 %v3410, %v3448
        %v3487 = vadd.f32 %v3411, %v3449
        %v3488 = vadd.f32 %v3412, %v3450
        %v3489 = vadd.f32 %v3413, %v3451
        %v3490 = vadd.f32 %v3414, %v3452
        %v3491 = vadd.f32 %v3415, %v3453
        %v3492 = vadd.f32 %v3416, %v3454
        %v3493 = vadd.f32 %v3417, %v3455
        %v3494 = vadd.f32 %v3418, %v3456
        %v3495 = vadd.f32 %v3419, %v3457
        %v3496 = vadd.f32 %v3420, %v3458
        %v3497 = vadd.f32 %v3421, %v3459
        %v3498 = vadd.f32 %v3422, %v3460
        %vm3499 = vcmp.ge.s32.totalorder %v3267, 72
        %vm3500 = vcmp.lt.s32.totalorder %v3267, 80
        %vm3501 = vmand %vm3499, %vm3500
        %v3502 = vsel %vm3501, %v436, 0.0
        %v3503 = vsel %vm3501, %v437, 0.0
        %v3504 = vsel %vm3501, %v438, 0.0
        %v3505 = vsel %vm3501, %v439, 0.0
        %v3506 = vsel %vm3501, %v440, 0.0
        %v3507 = vsel %vm3501, %v441, 0.0
        %v3508 = vsel %vm3501, %v442, 0.0
        %v3509 = vsel %vm3501, %v443, 0.0
        %v3510 = vsel %vm3501, %v444, 0.0
        %v3511 = vsel %vm3501, %v445, 0.0
        %v3512 = vsel %vm3501, %v446, 0.0
        %v3513 = vsel %vm3501, %v447, 0.0
        %v3514 = vsel %vm3501, %v448, 0.0
        %v3515 = vsel %vm3501, %v449, 0.0
        %v3516 = vsel %vm3501, %v450, 0.0
        %v3517 = vsel %vm3501, %v451, 0.0
        %v3518 = vsel %vm3501, %v452, 0.0
        %v3519 = vsel %vm3501, %v453, 0.0
        %v3520 = vsel %vm3501, %v454, 0.0
        %v3521 = vsel %vm3501, %v455, 0.0
        %v3522 = vsel %vm3501, %v456, 0.0
        %v3523 = vsel %vm3501, %v457, 0.0
        %v3524 = vsel %vm3501, %v458, 0.0
        %v3525 = vsel %vm3501, %v459, 0.0
        %v3526 = vsel %vm3501, %v460, 0.0
        %v3527 = vsel %vm3501, %v461, 0.0
        %v3528 = vsel %vm3501, %v462, 0.0
        %v3529 = vsel %vm3501, %v463, 0.0
        %v3530 = vsel %vm3501, %v464, 0.0
        %v3531 = vsel %vm3501, %v465, 0.0
        %v3532 = vsel %vm3501, %v466, 0.0
        %v3533 = vsel %vm3501, %v467, 0.0
        %v3534 = vsel %vm3501, %v468, 0.0
        %v3535 = vsel %vm3501, %v469, 0.0
        %v3536 = vsel %vm3501, %v470, 0.0
        %v3537 = vsel %vm3501, %v471, 0.0
        %v3538 = vsel %vm3501, %v472, 0.0
        %v3539 = vsel %vm3501, %v473, 0.0
        %3540 = vadd.xlane.f32.xlu0 %v3502
        %v3541 = vpop.xlane.xlu0 %3540
        %3542 = vadd.xlane.f32.xlu0 %v3503
        %v3543 = vpop.xlane.xlu0 %3542
        %3544 = vadd.xlane.f32.xlu0 %v3504
        %v3545 = vpop.xlane.xlu0 %3544
        %3546 = vadd.xlane.f32.xlu0 %v3505
        %v3547 = vpop.xlane.xlu0 %3546
        %3548 = vadd.xlane.f32.xlu0 %v3506
        %v3549 = vpop.xlane.xlu0 %3548
        %3550 = vadd.xlane.f32.xlu0 %v3507
        %v3551 = vpop.xlane.xlu0 %3550
        %3552 = vadd.xlane.f32.xlu0 %v3508
        %v3553 = vpop.xlane.xlu0 %3552
        %3554 = vadd.xlane.f32.xlu0 %v3509
        %v3555 = vpop.xlane.xlu0 %3554
        %3556 = vadd.xlane.f32.xlu0 %v3510
        %v3557 = vpop.xlane.xlu0 %3556
        %3558 = vadd.xlane.f32.xlu0 %v3511
        %v3559 = vpop.xlane.xlu0 %3558
        %3560 = vadd.xlane.f32.xlu0 %v3512
        %v3561 = vpop.xlane.xlu0 %3560
        %3562 = vadd.xlane.f32.xlu0 %v3513
        %v3563 = vpop.xlane.xlu0 %3562
        %3564 = vadd.xlane.f32.xlu0 %v3514
        %v3565 = vpop.xlane.xlu0 %3564
        %3566 = vadd.xlane.f32.xlu0 %v3515
        %v3567 = vpop.xlane.xlu0 %3566
        %3568 = vadd.xlane.f32.xlu0 %v3516
        %v3569 = vpop.xlane.xlu0 %3568
        %3570 = vadd.xlane.f32.xlu0 %v3517
        %v3571 = vpop.xlane.xlu0 %3570
        %3572 = vadd.xlane.f32.xlu0 %v3518
        %v3573 = vpop.xlane.xlu0 %3572
        %3574 = vadd.xlane.f32.xlu0 %v3519
        %v3575 = vpop.xlane.xlu0 %3574
        %3576 = vadd.xlane.f32.xlu0 %v3520
        %v3577 = vpop.xlane.xlu0 %3576
        %3578 = vadd.xlane.f32.xlu0 %v3521
        %v3579 = vpop.xlane.xlu0 %3578
        %3580 = vadd.xlane.f32.xlu0 %v3522
        %v3581 = vpop.xlane.xlu0 %3580
        %3582 = vadd.xlane.f32.xlu0 %v3523
        %v3583 = vpop.xlane.xlu0 %3582
        %3584 = vadd.xlane.f32.xlu0 %v3524
        %v3585 = vpop.xlane.xlu0 %3584
        %3586 = vadd.xlane.f32.xlu0 %v3525
        %v3587 = vpop.xlane.xlu0 %3586
        %3588 = vadd.xlane.f32.xlu0 %v3526
        %v3589 = vpop.xlane.xlu0 %3588
        %3590 = vadd.xlane.f32.xlu0 %v3527
        %v3591 = vpop.xlane.xlu0 %3590
        %3592 = vadd.xlane.f32.xlu0 %v3528
        %v3593 = vpop.xlane.xlu0 %3592
        %3594 = vadd.xlane.f32.xlu0 %v3529
        %v3595 = vpop.xlane.xlu0 %3594
        %3596 = vadd.xlane.f32.xlu0 %v3530
        %v3597 = vpop.xlane.xlu0 %3596
        %3598 = vadd.xlane.f32.xlu0 %v3531
        %v3599 = vpop.xlane.xlu0 %3598
        %3600 = vadd.xlane.f32.xlu0 %v3532
        %v3601 = vpop.xlane.xlu0 %3600
        %3602 = vadd.xlane.f32.xlu0 %v3533
        %v3603 = vpop.xlane.xlu0 %3602
        %3604 = vadd.xlane.f32.xlu0 %v3534
        %v3605 = vpop.xlane.xlu0 %3604
        %3606 = vadd.xlane.f32.xlu0 %v3535
        %v3607 = vpop.xlane.xlu0 %3606
        %3608 = vadd.xlane.f32.xlu0 %v3536
        %v3609 = vpop.xlane.xlu0 %3608
        %3610 = vadd.xlane.f32.xlu0 %v3537
        %v3611 = vpop.xlane.xlu0 %3610
        %3612 = vadd.xlane.f32.xlu0 %v3538
        %v3613 = vpop.xlane.xlu0 %3612
        %3614 = vadd.xlane.f32.xlu0 %v3539
        %v3615 = vpop.xlane.xlu0 %3614
        %vm3616 = vcmp.gt.f32.partialorder %v3541, 0.0
        %vm3617 = vcmp.gt.f32.partialorder %v3543, 0.0
        %vm3618 = vcmp.gt.f32.partialorder %v3545, 0.0
        %vm3619 = vcmp.gt.f32.partialorder %v3547, 0.0
        %vm3620 = vcmp.gt.f32.partialorder %v3549, 0.0
        %vm3621 = vcmp.gt.f32.partialorder %v3551, 0.0
        %vm3622 = vcmp.gt.f32.partialorder %v3553, 0.0
        %vm3623 = vcmp.gt.f32.partialorder %v3555, 0.0
        %vm3624 = vcmp.gt.f32.partialorder %v3557, 0.0
        %vm3625 = vcmp.gt.f32.partialorder %v3559, 0.0
        %vm3626 = vcmp.gt.f32.partialorder %v3561, 0.0
        %vm3627 = vcmp.gt.f32.partialorder %v3563, 0.0
        %vm3628 = vcmp.gt.f32.partialorder %v3565, 0.0
        %vm3629 = vcmp.gt.f32.partialorder %v3567, 0.0
        %vm3630 = vcmp.gt.f32.partialorder %v3569, 0.0
        %vm3631 = vcmp.gt.f32.partialorder %v3571, 0.0
        %vm3632 = vcmp.gt.f32.partialorder %v3573, 0.0
        %vm3633 = vcmp.gt.f32.partialorder %v3575, 0.0
        %vm3634 = vcmp.gt.f32.partialorder %v3577, 0.0
        %vm3635 = vcmp.gt.f32.partialorder %v3579, 0.0
        %vm3636 = vcmp.gt.f32.partialorder %v3581, 0.0
        %vm3637 = vcmp.gt.f32.partialorder %v3583, 0.0
        %vm3638 = vcmp.gt.f32.partialorder %v3585, 0.0
        %vm3639 = vcmp.gt.f32.partialorder %v3587, 0.0
        %vm3640 = vcmp.gt.f32.partialorder %v3589, 0.0
        %vm3641 = vcmp.gt.f32.partialorder %v3591, 0.0
        %vm3642 = vcmp.gt.f32.partialorder %v3593, 0.0
        %vm3643 = vcmp.gt.f32.partialorder %v3595, 0.0
        %vm3644 = vcmp.gt.f32.partialorder %v3597, 0.0
        %vm3645 = vcmp.gt.f32.partialorder %v3599, 0.0
        %vm3646 = vcmp.gt.f32.partialorder %v3601, 0.0
        %vm3647 = vcmp.gt.f32.partialorder %v3603, 0.0
        %vm3648 = vcmp.gt.f32.partialorder %v3605, 0.0
        %vm3649 = vcmp.gt.f32.partialorder %v3607, 0.0
        %vm3650 = vcmp.gt.f32.partialorder %v3609, 0.0
        %vm3651 = vcmp.gt.f32.partialorder %v3611, 0.0
        %vm3652 = vcmp.gt.f32.partialorder %v3613, 0.0
        %vm3653 = vcmp.gt.f32.partialorder %v3615, 0.0
        %v3654 = vsel %vm3616, 1, 0
        %v3655 = vsel %vm3617, 1, 0
        %v3656 = vsel %vm3618, 1, 0
        %v3657 = vsel %vm3619, 1, 0
        %v3658 = vsel %vm3620, 1, 0
        %v3659 = vsel %vm3621, 1, 0
        %v3660 = vsel %vm3622, 1, 0
        %v3661 = vsel %vm3623, 1, 0
        %v3662 = vsel %vm3624, 1, 0
        %v3663 = vsel %vm3625, 1, 0
        %v3664 = vsel %vm3626, 1, 0
        %v3665 = vsel %vm3627, 1, 0
        %v3666 = vsel %vm3628, 1, 0
        %v3667 = vsel %vm3629, 1, 0
        %v3668 = vsel %vm3630, 1, 0
        %v3669 = vsel %vm3631, 1, 0
        %v3670 = vsel %vm3632, 1, 0
        %v3671 = vsel %vm3633, 1, 0
        %v3672 = vsel %vm3634, 1, 0
        %v3673 = vsel %vm3635, 1, 0
        %v3674 = vsel %vm3636, 1, 0
        %v3675 = vsel %vm3637, 1, 0
        %v3676 = vsel %vm3638, 1, 0
        %v3677 = vsel %vm3639, 1, 0
        %v3678 = vsel %vm3640, 1, 0
        %v3679 = vsel %vm3641, 1, 0
        %v3680 = vsel %vm3642, 1, 0
        %v3681 = vsel %vm3643, 1, 0
        %v3682 = vsel %vm3644, 1, 0
        %v3683 = vsel %vm3645, 1, 0
        %v3684 = vsel %vm3646, 1, 0
        %v3685 = vsel %vm3647, 1, 0
        %v3686 = vsel %vm3648, 1, 0
        %v3687 = vsel %vm3649, 1, 0
        %v3688 = vsel %vm3650, 1, 0
        %v3689 = vsel %vm3651, 1, 0
        %v3690 = vsel %vm3652, 1, 0
        %v3691 = vsel %vm3653, 1, 0
        %v3692 = vcvt.s32.f32 %v3654
        %v3693 = vcvt.s32.f32 %v3655
        %v3694 = vcvt.s32.f32 %v3656
        %v3695 = vcvt.s32.f32 %v3657
        %v3696 = vcvt.s32.f32 %v3658
        %v3697 = vcvt.s32.f32 %v3659
        %v3698 = vcvt.s32.f32 %v3660
        %v3699 = vcvt.s32.f32 %v3661
        %v3700 = vcvt.s32.f32 %v3662
        %v3701 = vcvt.s32.f32 %v3663
        %v3702 = vcvt.s32.f32 %v3664
        %v3703 = vcvt.s32.f32 %v3665
        %v3704 = vcvt.s32.f32 %v3666
        %v3705 = vcvt.s32.f32 %v3667
        %v3706 = vcvt.s32.f32 %v3668
        %v3707 = vcvt.s32.f32 %v3669
        %v3708 = vcvt.s32.f32 %v3670
        %v3709 = vcvt.s32.f32 %v3671
        %v3710 = vcvt.s32.f32 %v3672
        %v3711 = vcvt.s32.f32 %v3673
        %v3712 = vcvt.s32.f32 %v3674
        %v3713 = vcvt.s32.f32 %v3675
        %v3714 = vcvt.s32.f32 %v3676
        %v3715 = vcvt.s32.f32 %v3677
        %v3716 = vcvt.s32.f32 %v3678
        %v3717 = vcvt.s32.f32 %v3679
        %v3718 = vcvt.s32.f32 %v3680
        %v3719 = vcvt.s32.f32 %v3681
        %v3720 = vcvt.s32.f32 %v3682
        %v3721 = vcvt.s32.f32 %v3683
        %v3722 = vcvt.s32.f32 %v3684
        %v3723 = vcvt.s32.f32 %v3685
        %v3724 = vcvt.s32.f32 %v3686
        %v3725 = vcvt.s32.f32 %v3687
        %v3726 = vcvt.s32.f32 %v3688
        %v3727 = vcvt.s32.f32 %v3689
        %v3728 = vcvt.s32.f32 %v3690
        %v3729 = vcvt.s32.f32 %v3691
        %v3730 = vmul.f32 %v3692, %v3461
        %v3731 = vmul.f32 %v3693, %v3462
        %v3732 = vmul.f32 %v3694, %v3463
        %v3733 = vmul.f32 %v3695, %v3464
        %v3734 = vmul.f32 %v3696, %v3465
        %v3735 = vmul.f32 %v3697, %v3466
        %v3736 = vmul.f32 %v3698, %v3467
        %v3737 = vmul.f32 %v3699, %v3468
        %v3738 = vmul.f32 %v3700, %v3469
        %v3739 = vmul.f32 %v3701, %v3470
        %v3740 = vmul.f32 %v3702, %v3471
        %v3741 = vmul.f32 %v3703, %v3472
        %v3742 = vmul.f32 %v3704, %v3473
        %v3743 = vmul.f32 %v3705, %v3474
        %v3744 = vmul.f32 %v3706, %v3475
        %v3745 = vmul.f32 %v3707, %v3476
        %v3746 = vmul.f32 %v3708, %v3477
        %v3747 = vmul.f32 %v3709, %v3478
        %v3748 = vmul.f32 %v3710, %v3479
        %v3749 = vmul.f32 %v3711, %v3480
        %v3750 = vmul.f32 %v3712, %v3481
        %v3751 = vmul.f32 %v3713, %v3482
        %v3752 = vmul.f32 %v3714, %v3483
        %v3753 = vmul.f32 %v3715, %v3484
        %v3754 = vmul.f32 %v3716, %v3485
        %v3755 = vmul.f32 %v3717, %v3486
        %v3756 = vmul.f32 %v3718, %v3487
        %v3757 = vmul.f32 %v3719, %v3488
        %v3758 = vmul.f32 %v3720, %v3489
        %v3759 = vmul.f32 %v3721, %v3490
        %v3760 = vmul.f32 %v3722, %v3491
        %v3761 = vmul.f32 %v3723, %v3492
        %v3762 = vmul.f32 %v3724, %v3493
        %v3763 = vmul.f32 %v3725, %v3494
        %v3764 = vmul.f32 %v3726, %v3495
        %v3765 = vmul.f32 %v3727, %v3496
        %v3766 = vmul.f32 %v3728, %v3497
        %v3767 = vmul.f32 %v3729, %v3498
        %v3768 = vsub.f32 1.0, %v3692
        %v3769 = vsub.f32 1.0, %v3693
        %v3770 = vsub.f32 1.0, %v3694
        %v3771 = vsub.f32 1.0, %v3695
        %v3772 = vsub.f32 1.0, %v3696
        %v3773 = vsub.f32 1.0, %v3697
        %v3774 = vsub.f32 1.0, %v3698
        %v3775 = vsub.f32 1.0, %v3699
        %v3776 = vsub.f32 1.0, %v3700
        %v3777 = vsub.f32 1.0, %v3701
        %v3778 = vsub.f32 1.0, %v3702
        %v3779 = vsub.f32 1.0, %v3703
        %v3780 = vsub.f32 1.0, %v3704
        %v3781 = vsub.f32 1.0, %v3705
        %v3782 = vsub.f32 1.0, %v3706
        %v3783 = vsub.f32 1.0, %v3707
        %v3784 = vsub.f32 1.0, %v3708
        %v3785 = vsub.f32 1.0, %v3709
        %v3786 = vsub.f32 1.0, %v3710
        %v3787 = vsub.f32 1.0, %v3711
        %v3788 = vsub.f32 1.0, %v3712
        %v3789 = vsub.f32 1.0, %v3713
        %v3790 = vsub.f32 1.0, %v3714
        %v3791 = vsub.f32 1.0, %v3715
        %v3792 = vsub.f32 1.0, %v3716
        %v3793 = vsub.f32 1.0, %v3717
        %v3794 = vsub.f32 1.0, %v3718
        %v3795 = vsub.f32 1.0, %v3719
        %v3796 = vsub.f32 1.0, %v3720
        %v3797 = vsub.f32 1.0, %v3721
        %v3798 = vsub.f32 1.0, %v3722
        %v3799 = vsub.f32 1.0, %v3723
        %v3800 = vsub.f32 1.0, %v3724
        %v3801 = vsub.f32 1.0, %v3725
        %v3802 = vsub.f32 1.0, %v3726
        %v3803 = vsub.f32 1.0, %v3727
        %v3804 = vsub.f32 1.0, %v3728
        %v3805 = vsub.f32 1.0, %v3729
        %v3806 = vmul.f32 %v3768, %v436
        %v3807 = vmul.f32 %v3769, %v437
        %v3808 = vmul.f32 %v3770, %v438
        %v3809 = vmul.f32 %v3771, %v439
        %v3810 = vmul.f32 %v3772, %v440
        %v3811 = vmul.f32 %v3773, %v441
        %v3812 = vmul.f32 %v3774, %v442
        %v3813 = vmul.f32 %v3775, %v443
        %v3814 = vmul.f32 %v3776, %v444
        %v3815 = vmul.f32 %v3777, %v445
        %v3816 = vmul.f32 %v3778, %v446
        %v3817 = vmul.f32 %v3779, %v447
        %v3818 = vmul.f32 %v3780, %v448
        %v3819 = vmul.f32 %v3781, %v449
        %v3820 = vmul.f32 %v3782, %v450
        %v3821 = vmul.f32 %v3783, %v451
        %v3822 = vmul.f32 %v3784, %v452
        %v3823 = vmul.f32 %v3785, %v453
        %v3824 = vmul.f32 %v3786, %v454
        %v3825 = vmul.f32 %v3787, %v455
        %v3826 = vmul.f32 %v3788, %v456
        %v3827 = vmul.f32 %v3789, %v457
        %v3828 = vmul.f32 %v3790, %v458
        %v3829 = vmul.f32 %v3791, %v459
        %v3830 = vmul.f32 %v3792, %v460
        %v3831 = vmul.f32 %v3793, %v461
        %v3832 = vmul.f32 %v3794, %v462
        %v3833 = vmul.f32 %v3795, %v463
        %v3834 = vmul.f32 %v3796, %v464
        %v3835 = vmul.f32 %v3797, %v465
        %v3836 = vmul.f32 %v3798, %v466
        %v3837 = vmul.f32 %v3799, %v467
        %v3838 = vmul.f32 %v3800, %v468
        %v3839 = vmul.f32 %v3801, %v469
        %v3840 = vmul.f32 %v3802, %v470
        %v3841 = vmul.f32 %v3803, %v471
        %v3842 = vmul.f32 %v3804, %v472
        %v3843 = vmul.f32 %v3805, %v473
        %v3844 = vadd.f32 %v3730, %v3806
        %v3845 = vadd.f32 %v3731, %v3807
        %v3846 = vadd.f32 %v3732, %v3808
        %v3847 = vadd.f32 %v3733, %v3809
        %v3848 = vadd.f32 %v3734, %v3810
        %v3849 = vadd.f32 %v3735, %v3811
        %v3850 = vadd.f32 %v3736, %v3812
        %v3851 = vadd.f32 %v3737, %v3813
        %v3852 = vadd.f32 %v3738, %v3814
        %v3853 = vadd.f32 %v3739, %v3815
        %v3854 = vadd.f32 %v3740, %v3816
        %v3855 = vadd.f32 %v3741, %v3817
        %v3856 = vadd.f32 %v3742, %v3818
        %v3857 = vadd.f32 %v3743, %v3819
        %v3858 = vadd.f32 %v3744, %v3820
        %v3859 = vadd.f32 %v3745, %v3821
        %v3860 = vadd.f32 %v3746, %v3822
        %v3861 = vadd.f32 %v3747, %v3823
        %v3862 = vadd.f32 %v3748, %v3824
        %v3863 = vadd.f32 %v3749, %v3825
        %v3864 = vadd.f32 %v3750, %v3826
        %v3865 = vadd.f32 %v3751, %v3827
        %v3866 = vadd.f32 %v3752, %v3828
        %v3867 = vadd.f32 %v3753, %v3829
        %v3868 = vadd.f32 %v3754, %v3830
        %v3869 = vadd.f32 %v3755, %v3831
        %v3870 = vadd.f32 %v3756, %v3832
        %v3871 = vadd.f32 %v3757, %v3833
        %v3872 = vadd.f32 %v3758, %v3834
        %v3873 = vadd.f32 %v3759, %v3835
        %v3874 = vadd.f32 %v3760, %v3836
        %v3875 = vadd.f32 %v3761, %v3837
        %v3876 = vadd.f32 %v3762, %v3838
        %v3877 = vadd.f32 %v3763, %v3839
        %v3878 = vadd.f32 %v3764, %v3840
        %v3879 = vadd.f32 %v3765, %v3841
        %v3880 = vadd.f32 %v3766, %v3842
        %v3881 = vadd.f32 %v3767, %v3843
        %v3882 = vand.u32 2147483647, %v3844
        %v3883 = vand.u32 2147483647, %v3845
        %v3884 = vand.u32 2147483647, %v3846
        %v3885 = vand.u32 2147483647, %v3847
        %v3886 = vand.u32 2147483647, %v3848
        %v3887 = vand.u32 2147483647, %v3849
        %v3888 = vand.u32 2147483647, %v3850
        %v3889 = vand.u32 2147483647, %v3851
        %v3890 = vand.u32 2147483647, %v3852
        %v3891 = vand.u32 2147483647, %v3853
        %v3892 = vand.u32 2147483647, %v3854
        %v3893 = vand.u32 2147483647, %v3855
        %v3894 = vand.u32 2147483647, %v3856
        %v3895 = vand.u32 2147483647, %v3857
        %v3896 = vand.u32 2147483647, %v3858
        %v3897 = vand.u32 2147483647, %v3859
        %v3898 = vand.u32 2147483647, %v3860
        %v3899 = vand.u32 2147483647, %v3861
        %v3900 = vand.u32 2147483647, %v3862
        %v3901 = vand.u32 2147483647, %v3863
        %v3902 = vand.u32 2147483647, %v3864
        %v3903 = vand.u32 2147483647, %v3865
        %v3904 = vand.u32 2147483647, %v3866
        %v3905 = vand.u32 2147483647, %v3867
        %v3906 = vand.u32 2147483647, %v3868
        %v3907 = vand.u32 2147483647, %v3869
        %v3908 = vand.u32 2147483647, %v3870
        %v3909 = vand.u32 2147483647, %v3871
        %v3910 = vand.u32 2147483647, %v3872
        %v3911 = vand.u32 2147483647, %v3873
        %v3912 = vand.u32 2147483647, %v3874
        %v3913 = vand.u32 2147483647, %v3875
        %v3914 = vand.u32 2147483647, %v3876
        %v3915 = vand.u32 2147483647, %v3877
        %v3916 = vand.u32 2147483647, %v3878
        %v3917 = vand.u32 2147483647, %v3879
        %v3918 = vand.u32 2147483647, %v3880
        %v3919 = vand.u32 2147483647, %v3881
        %v3920 = vsel %vm3270, %v3882, %v3844
        %v3921 = vsel %vm3270, %v3883, %v3845
        %v3922 = vsel %vm3270, %v3884, %v3846
        %v3923 = vsel %vm3270, %v3885, %v3847
        %v3924 = vsel %vm3270, %v3886, %v3848
        %v3925 = vsel %vm3270, %v3887, %v3849
        %v3926 = vsel %vm3270, %v3888, %v3850
        %v3927 = vsel %vm3270, %v3889, %v3851
        %v3928 = vsel %vm3270, %v3890, %v3852
        %v3929 = vsel %vm3270, %v3891, %v3853
        %v3930 = vsel %vm3270, %v3892, %v3854
        %v3931 = vsel %vm3270, %v3893, %v3855
        %v3932 = vsel %vm3270, %v3894, %v3856
        %v3933 = vsel %vm3270, %v3895, %v3857
        %v3934 = vsel %vm3270, %v3896, %v3858
        %v3935 = vsel %vm3270, %v3897, %v3859
        %v3936 = vsel %vm3270, %v3898, %v3860
        %v3937 = vsel %vm3270, %v3899, %v3861
        %v3938 = vsel %vm3270, %v3900, %v3862
        %v3939 = vsel %vm3270, %v3901, %v3863
        %v3940 = vsel %vm3270, %v3902, %v3864
        %v3941 = vsel %vm3270, %v3903, %v3865
        %v3942 = vsel %vm3270, %v3904, %v3866
        %v3943 = vsel %vm3270, %v3905, %v3867
        %v3944 = vsel %vm3270, %v3906, %v3868
        %v3945 = vsel %vm3270, %v3907, %v3869
        %v3946 = vsel %vm3270, %v3908, %v3870
        %v3947 = vsel %vm3270, %v3909, %v3871
        %v3948 = vsel %vm3270, %v3910, %v3872
        %v3949 = vsel %vm3270, %v3911, %v3873
        %v3950 = vsel %vm3270, %v3912, %v3874
        %v3951 = vsel %vm3270, %v3913, %v3875
        %v3952 = vsel %vm3270, %v3914, %v3876
        %v3953 = vsel %vm3270, %v3915, %v3877
        %v3954 = vsel %vm3270, %v3916, %v3878
        %v3955 = vsel %vm3270, %v3917, %v3879
        %v3956 = vsel %vm3270, %v3918, %v3880
        %v3957 = vsel %vm3270, %v3919, %v3881
        %3958 = vst [vmem:[%s433] sm:$0xff] %v3920
        %3959 = vst [vmem:[%s433 + $0x8] sm:$0xff] %v3921
        %3960 = vst [vmem:[%s433 + $0x10] sm:$0xff] %v3922
        %3961 = vst [vmem:[%s433 + $0x18] sm:$0xff] %v3923
        %3962 = vst [vmem:[%s433 + $0x20] sm:$0xff] %v3924
        %3963 = vst [vmem:[%s433 + $0x28] sm:$0xff] %v3925
        %3964 = vst [vmem:[%s433 + $0x30] sm:$0xff] %v3926
        %3965 = vst [vmem:[%s433 + $0x38] sm:$0xff] %v3927
        %3966 = vst [vmem:[%s433 + $0x40] sm:$0xff] %v3928
        %3967 = vst [vmem:[%s433 + $0x48] sm:$0xff] %v3929
        %3968 = vst [vmem:[%s433 + $0x50] sm:$0xff] %v3930
        %3969 = vst [vmem:[%s433 + $0x58] sm:$0xff] %v3931
        %3970 = vst [vmem:[%s433 + $0x60] sm:$0xff] %v3932
        %3971 = vst [vmem:[%s433 + $0x68] sm:$0xff] %v3933
        %3972 = vst [vmem:[%s433 + $0x70] sm:$0xff] %v3934
        %3973 = vst [vmem:[%s433 + $0x78] sm:$0xff] %v3935
        %3974 = vst [vmem:[%s433 + $0x80] sm:$0xff] %v3936
        %3975 = vst [vmem:[%s433 + $0x88] sm:$0xff] %v3937
        %3976 = vst [vmem:[%s433 + $0x90] sm:$0xff] %v3938
        %3977 = vst [vmem:[%s433 + $0x98] sm:$0xff] %v3939
        %3978 = vst [vmem:[%s433 + $0xa0] sm:$0xff] %v3940
        %3979 = vst [vmem:[%s433 + $0xa8] sm:$0xff] %v3941
        %3980 = vst [vmem:[%s433 + $0xb0] sm:$0xff] %v3942
        %3981 = vst [vmem:[%s433 + $0xb8] sm:$0xff] %v3943
        %3982 = vst [vmem:[%s433 + $0xc0] sm:$0xff] %v3944
        %3983 = vst [vmem:[%s433 + $0xc8] sm:$0xff] %v3945
        %3984 = vst [vmem:[%s433 + $0xd0] sm:$0xff] %v3946
        %3985 = vst [vmem:[%s433 + $0xd8] sm:$0xff] %v3947
        %3986 = vst [vmem:[%s433 + $0xe0] sm:$0xff] %v3948
        %3987 = vst [vmem:[%s433 + $0xe8] sm:$0xff] %v3949
        %3988 = vst [vmem:[%s433 + $0xf0] sm:$0xff] %v3950
        %3989 = vst [vmem:[%s433 + $0xf8] sm:$0xff] %v3951
        %3990 = vst [vmem:[%s433 + $0x100] sm:$0xff] %v3952
        %3991 = vst [vmem:[%s433 + $0x108] sm:$0xff] %v3953
        %3992 = vst [vmem:[%s433 + $0x110] sm:$0xff] %v3954
        %3993 = vst [vmem:[%s433 + $0x118] sm:$0xff] %v3955
        %3994 = vst [vmem:[%s433 + $0x120] sm:$0xff] %v3956
        %3995 = vst [vmem:[%s433 + $0x128] sm:$0xff] %v3957
        %s3996 = sand.u32 %s231, 1
        %s3997 = scalar_lea.sflag [#allocation4], %s3996
        %s3998 = sand.u32 %s231, 1
        %s3999 = smul.addr %s3998, 304
        %s4000 = scalar_lea.vmem [#allocation13], %s3999
        // Predicated region
        $region81: #{tpu_custom_call.1} parent=55 // pred_check
          %p4001 = pneg %p241
        $region82: #{tpu_custom_call.1} parent=55 // pred_check_branch
          %4003 = sbr.rel (%p4001) target = $region84
        $region83: #{tpu_custom_call.1} parent=55 // pred_region
          %s4004 = smul.u32 38, %s29
          %4006 = vsyncadd %s3997, 0
          %s4007 = smul.addr %s4004, 8
          %s4008 = scalar_lea.hbm %s9, %s4007
          %s4009 = sshll.u32 %s4000, 4
          %s4010 = int_to_ptr.vmem [resolvable:$true] %s4009
          %s4011 = sshll.u32 %s4008, 4
          %s4012 = int_to_ptr.hbm [resolvable:$true] %s4011
          %4017 = dma.vmem_to_hbm [thread:$0]  %s4010, 4864, %s4012, %s3997, 128, 128, 8
        $region84: #{tpu_custom_call.1} parent=55 // pred_fallthru
          _
      $region56: #{tpu_custom_call.1} parent=5 // pred_fallthru
        _
      %p4018 = scmp.le.s32.totalorder 2, %s24
      // Predicated region
      $region85: #{tpu_custom_call.1} parent=5 // pred_check
        %p4019 = pneg %p4018
      $region86: #{tpu_custom_call.1} parent=5 // pred_check_branch
        %4021 = sbr.rel (%p4019) target = $region88
      $region87: #{tpu_custom_call.1} parent=5 // pred_region
        %s4022 = ssub.s32 %s24, 2
        // Predicated region
        $region89: #{tpu_custom_call.1} parent=87 // pred_check
          %p4023 = pneg %p247
        $region90: #{tpu_custom_call.1} parent=87 // pred_check_branch
          %4025 = sbr.rel (%p4023) target = $region92
        $region91: #{tpu_custom_call.1} parent=87 // pred_region
          %s4026 = sand.u32 %s232, 1
          %s4027 = scalar_lea.sflag [#allocation4], %s4026
          %s4028 = sand.u32 %s232, 1
          %s4029 = smul.addr %s4028, 304
          %s4030 = scalar_lea.vmem [#allocation13], %s4029
          %4032 = dma.done %s4027, 4864
        $region92: #{tpu_custom_call.1} parent=87 // pred_fallthru
          _
      $region88: #{tpu_custom_call.1} parent=5 // pred_fallthru
        _
    $region6: #{tpu_custom_call.1} parent=1 // loop_footer
      %s28 = sadd.s32 1, %s24
    $region7: #{tpu_custom_call.1} parent=1 // loop_footer_branch
      %23 = sbr.rel target = $region3
    $region8: #{tpu_custom_call.1} parent=1 // loop_exit
      _
    %4033 = vsyncpa [#allocation3], 1
    %s4034 = scalar_lea.sflag [#allocation3], 1
    %4035 = vsyncpa %s4034, 1
    %4036 = vsyncpa [#allocation6], 1
    %4037 = vsyncpa [#allocation9], 1
    %4038 = vsyncpa [#allocation12], 1
    %4039 = vsyncpa [#allocation4], 1
    %s4040 = scalar_lea.sflag [#allocation4], 1
    %4041 = vsyncpa %s4040, 1

</llo_original>
